<compile_context>
chip_gen: v5e
topology: v5e:2x2
jax: 0.10.0
libtpu: 0.0.40
codegen_flags: <defaults>
</compile_context>

<pallas_src>
import functools

import jax
import jax.numpy as jnp
from jax import lax
from jax.experimental import pallas as pl
from jax.experimental.pallas import tpu as pltpu


# ----------------------------------------------------------------------------
# Fused forward kernel (grid over transformer layers)
# ----------------------------------------------------------------------------
def _fused_kernel(x0_ref, x1_ref, user_ref, t_ref, y_ref, amask_ref,
                  kw0_ref, kw1_ref, kb_ref,
                  wqkv_ref, bqkv_ref, wo_ref, bo_ref, g1_ref, be1_ref,
                  w1_ref, b1_ref, w2_ref, b2_ref, g2_ref, be2_ref,
                  wt_ref, bt_ref, wc_ref, bc_ref,
                  scores_ref, loss_ref,
                  h_scr,
                  *, B, S, E, H, A):
    bf16 = jnp.bfloat16
    f32 = jnp.float32
    N = B * S
    Dh = E // H
    l = pl.program_id(0)
    L = pl.num_programs(0)

    # ---- step 0 only: Fourier random-feature encoder fills the residual stream ----
    # concat(sin(x@W.T + b), cos(x@W.T + b)); K=2 contraction done as VPU broadcast FMAs.
    @pl.when(l == 0)
    def _():
        proj = (x0_ref[...] * kw0_ref[...] + x1_ref[...] * kw1_ref[...]
                + kb_ref[...])                                   # (B*S, E/2) f32
        h_scr[...] = jnp.concatenate([jnp.sin(proj), jnp.cos(proj)], axis=-1)

    def layernorm(z, g, b):
        mu = jnp.mean(z, axis=-1, keepdims=True)
        c = z - mu
        var = jnp.mean(c * c, axis=-1, keepdims=True)
        return c * lax.rsqrt(var + 1e-5) * g + b

    # ---- one TransformerEncoderLayer (batch_first, post-norm, ReLU FFN) ----
    h = h_scr[...]                                               # (B*S, E) f32
    hb = h.astype(bf16)
    # fused QKV projection (scale already folded into the q-part of wqkv/bqkv)
    qkv = (jnp.dot(hb, wqkv_ref[0], preferred_element_type=f32)
           + bqkv_ref[0])                                        # (B*S, 3E) f32

    # flattened attention with a block-diagonal batch mask: per head, two plain
    # 2D MXU dots over the full (B*S) axis — no head/batch transposes needed.
    trans_b = (((1,), (1,)), ((), ()))
    amask = amask_ref[...]                                       # (B*S, B*S) f32
    heads = []
    for hh in range(H):
        qh = qkv[:, hh * Dh:(hh + 1) * Dh].astype(bf16)
        kh = qkv[:, E + hh * Dh:E + (hh + 1) * Dh].astype(bf16)
        vh = qkv[:, 2 * E + hh * Dh:2 * E + (hh + 1) * Dh].astype(bf16)
        s = lax.dot_general(qh, kh, trans_b,
                            preferred_element_type=f32) + amask  # (B*S, B*S)
        s = s - jnp.max(s, axis=-1, keepdims=True)
        p = jnp.exp(s)
        p = p * pl.reciprocal(jnp.sum(p, axis=-1, keepdims=True), approx=True)
        heads.append(jnp.dot(p.astype(bf16), vh,
                             preferred_element_type=f32))        # (B*S, Dh)
    attn = jnp.concatenate(heads, axis=-1)                       # (B*S, E)
    attn = (jnp.dot(attn.astype(bf16), wo_ref[0],
                    preferred_element_type=f32) + bo_ref[0])

    x1 = layernorm(h + attn, g1_ref[0], be1_ref[0])
    h1 = jnp.maximum(
        jnp.dot(x1.astype(bf16), w1_ref[0],
                preferred_element_type=f32) + b1_ref[0], 0.0)
    ff = (jnp.dot(h1.astype(bf16), w2_ref[0],
                  preferred_element_type=f32) + b2_ref[0])
    h_new = layernorm(x1 + ff, g2_ref[0], be2_ref[0])
    h_scr[...] = h_new

    # ---- last step only: mean-pool, concat user vec, time gate, classifier, mean CE ----
    @pl.when(l == L - 1)
    def _():
        app = jnp.mean(h_new.reshape(B, S, E), axis=1)           # (B, E)
        combined = jnp.concatenate([app, user_ref[...]], axis=-1)  # (B, 2E)
        tw = jax.nn.sigmoid(
            jnp.dot(t_ref[...].astype(bf16), wt_ref[...],
                    preferred_element_type=f32) + bt_ref[...])   # (B, 2E)
        gated = jnp.maximum(combined * tw, 0.0)
        scores = (jnp.dot(gated.astype(bf16), wc_ref[...],
                          preferred_element_type=f32) + bc_ref[...])  # (B, A_pad)
        scores_ref[...] = scores

        # mean cross-entropy (lane-padded classes masked out), all in f32
        A_pad = scores.shape[-1]
        col = lax.broadcasted_iota(jnp.int32, (B, A_pad), 1)
        s_valid = jnp.where(col < A, scores, jnp.full_like(scores, -1e30))
        m = jnp.max(s_valid, axis=-1, keepdims=True)
        lse = jnp.log(jnp.sum(jnp.exp(s_valid - m), axis=-1, keepdims=True)) + m
        tgt = jnp.sum(jnp.where(col == y_ref[...], scores, 0.0),
                      axis=-1, keepdims=True)
        loss_ref[...] = jnp.broadcast_to(
            jnp.mean(lse - tgt, keepdims=True), loss_ref.shape)  # (1, 128) lane-dense


def fused_forward(params, x0, x1, user_vec, t2, y2, *, seq_len, num_heads, n_apps):
    B, E = user_vec.shape
    S = seq_len
    N = B * S
    assert x0.shape[0] == N and E % num_heads == 0
    L = params["wqkv"].shape[0]
    dff = params["w1"].shape[2]
    A_pad = params["wc_pad"].shape[1]
    Dh = E // num_heads

    # block-diagonal additive mask so flattened (B*S, B*S) attention never mixes batches
    batch_id = jnp.arange(N, dtype=jnp.int32) // S
    amask = jnp.where(batch_id[:, None] == batch_id[None, :],
                      0.0, -1e30).astype(jnp.float32)            # (N, N)

    ins = [x0, x1, user_vec, t2, y2, amask,
           params["kw0"], params["kw1"], params["kb"],
           params["wqkv"], params["bqkv"],
           params["wo"], params["bo"], params["g1"], params["be1"],
           params["w1"], params["b1"], params["w2"], params["b2"],
           params["g2"], params["be2"],
           params["wt"], params["bt"], params["wc_pad"], params["bc_pad"]]

    def shared_spec(a):
        return pl.BlockSpec(a.shape, lambda l, n=a.ndim: (0,) * n)

    def layer_spec(a):
        return pl.BlockSpec((1,) + a.shape[1:],
                            lambda l, n=a.ndim: (l,) + (0,) * (n - 1))

    in_specs = ([shared_spec(a) for a in ins[:9]]
                + [layer_spec(a) for a in ins[9:21]]      # per-layer stacked weights
                + [shared_spec(a) for a in ins[21:]])

    # advisory cost hint for XLA's scheduler
    flops_layer = (2 * N * E * (3 * E)                    # fused qkv
                   + num_heads * 4 * N * N * Dh           # scores + weighted sum
                   + 2 * N * E * E                        # out proj
                   + 2 * 2 * N * E * dff)                 # FFN
    flops = int(L * flops_layer + 2 * B * 24 * (2 * E) + 2 * B * (2 * E) * A_pad)
    transcendentals = int(N * E + L * num_heads * N * N + B * 2 * E + B * A_pad + B)
    bytes_accessed = int(sum(int(a.size) * a.dtype.itemsize for a in ins)
                         + B * A_pad * 4 + 128 * 4)

    kernel = functools.partial(_fused_kernel, B=B, S=S, E=E, H=num_heads, A=n_apps)
    scores_pad, loss = pl.pallas_call(
        kernel,
        out_shape=(jax.ShapeDtypeStruct((B, A_pad), jnp.float32),
                   jax.ShapeDtypeStruct((1, 128), jnp.float32)),
        grid=(L,),
        in_specs=in_specs,
        out_specs=(pl.BlockSpec((B, A_pad), lambda l: (0, 0)),
                   pl.BlockSpec((1, 128), lambda l: (0, 0))),
        scratch_shapes=[pltpu.VMEM((N, E), jnp.float32)],   # residual stream carry
        compiler_params=pltpu.CompilerParams(
            dimension_semantics=("arbitrary",)),
        cost_estimate=pl.CostEstimate(flops=flops,
                                      transcendentals=transcendentals,
                                      bytes_accessed=bytes_accessed),
    )(*ins)
    return scores_pad, loss


# ----------------------------------------------------------------------------
# Parameters (deterministic; matmul weights stored pre-transposed & bf16, QKV fused
# with the attention scale folded in, classifier padded to a lane-dense 128-wide
# output; biases / LN params f32)
# ----------------------------------------------------------------------------
def init_params(key, n_users, n_apps, hid, num_layers=2, dim_ff=2048, num_heads=4):
    half = hid // 2
    a_pad = ((n_apps + 127) // 128) * 128
    dh = hid // num_heads
    scale = 1.0 / float(dh) ** 0.5
    key_box = [key]

    def next_key():
        key_box[0], sub = jax.random.split(key_box[0])
        return sub

    def nrm(shape, s=0.1):
        return s * jax.random.normal(next_key(), shape, jnp.float32)

    def pad_lanes(m, width):
        z = jnp.zeros(m.shape[:-1] + (width,), m.dtype)
        return z.at[..., :m.shape[-1]].set(m)

    ker_w = jax.random.normal(next_key(), (half, 2), jnp.float32)
    ker_b = jax.random.normal(next_key(), (half,), jnp.float32)
    wc = nrm((hid * 2, n_apps))
    bc = nrm((1, n_apps))

    params = {
        "kw0": ker_w[:, 0].reshape(1, half),    # rows of w.T (VPU FMA form)
        "kw1": ker_w[:, 1].reshape(1, half),
        "kb": ker_b.reshape(1, half),
        "user_emb": nrm((n_users, hid), 1.0),
        "wt": nrm((24, hid * 2)).astype(jnp.bfloat16),        # time_embedding.weight.T
        "bt": nrm((1, hid * 2)),
        "wc_pad": pad_lanes(wc, a_pad).astype(jnp.bfloat16),  # classifier.weight.T
        "bc_pad": pad_lanes(bc, a_pad),
    }

    wqkv_l, bqkv_l = [], []
    wo_l, bo_l, w1_l, b1_l, w2_l, b2_l = [], [], [], [], [], []
    g1_l, be1_l, g2_l, be2_l = [], [], [], []
    for _ in range(num_layers):
        wq, wk, wv = nrm((hid, hid)), nrm((hid, hid)), nrm((hid, hid))
        bq, bk, bv = nrm((1, hid)), nrm((1, hid)), nrm((1, hid))
        # fused in-proj; fold 1/sqrt(Dh) attention scale into the q part
        wqkv_l.append(jnp.concatenate([wq * scale, wk, wv], axis=-1))
        bqkv_l.append(jnp.concatenate([bq * scale, bk, bv], axis=-1))
        wo_l.append(nrm((hid, hid)));       bo_l.append(nrm((1, hid)))
        w1_l.append(nrm((hid, dim_ff)));    b1_l.append(nrm((1, dim_ff)))
        w2_l.append(nrm((dim_ff, hid)));    b2_l.append(nrm((1, hid)))
        g1_l.append(jnp.ones((1, hid), jnp.float32))
        be1_l.append(jnp.zeros((1, hid), jnp.float32))
        g2_l.append(jnp.ones((1, hid), jnp.float32))
        be2_l.append(jnp.zeros((1, hid), jnp.float32))

    params.update({
        "wqkv": jnp.stack(wqkv_l).astype(jnp.bfloat16),   # (L, hid, 3*hid)
        "bqkv": jnp.stack(bqkv_l),                        # (L, 1, 3*hid) f32
        "wo": jnp.stack(wo_l).astype(jnp.bfloat16),
        "bo": jnp.stack(bo_l),
        "w1": jnp.stack(w1_l).astype(jnp.bfloat16),
        "b1": jnp.stack(b1_l),
        "w2": jnp.stack(w2_l).astype(jnp.bfloat16),
        "b2": jnp.stack(b2_l),
        "g1": jnp.stack(g1_l), "be1": jnp.stack(be1_l),
        "g2": jnp.stack(g2_l), "be2": jnp.stack(be2_l),
    })
    return params


# ----------------------------------------------------------------------------
# Full forward (glue: embedding gather + reshapes stay in plain JAX)
# ----------------------------------------------------------------------------
def transformer_gcn_forward(params, x, y, u, t, seq_len, num_heads, n_apps,
                            mode="train"):
    B = u.shape[0]
    user_vec = params["user_emb"][u[:, 0]]               # (B, hid) embedding gather
    t2 = t.reshape(B, 24).astype(jnp.float32)
    y2 = y.reshape(B, 1).astype(jnp.int32)
    x0 = x[:, 0:1].astype(jnp.float32)                   # pre-split Fourier inputs
    x1 = x[:, 1:2].astype(jnp.float32)

    scores_pad, loss = fused_forward(params, x0, x1, user_vec, t2, y2,
                                     seq_len=seq_len, num_heads=num_heads,
                                     n_apps=n_apps)
    loss = loss[0, 0]
    # TODO(synk): nn.Dropout is stochastic; modeled as identity (eval mode).
    if mode == "predict":
        return scores_pad[:, :n_apps], loss
    return loss


if __name__ == "__main__":
    B, seq_len, hid = 2, 8, 32
    n_users, n_apps = 16, 10
    num_heads, num_layers = 4, 2
    dim_ff = 2048  # PyTorch TransformerEncoderLayer default dim_feedforward

    key = jax.random.PRNGKey(0)
    k1, k2, k3, k4, kp = jax.random.split(key, 5)
    x = jax.random.normal(k1, (B * seq_len, 2), jnp.float32)   # (x, y) coords
    y = jax.random.randint(k2, (B,), 0, n_apps, jnp.int32)     # target app ids
    u = jax.random.randint(k3, (B, 1), 0, n_users, jnp.int32)  # user ids
    t = jax.random.normal(k4, (B, 1, 24), jnp.float32)         # hour-of-day feats

    params = init_params(kp, n_users, n_apps, hid, num_layers, dim_ff, num_heads)

    loss = transformer_gcn_forward(params, x, y, u, t, seq_len, num_heads,
                                   n_apps, mode="train")
    loss = jax.block_until_ready(loss)
    assert bool(jnp.isfinite(loss)), f"non-finite loss: {loss}"
    print("KERNEL_OK")
</pallas_src>

<mosaic_0001>
module attributes {stable_mosaic.version = 11 : i64} {
  func.func @_fused_kernel(%arg0: i32, %arg1: memref<16x1xf32, #tpu.memory_space<vmem>>, %arg2: memref<16x1xf32, #tpu.memory_space<vmem>>, %arg3: memref<2x32xf32, #tpu.memory_space<vmem>>, %arg4: memref<2x24xf32, #tpu.memory_space<vmem>>, %arg5: memref<2x1xi32, #tpu.memory_space<vmem>>, %arg6: memref<16x16xf32, #tpu.memory_space<vmem>>, %arg7: memref<1x16xf32, #tpu.memory_space<vmem>>, %arg8: memref<1x16xf32, #tpu.memory_space<vmem>>, %arg9: memref<1x16xf32, #tpu.memory_space<vmem>>, %arg10: memref<1x32x96xbf16, #tpu.memory_space<vmem>>, %arg11: memref<1x1x96xf32, #tpu.memory_space<vmem>>, %arg12: memref<1x32x32xbf16, #tpu.memory_space<vmem>>, %arg13: memref<1x1x32xf32, #tpu.memory_space<vmem>>, %arg14: memref<1x1x32xf32, #tpu.memory_space<vmem>>, %arg15: memref<1x1x32xf32, #tpu.memory_space<vmem>>, %arg16: memref<1x32x2048xbf16, #tpu.memory_space<vmem>>, %arg17: memref<1x1x2048xf32, #tpu.memory_space<vmem>>, %arg18: memref<1x2048x32xbf16, #tpu.memory_space<vmem>>, %arg19: memref<1x1x32xf32, #tpu.memory_space<vmem>>, %arg20: memref<1x1x32xf32, #tpu.memory_space<vmem>>, %arg21: memref<1x1x32xf32, #tpu.memory_space<vmem>>, %arg22: memref<24x64xbf16, #tpu.memory_space<vmem>>, %arg23: memref<1x64xf32, #tpu.memory_space<vmem>>, %arg24: memref<64x128xbf16, #tpu.memory_space<vmem>>, %arg25: memref<1x128xf32, #tpu.memory_space<vmem>>, %arg26: memref<2x128xf32, #tpu.memory_space<vmem>>, %arg27: memref<1x128xf32, #tpu.memory_space<vmem>>, %arg28: memref<16x32xf32, #tpu.memory_space<vmem>>) attributes {dimension_semantics = [#tpu.dimension_semantics<arbitrary>], iteration_bounds = array<i64: 2>, scalar_prefetch = 0 : i64, scratch_operands = 1 : i64, tpu.core_type = #tpu.core_type<tc>, window_params = [{pipeline_mode = #tpu.pipeline_mode<synchronous>, transform_indices = @transform_0, window_bounds = array<i64: 16, 1>}, {pipeline_mode = #tpu.pipeline_mode<synchronous>, transform_indices = @transform_1, window_bounds = array<i64: 16, 1>}, {pipeline_mode = #tpu.pipeline_mode<synchronous>, transform_indices = @transform_2, window_bounds = array<i64: 2, 32>}, {pipeline_mode = #tpu.pipeline_mode<synchronous>, transform_indices = @transform_3, window_bounds = array<i64: 2, 24>}, {pipeline_mode = #tpu.pipeline_mode<synchronous>, transform_indices = @transform_4, window_bounds = array<i64: 2, 1>}, {pipeline_mode = #tpu.pipeline_mode<synchronous>, transform_indices = @transform_5, window_bounds = array<i64: 16, 16>}, {pipeline_mode = #tpu.pipeline_mode<synchronous>, transform_indices = @transform_6, window_bounds = array<i64: 1, 16>}, {pipeline_mode = #tpu.pipeline_mode<synchronous>, transform_indices = @transform_7, window_bounds = array<i64: 1, 16>}, {pipeline_mode = #tpu.pipeline_mode<synchronous>, transform_indices = @transform_8, window_bounds = array<i64: 1, 16>}, {transform_indices = @transform_9, window_bounds = array<i64: 1, 32, 96>}, {transform_indices = @transform_10, window_bounds = array<i64: 1, 1, 96>}, {transform_indices = @transform_11, window_bounds = array<i64: 1, 32, 32>}, {transform_indices = @transform_12, window_bounds = array<i64: 1, 1, 32>}, {transform_indices = @transform_13, window_bounds = array<i64: 1, 1, 32>}, {transform_indices = @transform_14, window_bounds = array<i64: 1, 1, 32>}, {transform_indices = @transform_15, window_bounds = array<i64: 1, 32, 2048>}, {transform_indices = @transform_16, window_bounds = array<i64: 1, 1, 2048>}, {transform_indices = @transform_17, window_bounds = array<i64: 1, 2048, 32>}, {transform_indices = @transform_18, window_bounds = array<i64: 1, 1, 32>}, {transform_indices = @transform_19, window_bounds = array<i64: 1, 1, 32>}, {transform_indices = @transform_20, window_bounds = array<i64: 1, 1, 32>}, {pipeline_mode = #tpu.pipeline_mode<synchronous>, transform_indices = @transform_21, window_bounds = array<i64: 24, 64>}, {pipeline_mode = #tpu.pipeline_mode<synchronous>, transform_indices = @transform_22, window_bounds = array<i64: 1, 64>}, {pipeline_mode = #tpu.pipeline_mode<synchronous>, transform_indices = @transform_23, window_bounds = array<i64: 64, 128>}, {pipeline_mode = #tpu.pipeline_mode<synchronous>, transform_indices = @transform_24, window_bounds = array<i64: 1, 128>}, {pipeline_mode = #tpu.pipeline_mode<synchronous>, transform_indices = @transform_25, window_bounds = array<i64: 2, 128>}, {pipeline_mode = #tpu.pipeline_mode<synchronous>, transform_indices = @transform_26, window_bounds = array<i64: 1, 128>}]} {
    %c0_i32 = arith.constant 0 : i32
    %0 = arith.cmpi eq, %arg0, %c0_i32 : i32
    %1 = arith.extui %0 : i1 to i32
    %c0_i32_0 = arith.constant 0 : i32
    %2 = arith.cmpi ne, %1, %c0_i32_0 : i32
    scf.if %2 {
      %c0_73 = arith.constant 0 : index
      %c0_74 = arith.constant 0 : index
      %174 = vector.load %arg1[%c0_73, %c0_74] : memref<16x1xf32, #tpu.memory_space<vmem>>, vector<16x1xf32>
      %c0_75 = arith.constant 0 : index
      %c0_76 = arith.constant 0 : index
      %175 = vector.load %arg7[%c0_75, %c0_76] : memref<1x16xf32, #tpu.memory_space<vmem>>, vector<1x16xf32>
      %176 = vector.broadcast %174 : vector<16x1xf32> to vector<16x16xf32>
      %177 = vector.broadcast %175 : vector<1x16xf32> to vector<16x16xf32>
      %178 = arith.mulf %176, %177 : vector<16x16xf32>
      %c0_77 = arith.constant 0 : index
      %c0_78 = arith.constant 0 : index
      %179 = vector.load %arg2[%c0_77, %c0_78] : memref<16x1xf32, #tpu.memory_space<vmem>>, vector<16x1xf32>
      %c0_79 = arith.constant 0 : index
      %c0_80 = arith.constant 0 : index
      %180 = vector.load %arg8[%c0_79, %c0_80] : memref<1x16xf32, #tpu.memory_space<vmem>>, vector<1x16xf32>
      %181 = vector.broadcast %179 : vector<16x1xf32> to vector<16x16xf32>
      %182 = vector.broadcast %180 : vector<1x16xf32> to vector<16x16xf32>
      %183 = arith.mulf %181, %182 : vector<16x16xf32>
      %184 = arith.addf %178, %183 : vector<16x16xf32>
      %c0_81 = arith.constant 0 : index
      %c0_82 = arith.constant 0 : index
      %185 = vector.load %arg9[%c0_81, %c0_82] : memref<1x16xf32, #tpu.memory_space<vmem>>, vector<1x16xf32>
      %186 = vector.broadcast %185 : vector<1x16xf32> to vector<16x16xf32>
      %187 = arith.addf %184, %186 : vector<16x16xf32>
      %188 = math.sin %187 : vector<16x16xf32>
      %189 = math.cos %187 : vector<16x16xf32>
      %190 = tpu.concatenate %188, %189 in 1 : vector<16x16xf32>, vector<16x16xf32> -> vector<16x32xf32>
      %c0_83 = arith.constant 0 : index
      %c0_84 = arith.constant 0 : index
      %191 = vector.load %arg28[%c0_83, %c0_84] : memref<16x32xf32, #tpu.memory_space<vmem>>, vector<16x32xf32>
      tpu.vector_store %arg28[%c0_83, %c0_84], %190 {strides = array<i32>} : memref<16x32xf32, #tpu.memory_space<vmem>>, vector<16x32xf32>,
    } else {
    }
    %c0 = arith.constant 0 : index
    %c0_1 = arith.constant 0 : index
    %3 = vector.load %arg28[%c0, %c0_1] : memref<16x32xf32, #tpu.memory_space<vmem>>, vector<16x32xf32>
    %4 = arith.truncf %3 : vector<16x32xf32> to vector<16x32xbf16>
    %c0_2 = arith.constant 0 : index
    %c0_3 = arith.constant 0 : index
    %c0_4 = arith.constant 0 : index
    %5 = vector.load %arg10[%c0_2, %c0_3, %c0_4] : memref<1x32x96xbf16, #tpu.memory_space<vmem>>, vector<1x32x96xbf16>
    %6 = vector.shape_cast %5 : vector<1x32x96xbf16> to vector<32x96xbf16>
    %cst = arith.constant dense<0.000000e+00> : vector<16x96xf32>
    %7 = tpu.matmul %4, %6, %cst {dimension_numbers = #tpu.dot_dimension_numbers<[1], [0], [0], [1], [0, 0, 1, 1], [], []>} : vector<16x32xbf16>, vector<32x96xbf16>, vector<16x96xf32> -> vector<16x96xf32>
    %c0_5 = arith.constant 0 : index
    %c0_6 = arith.constant 0 : index
    %c0_7 = arith.constant 0 : index
    %8 = vector.load %arg11[%c0_5, %c0_6, %c0_7] : memref<1x1x96xf32, #tpu.memory_space<vmem>>, vector<1x1x96xf32>
    %9 = vector.shape_cast %8 : vector<1x1x96xf32> to vector<1x96xf32>
    %10 = vector.broadcast %9 : vector<1x96xf32> to vector<16x96xf32>
    %11 = arith.addf %7, %10 : vector<16x96xf32>
    %c0_8 = arith.constant 0 : index
    %c0_9 = arith.constant 0 : index
    %12 = vector.load %arg6[%c0_8, %c0_9] : memref<16x16xf32, #tpu.memory_space<vmem>>, vector<16x16xf32>
    %13 = vector.extract_strided_slice %11 {offsets = [0, 0], sizes = [16, 8], strides = [1, 1]} : vector<16x96xf32> to vector<16x8xf32>
    %14 = arith.truncf %13 : vector<16x8xf32> to vector<16x8xbf16>
    %15 = vector.extract_strided_slice %11 {offsets = [0, 32], sizes = [16, 8], strides = [1, 1]} : vector<16x96xf32> to vector<16x8xf32>
    %16 = arith.truncf %15 : vector<16x8xf32> to vector<16x8xbf16>
    %17 = vector.extract_strided_slice %11 {offsets = [0, 64], sizes = [16, 8], strides = [1, 1]} : vector<16x96xf32> to vector<16x8xf32>
    %18 = arith.truncf %17 : vector<16x8xf32> to vector<16x8xbf16>
    %cst_10 = arith.constant dense<0.000000e+00> : vector<16x16xf32>
    %19 = tpu.matmul %14, %16, %cst_10 {dimension_numbers = #tpu.dot_dimension_numbers<[1], [1], [0], [0], [0, 0, 1, 0], [], []>} : vector<16x8xbf16>, vector<16x8xbf16>, vector<16x16xf32> -> vector<16x16xf32>
    %20 = arith.addf %19, %12 : vector<16x16xf32>
    %cst_11 = arith.constant dense<0xFF800000> : vector<16xf32>
    %21 = vector.multi_reduction <maximumf>, %20, %cst_11 [1] : vector<16x16xf32> to vector<16xf32>
    %22 = vector.shape_cast %21 : vector<16xf32> to vector<16x1xf32>
    %23 = vector.broadcast %22 : vector<16x1xf32> to vector<16x16xf32>
    %24 = arith.subf %20, %23 : vector<16x16xf32>
    %25 = math.exp %24 : vector<16x16xf32>
    %cst_12 = arith.constant dense<0.000000e+00> : vector<16xf32>
    %26 = vector.multi_reduction <add>, %25, %cst_12 [1] : vector<16x16xf32> to vector<16xf32>
    %27 = vector.shape_cast %26 : vector<16xf32> to vector<16x1xf32>
    %28 = tpu.reciprocal %27 {approx = true} : vector<16x1xf32> -> vector<16x1xf32>
    %29 = vector.broadcast %28 : vector<16x1xf32> to vector<16x16xf32>
    %30 = arith.mulf %25, %29 : vector<16x16xf32>
    %31 = arith.truncf %30 : vector<16x16xf32> to vector<16x16xbf16>
    %cst_13 = arith.constant dense<0.000000e+00> : vector<16x8xf32>
    %32 = tpu.matmul %31, %18, %cst_13 {dimension_numbers = #tpu.dot_dimension_numbers<[1], [0], [0], [1], [0, 0, 1, 1], [], []>} : vector<16x16xbf16>, vector<16x8xbf16>, vector<16x8xf32> -> vector<16x8xf32>
    %33 = vector.extract_strided_slice %11 {offsets = [0, 8], sizes = [16, 8], strides = [1, 1]} : vector<16x96xf32> to vector<16x8xf32>
    %34 = arith.truncf %33 : vector<16x8xf32> to vector<16x8xbf16>
    %35 = vector.extract_strided_slice %11 {offsets = [0, 40], sizes = [16, 8], strides = [1, 1]} : vector<16x96xf32> to vector<16x8xf32>
    %36 = arith.truncf %35 : vector<16x8xf32> to vector<16x8xbf16>
    %37 = vector.extract_strided_slice %11 {offsets = [0, 72], sizes = [16, 8], strides = [1, 1]} : vector<16x96xf32> to vector<16x8xf32>
    %38 = arith.truncf %37 : vector<16x8xf32> to vector<16x8xbf16>
    %cst_14 = arith.constant dense<0.000000e+00> : vector<16x16xf32>
    %39 = tpu.matmul %34, %36, %cst_14 {dimension_numbers = #tpu.dot_dimension_numbers<[1], [1], [0], [0], [0, 0, 1, 0], [], []>} : vector<16x8xbf16>, vector<16x8xbf16>, vector<16x16xf32> -> vector<16x16xf32>
    %40 = arith.addf %39, %12 : vector<16x16xf32>
    %cst_15 = arith.constant dense<0xFF800000> : vector<16xf32>
    %41 = vector.multi_reduction <maximumf>, %40, %cst_15 [1] : vector<16x16xf32> to vector<16xf32>
    %42 = vector.shape_cast %41 : vector<16xf32> to vector<16x1xf32>
    %43 = vector.broadcast %42 : vector<16x1xf32> to vector<16x16xf32>
    %44 = arith.subf %40, %43 : vector<16x16xf32>
    %45 = math.exp %44 : vector<16x16xf32>
    %cst_16 = arith.constant dense<0.000000e+00> : vector<16xf32>
    %46 = vector.multi_reduction <add>, %45, %cst_16 [1] : vector<16x16xf32> to vector<16xf32>
    %47 = vector.shape_cast %46 : vector<16xf32> to vector<16x1xf32>
    %48 = tpu.reciprocal %47 {approx = true} : vector<16x1xf32> -> vector<16x1xf32>
    %49 = vector.broadcast %48 : vector<16x1xf32> to vector<16x16xf32>
    %50 = arith.mulf %45, %49 : vector<16x16xf32>
    %51 = arith.truncf %50 : vector<16x16xf32> to vector<16x16xbf16>
    %cst_17 = arith.constant dense<0.000000e+00> : vector<16x8xf32>
    %52 = tpu.matmul %51, %38, %cst_17 {dimension_numbers = #tpu.dot_dimension_numbers<[1], [0], [0], [1], [0, 0, 1, 1], [], []>} : vector<16x16xbf16>, vector<16x8xbf16>, vector<16x8xf32> -> vector<16x8xf32>
    %53 = vector.extract_strided_slice %11 {offsets = [0, 16], sizes = [16, 8], strides = [1, 1]} : vector<16x96xf32> to vector<16x8xf32>
    %54 = arith.truncf %53 : vector<16x8xf32> to vector<16x8xbf16>
    %55 = vector.extract_strided_slice %11 {offsets = [0, 48], sizes = [16, 8], strides = [1, 1]} : vector<16x96xf32> to vector<16x8xf32>
    %56 = arith.truncf %55 : vector<16x8xf32> to vector<16x8xbf16>
    %57 = vector.extract_strided_slice %11 {offsets = [0, 80], sizes = [16, 8], strides = [1, 1]} : vector<16x96xf32> to vector<16x8xf32>
    %58 = arith.truncf %57 : vector<16x8xf32> to vector<16x8xbf16>
    %cst_18 = arith.constant dense<0.000000e+00> : vector<16x16xf32>
    %59 = tpu.matmul %54, %56, %cst_18 {dimension_numbers = #tpu.dot_dimension_numbers<[1], [1], [0], [0], [0, 0, 1, 0], [], []>} : vector<16x8xbf16>, vector<16x8xbf16>, vector<16x16xf32> -> vector<16x16xf32>
    %60 = arith.addf %59, %12 : vector<16x16xf32>
    %cst_19 = arith.constant dense<0xFF800000> : vector<16xf32>
    %61 = vector.multi_reduction <maximumf>, %60, %cst_19 [1] : vector<16x16xf32> to vector<16xf32>
    %62 = vector.shape_cast %61 : vector<16xf32> to vector<16x1xf32>
    %63 = vector.broadcast %62 : vector<16x1xf32> to vector<16x16xf32>
    %64 = arith.subf %60, %63 : vector<16x16xf32>
    %65 = math.exp %64 : vector<16x16xf32>
    %cst_20 = arith.constant dense<0.000000e+00> : vector<16xf32>
    %66 = vector.multi_reduction <add>, %65, %cst_20 [1] : vector<16x16xf32> to vector<16xf32>
    %67 = vector.shape_cast %66 : vector<16xf32> to vector<16x1xf32>
    %68 = tpu.reciprocal %67 {approx = true} : vector<16x1xf32> -> vector<16x1xf32>
    %69 = vector.broadcast %68 : vector<16x1xf32> to vector<16x16xf32>
    %70 = arith.mulf %65, %69 : vector<16x16xf32>
    %71 = arith.truncf %70 : vector<16x16xf32> to vector<16x16xbf16>
    %cst_21 = arith.constant dense<0.000000e+00> : vector<16x8xf32>
    %72 = tpu.matmul %71, %58, %cst_21 {dimension_numbers = #tpu.dot_dimension_numbers<[1], [0], [0], [1], [0, 0, 1, 1], [], []>} : vector<16x16xbf16>, vector<16x8xbf16>, vector<16x8xf32> -> vector<16x8xf32>
    %73 = vector.extract_strided_slice %11 {offsets = [0, 24], sizes = [16, 8], strides = [1, 1]} : vector<16x96xf32> to vector<16x8xf32>
    %74 = arith.truncf %73 : vector<16x8xf32> to vector<16x8xbf16>
    %75 = vector.extract_strided_slice %11 {offsets = [0, 56], sizes = [16, 8], strides = [1, 1]} : vector<16x96xf32> to vector<16x8xf32>
    %76 = arith.truncf %75 : vector<16x8xf32> to vector<16x8xbf16>
    %77 = vector.extract_strided_slice %11 {offsets = [0, 88], sizes = [16, 8], strides = [1, 1]} : vector<16x96xf32> to vector<16x8xf32>
    %78 = arith.truncf %77 : vector<16x8xf32> to vector<16x8xbf16>
    %cst_22 = arith.constant dense<0.000000e+00> : vector<16x16xf32>
    %79 = tpu.matmul %74, %76, %cst_22 {dimension_numbers = #tpu.dot_dimension_numbers<[1], [1], [0], [0], [0, 0, 1, 0], [], []>} : vector<16x8xbf16>, vector<16x8xbf16>, vector<16x16xf32> -> vector<16x16xf32>
    %80 = arith.addf %79, %12 : vector<16x16xf32>
    %cst_23 = arith.constant dense<0xFF800000> : vector<16xf32>
    %81 = vector.multi_reduction <maximumf>, %80, %cst_23 [1] : vector<16x16xf32> to vector<16xf32>
    %82 = vector.shape_cast %81 : vector<16xf32> to vector<16x1xf32>
    %83 = vector.broadcast %82 : vector<16x1xf32> to vector<16x16xf32>
    %84 = arith.subf %80, %83 : vector<16x16xf32>
    %85 = math.exp %84 : vector<16x16xf32>
    %cst_24 = arith.constant dense<0.000000e+00> : vector<16xf32>
    %86 = vector.multi_reduction <add>, %85, %cst_24 [1] : vector<16x16xf32> to vector<16xf32>
    %87 = vector.shape_cast %86 : vector<16xf32> to vector<16x1xf32>
    %88 = tpu.reciprocal %87 {approx = true} : vector<16x1xf32> -> vector<16x1xf32>
    %89 = vector.broadcast %88 : vector<16x1xf32> to vector<16x16xf32>
    %90 = arith.mulf %85, %89 : vector<16x16xf32>
    %91 = arith.truncf %90 : vector<16x16xf32> to vector<16x16xbf16>
    %cst_25 = arith.constant dense<0.000000e+00> : vector<16x8xf32>
    %92 = tpu.matmul %91, %78, %cst_25 {dimension_numbers = #tpu.dot_dimension_numbers<[1], [0], [0], [1], [0, 0, 1, 1], [], []>} : vector<16x16xbf16>, vector<16x8xbf16>, vector<16x8xf32> -> vector<16x8xf32>
    %93 = tpu.concatenate %32, %52, %72, %92 in 1 : vector<16x8xf32>, vector<16x8xf32>, vector<16x8xf32>, vector<16x8xf32> -> vector<16x32xf32>
    %94 = arith.truncf %93 : vector<16x32xf32> to vector<16x32xbf16>
    %c0_26 = arith.constant 0 : index
    %c0_27 = arith.constant 0 : index
    %c0_28 = arith.constant 0 : index
    %95 = vector.load %arg12[%c0_26, %c0_27, %c0_28] : memref<1x32x32xbf16, #tpu.memory_space<vmem>>, vector<1x32x32xbf16>
    %96 = vector.shape_cast %95 : vector<1x32x32xbf16> to vector<32x32xbf16>
    %cst_29 = arith.constant dense<0.000000e+00> : vector<16x32xf32>
    %97 = tpu.matmul %94, %96, %cst_29 {dimension_numbers = #tpu.dot_dimension_numbers<[1], [0], [0], [1], [0, 0, 1, 1], [], []>} : vector<16x32xbf16>, vector<32x32xbf16>, vector<16x32xf32> -> vector<16x32xf32>
    %c0_30 = arith.constant 0 : index
    %c0_31 = arith.constant 0 : index
    %c0_32 = arith.constant 0 : index
    %98 = vector.load %arg13[%c0_30, %c0_31, %c0_32] : memref<1x1x32xf32, #tpu.memory_space<vmem>>, vector<1x1x32xf32>
    %99 = vector.shape_cast %98 : vector<1x1x32xf32> to vector<1x32xf32>
    %100 = vector.broadcast %99 : vector<1x32xf32> to vector<16x32xf32>
    %101 = arith.addf %97, %100 : vector<16x32xf32>
    %102 = arith.addf %3, %101 : vector<16x32xf32>
    %c0_33 = arith.constant 0 : index
    %c0_34 = arith.constant 0 : index
    %c0_35 = arith.constant 0 : index
    %103 = vector.load %arg14[%c0_33, %c0_34, %c0_35] : memref<1x1x32xf32, #tpu.memory_space<vmem>>, vector<1x1x32xf32>
    %104 = vector.shape_cast %103 : vector<1x1x32xf32> to vector<1x32xf32>
    %c0_36 = arith.constant 0 : index
    %c0_37 = arith.constant 0 : index
    %c0_38 = arith.constant 0 : index
    %105 = vector.load %arg15[%c0_36, %c0_37, %c0_38] : memref<1x1x32xf32, #tpu.memory_space<vmem>>, vector<1x1x32xf32>
    %106 = vector.shape_cast %105 : vector<1x1x32xf32> to vector<1x32xf32>
    %cst_39 = arith.constant dense<0.000000e+00> : vector<16xf32>
    %107 = vector.multi_reduction <add>, %102, %cst_39 [1] : vector<16x32xf32> to vector<16xf32>
    %108 = vector.shape_cast %107 : vector<16xf32> to vector<16x1xf32>
    %cst_40 = arith.constant 3.200000e+01 : f32
    %109 = vector.broadcast %cst_40 : f32 to vector<16x1xf32>
    %110 = arith.divf %108, %109 : vector<16x1xf32>
    %111 = vector.broadcast %110 : vector<16x1xf32> to vector<16x32xf32>
    %112 = arith.subf %102, %111 : vector<16x32xf32>
    %113 = arith.mulf %112, %112 : vector<16x32xf32>
    %cst_41 = arith.constant dense<0.000000e+00> : vector<16xf32>
    %114 = vector.multi_reduction <add>, %113, %cst_41 [1] : vector<16x32xf32> to vector<16xf32>
    %115 = vector.shape_cast %114 : vector<16xf32> to vector<16x1xf32>
    %cst_42 = arith.constant 3.200000e+01 : f32
    %116 = vector.broadcast %cst_42 : f32 to vector<16x1xf32>
    %117 = arith.divf %115, %116 : vector<16x1xf32>
    %cst_43 = arith.constant 9.99999974E-6 : f32
    %118 = vector.broadcast %cst_43 : f32 to vector<16x1xf32>
    %119 = arith.addf %117, %118 : vector<16x1xf32>
    %120 = math.rsqrt %119 : vector<16x1xf32>
    %121 = vector.broadcast %120 : vector<16x1xf32> to vector<16x32xf32>
    %122 = arith.mulf %112, %121 : vector<16x32xf32>
    %123 = vector.broadcast %104 : vector<1x32xf32> to vector<16x32xf32>
    %124 = arith.mulf %122, %123 : vector<16x32xf32>
    %125 = vector.broadcast %106 : vector<1x32xf32> to vector<16x32xf32>
    %126 = arith.addf %124, %125 : vector<16x32xf32>
    %127 = arith.truncf %126 : vector<16x32xf32> to vector<16x32xbf16>
    %c0_44 = arith.constant 0 : index
    %c0_45 = arith.constant 0 : index
    %c0_46 = arith.constant 0 : index
    %128 = vector.load %arg16[%c0_44, %c0_45, %c0_46] : memref<1x32x2048xbf16, #tpu.memory_space<vmem>>, vector<1x32x2048xbf16>
    %129 = vector.shape_cast %128 : vector<1x32x2048xbf16> to vector<32x2048xbf16>
    %cst_47 = arith.constant dense<0.000000e+00> : vector<16x2048xf32>
    %130 = tpu.matmul %127, %129, %cst_47 {dimension_numbers = #tpu.dot_dimension_numbers<[1], [0], [0], [1], [0, 0, 1, 1], [], []>} : vector<16x32xbf16>, vector<32x2048xbf16>, vector<16x2048xf32> -> vector<16x2048xf32>
    %c0_48 = arith.constant 0 : index
    %c0_49 = arith.constant 0 : index
    %c0_50 = arith.constant 0 : index
    %131 = vector.load %arg17[%c0_48, %c0_49, %c0_50] : memref<1x1x2048xf32, #tpu.memory_space<vmem>>, vector<1x1x2048xf32>
    %132 = vector.shape_cast %131 : vector<1x1x2048xf32> to vector<1x2048xf32>
    %133 = vector.broadcast %132 : vector<1x2048xf32> to vector<16x2048xf32>
    %134 = arith.addf %130, %133 : vector<16x2048xf32>
    %cst_51 = arith.constant 0.000000e+00 : f32
    %135 = vector.broadcast %cst_51 : f32 to vector<16x2048xf32>
    %136 = arith.maximumf %134, %135 : vector<16x2048xf32>
    %137 = arith.truncf %136 : vector<16x2048xf32> to vector<16x2048xbf16>
    %c0_52 = arith.constant 0 : index
    %c0_53 = arith.constant 0 : index
    %c0_54 = arith.constant 0 : index
    %138 = vector.load %arg18[%c0_52, %c0_53, %c0_54] : memref<1x2048x32xbf16, #tpu.memory_space<vmem>>, vector<1x2048x32xbf16>
    %139 = vector.shape_cast %138 : vector<1x2048x32xbf16> to vector<2048x32xbf16>
    %cst_55 = arith.constant dense<0.000000e+00> : vector<16x32xf32>
    %140 = tpu.matmul %137, %139, %cst_55 {dimension_numbers = #tpu.dot_dimension_numbers<[1], [0], [0], [1], [0, 0, 1, 1], [], []>} : vector<16x2048xbf16>, vector<2048x32xbf16>, vector<16x32xf32> -> vector<16x32xf32>
    %c0_56 = arith.constant 0 : index
    %c0_57 = arith.constant 0 : index
    %c0_58 = arith.constant 0 : index
    %141 = vector.load %arg19[%c0_56, %c0_57, %c0_58] : memref<1x1x32xf32, #tpu.memory_space<vmem>>, vector<1x1x32xf32>
    %142 = vector.shape_cast %141 : vector<1x1x32xf32> to vector<1x32xf32>
    %143 = vector.broadcast %142 : vector<1x32xf32> to vector<16x32xf32>
    %144 = arith.addf %140, %143 : vector<16x32xf32>
    %145 = arith.addf %126, %144 : vector<16x32xf32>
    %c0_59 = arith.constant 0 : index
    %c0_60 = arith.constant 0 : index
    %c0_61 = arith.constant 0 : index
    %146 = vector.load %arg20[%c0_59, %c0_60, %c0_61] : memref<1x1x32xf32, #tpu.memory_space<vmem>>, vector<1x1x32xf32>
    %147 = vector.shape_cast %146 : vector<1x1x32xf32> to vector<1x32xf32>
    %c0_62 = arith.constant 0 : index
    %c0_63 = arith.constant 0 : index
    %c0_64 = arith.constant 0 : index
    %148 = vector.load %arg21[%c0_62, %c0_63, %c0_64] : memref<1x1x32xf32, #tpu.memory_space<vmem>>, vector<1x1x32xf32>
    %149 = vector.shape_cast %148 : vector<1x1x32xf32> to vector<1x32xf32>
    %cst_65 = arith.constant dense<0.000000e+00> : vector<16xf32>
    %150 = vector.multi_reduction <add>, %145, %cst_65 [1] : vector<16x32xf32> to vector<16xf32>
    %151 = vector.shape_cast %150 : vector<16xf32> to vector<16x1xf32>
    %cst_66 = arith.constant 3.200000e+01 : f32
    %152 = vector.broadcast %cst_66 : f32 to vector<16x1xf32>
    %153 = arith.divf %151, %152 : vector<16x1xf32>
    %154 = vector.broadcast %153 : vector<16x1xf32> to vector<16x32xf32>
    %155 = arith.subf %145, %154 : vector<16x32xf32>
    %156 = arith.mulf %155, %155 : vector<16x32xf32>
    %cst_67 = arith.constant dense<0.000000e+00> : vector<16xf32>
    %157 = vector.multi_reduction <add>, %156, %cst_67 [1] : vector<16x32xf32> to vector<16xf32>
    %158 = vector.shape_cast %157 : vector<16xf32> to vector<16x1xf32>
    %cst_68 = arith.constant 3.200000e+01 : f32
    %159 = vector.broadcast %cst_68 : f32 to vector<16x1xf32>
    %160 = arith.divf %158, %159 : vector<16x1xf32>
    %cst_69 = arith.constant 9.99999974E-6 : f32
    %161 = vector.broadcast %cst_69 : f32 to vector<16x1xf32>
    %162 = arith.addf %160, %161 : vector<16x1xf32>
    %163 = math.rsqrt %162 : vector<16x1xf32>
    %164 = vector.broadcast %163 : vector<16x1xf32> to vector<16x32xf32>
    %165 = arith.mulf %155, %164 : vector<16x32xf32>
    %166 = vector.broadcast %147 : vector<1x32xf32> to vector<16x32xf32>
    %167 = arith.mulf %165, %166 : vector<16x32xf32>
    %168 = vector.broadcast %149 : vector<1x32xf32> to vector<16x32xf32>
    %169 = arith.addf %167, %168 : vector<16x32xf32>
    %c0_70 = arith.constant 0 : index
    %c0_71 = arith.constant 0 : index
    %170 = vector.load %arg28[%c0_70, %c0_71] : memref<16x32xf32, #tpu.memory_space<vmem>>, vector<16x32xf32>
    tpu.vector_store %arg28[%c0_70, %c0_71], %169 {strides = array<i32>} : memref<16x32xf32, #tpu.memory_space<vmem>>, vector<16x32xf32>,
    %c1_i32 = arith.constant 1 : i32
    %171 = arith.cmpi eq, %arg0, %c1_i32 : i32
    %172 = arith.extui %171 : i1 to i32
    %c0_i32_72 = arith.constant 0 : i32
    %173 = arith.cmpi ne, %172, %c0_i32_72 : i32
    scf.if %173 {
      %174 = vector.shape_cast %169 : vector<16x32xf32> to vector<2x8x32xf32>
      %cst_73 = arith.constant dense<0.000000e+00> : vector<2x32xf32>
      %175 = vector.multi_reduction <add>, %174, %cst_73 [1] : vector<2x8x32xf32> to vector<2x32xf32>
      %cst_74 = arith.constant 8.000000e+00 : f32
      %176 = vector.broadcast %cst_74 : f32 to vector<2x32xf32>
      %177 = arith.divf %175, %176 : vector<2x32xf32>
      %c0_75 = arith.constant 0 : index
      %c0_76 = arith.constant 0 : index
      %178 = vector.load %arg3[%c0_75, %c0_76] : memref<2x32xf32, #tpu.memory_space<vmem>>, vector<2x32xf32>
      %179 = tpu.concatenate %177, %178 in 1 : vector<2x32xf32>, vector<2x32xf32> -> vector<2x64xf32>
      %c0_77 = arith.constant 0 : index
      %c0_78 = arith.constant 0 : index
      %180 = vector.load %arg4[%c0_77, %c0_78] : memref<2x24xf32, #tpu.memory_space<vmem>>, vector<2x24xf32>
      %181 = arith.truncf %180 : vector<2x24xf32> to vector<2x24xbf16>
      %c0_79 = arith.constant 0 : index
      %c0_80 = arith.constant 0 : index
      %182 = vector.load %arg22[%c0_79, %c0_80] : memref<24x64xbf16, #tpu.memory_space<vmem>>, vector<24x64xbf16>
      %cst_81 = arith.constant dense<0.000000e+00> : vector<2x64xf32>
      %183 = tpu.matmul %181, %182, %cst_81 {dimension_numbers = #tpu.dot_dimension_numbers<[1], [0], [0], [1], [0, 0, 1, 1], [], []>} : vector<2x24xbf16>, vector<24x64xbf16>, vector<2x64xf32> -> vector<2x64xf32>
      %c0_82 = arith.constant 0 : index
      %c0_83 = arith.constant 0 : index
      %184 = vector.load %arg23[%c0_82, %c0_83] : memref<1x64xf32, #tpu.memory_space<vmem>>, vector<1x64xf32>
      %185 = vector.broadcast %184 : vector<1x64xf32> to vector<2x64xf32>
      %186 = arith.addf %183, %185 : vector<2x64xf32>
      %187 = arith.negf %186 : vector<2x64xf32>
      %188 = math.exp %187 : vector<2x64xf32>
      %cst_84 = arith.constant 1.000000e+00 : f32
      %189 = vector.broadcast %cst_84 : f32 to vector<2x64xf32>
      %190 = arith.addf %189, %188 : vector<2x64xf32>
      %191 = arith.divf %189, %190 : vector<2x64xf32>
      %192 = arith.mulf %179, %191 : vector<2x64xf32>
      %cst_85 = arith.constant 0.000000e+00 : f32
      %193 = vector.broadcast %cst_85 : f32 to vector<2x64xf32>
      %194 = arith.maximumf %192, %193 : vector<2x64xf32>
      %195 = arith.truncf %194 : vector<2x64xf32> to vector<2x64xbf16>
      %c0_86 = arith.constant 0 : index
      %c0_87 = arith.constant 0 : index
      %196 = vector.load %arg24[%c0_86, %c0_87] : memref<64x128xbf16, #tpu.memory_space<vmem>>, vector<64x128xbf16>
      %cst_88 = arith.constant dense<0.000000e+00> : vector<2x128xf32>
      %197 = tpu.matmul %195, %196, %cst_88 {dimension_numbers = #tpu.dot_dimension_numbers<[1], [0], [0], [1], [0, 0, 1, 1], [], []>} : vector<2x64xbf16>, vector<64x128xbf16>, vector<2x128xf32> -> vector<2x128xf32>
      %c0_89 = arith.constant 0 : index
      %c0_90 = arith.constant 0 : index
      %198 = vector.load %arg25[%c0_89, %c0_90] : memref<1x128xf32, #tpu.memory_space<vmem>>, vector<1x128xf32>
      %199 = vector.broadcast %198 : vector<1x128xf32> to vector<2x128xf32>
      %200 = arith.addf %197, %199 : vector<2x128xf32>
      %c0_91 = arith.constant 0 : index
      %c0_92 = arith.constant 0 : index
      %201 = vector.load %arg26[%c0_91, %c0_92] : memref<2x128xf32, #tpu.memory_space<vmem>>, vector<2x128xf32>
      tpu.vector_store %arg26[%c0_91, %c0_92], %200 {strides = array<i32>} : memref<2x128xf32, #tpu.memory_space<vmem>>, vector<2x128xf32>,
      %202 = tpu.iota {dimensions = array<i32: 1>} : vector<2x128xi32>
      %c10_i32 = arith.constant 10 : i32
      %203 = vector.broadcast %c10_i32 : i32 to vector<2x128xi32>
      %204 = arith.cmpi slt, %202, %203 : vector<2x128xi32>
      %cst_93 = arith.constant -1.000000e+30 : f32
      %205 = vector.broadcast %cst_93 : f32 to vector<2x128xf32>
      %206 = arith.select %204, %200, %205 : vector<2x128xi1>, vector<2x128xf32>
      %cst_94 = arith.constant dense<0xFF800000> : vector<2xf32>
      %207 = vector.multi_reduction <maximumf>, %206, %cst_94 [1] : vector<2x128xf32> to vector<2xf32>
      %208 = vector.shape_cast %207 : vector<2xf32> to vector<2x1xf32>
      %209 = vector.broadcast %208 : vector<2x1xf32> to vector<2x128xf32>
      %210 = arith.subf %206, %209 : vector<2x128xf32>
      %211 = math.exp %210 : vector<2x128xf32>
      %cst_95 = arith.constant dense<0.000000e+00> : vector<2xf32>
      %212 = vector.multi_reduction <add>, %211, %cst_95 [1] : vector<2x128xf32> to vector<2xf32>
      %213 = vector.shape_cast %212 : vector<2xf32> to vector<2x1xf32>
      %214 = math.log %213 : vector<2x1xf32>
      %215 = arith.addf %214, %208 : vector<2x1xf32>
      %c0_96 = arith.constant 0 : index
      %c0_97 = arith.constant 0 : index
      %216 = vector.load %arg5[%c0_96, %c0_97] : memref<2x1xi32, #tpu.memory_space<vmem>>, vector<2x1xi32>
      %217 = vector.broadcast %216 : vector<2x1xi32> to vector<2x128xi32>
      %218 = arith.cmpi eq, %202, %217 : vector<2x128xi32>
      %cst_98 = arith.constant 0.000000e+00 : f32
      %219 = vector.broadcast %cst_98 : f32 to vector<2x128xf32>
      %220 = arith.select %218, %200, %219 : vector<2x128xi1>, vector<2x128xf32>
      %cst_99 = arith.constant dense<0.000000e+00> : vector<2xf32>
      %221 = vector.multi_reduction <add>, %220, %cst_99 [1] : vector<2x128xf32> to vector<2xf32>
      %222 = vector.shape_cast %221 : vector<2xf32> to vector<2x1xf32>
      %223 = arith.subf %215, %222 : vector<2x1xf32>
      %224 = vector.shape_cast %223 : vector<2x1xf32> to vector<1x2x1xf32>
      %cst_100 = arith.constant dense<0.000000e+00> : vector<1xf32>
      %225 = vector.multi_reduction <add>, %224, %cst_100 [1, 2] : vector<1x2x1xf32> to vector<1xf32>
      %226 = vector.shape_cast %225 : vector<1xf32> to vector<1x1x1xf32>
      %227 = vector.extract %226[0, 0, 0] : f32 from vector<1x1x1xf32>
      %228 = vector.broadcast %227 : f32 to vector<1x1xf32>
      %cst_101 = arith.constant 2.000000e+00 : f32
      %229 = vector.broadcast %cst_101 : f32 to vector<1x1xf32>
      %230 = arith.divf %228, %229 : vector<1x1xf32>
      %231 = vector.shape_cast %230 : vector<1x1xf32> to vector<1x1xf32>
      %232 = vector.broadcast %231 : vector<1x1xf32> to vector<1x128xf32>
      %c0_102 = arith.constant 0 : index
      %c0_103 = arith.constant 0 : index
      %233 = vector.load %arg27[%c0_102, %c0_103] : memref<1x128xf32, #tpu.memory_space<vmem>>, vector<1x128xf32>
      tpu.vector_store %arg27[%c0_102, %c0_103], %232 {strides = array<i32>} : memref<1x128xf32, #tpu.memory_space<vmem>>, vector<1x128xf32>,
    } else {
    }
    return
  }
  func.func @transform_0(%arg0: i32) -> (i32, i32) {
    %c0_i32 = arith.constant 0 : i32
    %c0_i32_0 = arith.constant 0 : i32
    %c0_i32_1 = arith.constant 0 : i32
    return %c0_i32, %c0_i32_0 : i32, i32
  }
  func.func @transform_1(%arg0: i32) -> (i32, i32) {
    %c0_i32 = arith.constant 0 : i32
    %c0_i32_0 = arith.constant 0 : i32
    %c0_i32_1 = arith.constant 0 : i32
    return %c0_i32, %c0_i32_0 : i32, i32
  }
  func.func @transform_2(%arg0: i32) -> (i32, i32) {
    %c0_i32 = arith.constant 0 : i32
    %c0_i32_0 = arith.constant 0 : i32
    %c0_i32_1 = arith.constant 0 : i32
    return %c0_i32, %c0_i32_0 : i32, i32
  }
  func.func @transform_3(%arg0: i32) -> (i32, i32) {
    %c0_i32 = arith.constant 0 : i32
    %c0_i32_0 = arith.constant 0 : i32
    %c0_i32_1 = arith.constant 0 : i32
    return %c0_i32, %c0_i32_0 : i32, i32
  }
  func.func @transform_4(%arg0: i32) -> (i32, i32) {
    %c0_i32 = arith.constant 0 : i32
    %c0_i32_0 = arith.constant 0 : i32
    %c0_i32_1 = arith.constant 0 : i32
    return %c0_i32, %c0_i32_0 : i32, i32
  }
  func.func @transform_5(%arg0: i32) -> (i32, i32) {
    %c0_i32 = arith.constant 0 : i32
    %c0_i32_0 = arith.constant 0 : i32
    %c0_i32_1 = arith.constant 0 : i32
    return %c0_i32, %c0_i32_0 : i32, i32
  }
  func.func @transform_6(%arg0: i32) -> (i32, i32) {
    %c0_i32 = arith.constant 0 : i32
    %c0_i32_0 = arith.constant 0 : i32
    %c0_i32_1 = arith.constant 0 : i32
    return %c0_i32, %c0_i32_0 : i32, i32
  }
  func.func @transform_7(%arg0: i32) -> (i32, i32) {
    %c0_i32 = arith.constant 0 : i32
    %c0_i32_0 = arith.constant 0 : i32
    %c0_i32_1 = arith.constant 0 : i32
    return %c0_i32, %c0_i32_0 : i32, i32
  }
  func.func @transform_8(%arg0: i32) -> (i32, i32) {
    %c0_i32 = arith.constant 0 : i32
    %c0_i32_0 = arith.constant 0 : i32
    %c0_i32_1 = arith.constant 0 : i32
    return %c0_i32, %c0_i32_0 : i32, i32
  }
  func.func @transform_9(%arg0: i32) -> (i32, i32, i32) {
    %c0_i32 = arith.constant 0 : i32
    %c0_i32_0 = arith.constant 0 : i32
    %c0_i32_1 = arith.constant 0 : i32
    return %arg0, %c0_i32, %c0_i32_0 : i32, i32, i32
  }
  func.func @transform_10(%arg0: i32) -> (i32, i32, i32) {
    %c0_i32 = arith.constant 0 : i32
    %c0_i32_0 = arith.constant 0 : i32
    %c0_i32_1 = arith.constant 0 : i32
    return %arg0, %c0_i32, %c0_i32_0 : i32, i32, i32
  }
  func.func @transform_11(%arg0: i32) -> (i32, i32, i32) {
    %c0_i32 = arith.constant 0 : i32
    %c0_i32_0 = arith.constant 0 : i32
    %c0_i32_1 = arith.constant 0 : i32
    return %arg0, %c0_i32, %c0_i32_0 : i32, i32, i32
  }
  func.func @transform_12(%arg0: i32) -> (i32, i32, i32) {
    %c0_i32 = arith.constant 0 : i32
    %c0_i32_0 = arith.constant 0 : i32
    %c0_i32_1 = arith.constant 0 : i32
    return %arg0, %c0_i32, %c0_i32_0 : i32, i32, i32
  }
  func.func @transform_13(%arg0: i32) -> (i32, i32, i32) {
    %c0_i32 = arith.constant 0 : i32
    %c0_i32_0 = arith.constant 0 : i32
    %c0_i32_1 = arith.constant 0 : i32
    return %arg0, %c0_i32, %c0_i32_0 : i32, i32, i32
  }
  func.func @transform_14(%arg0: i32) -> (i32, i32, i32) {
    %c0_i32 = arith.constant 0 : i32
    %c0_i32_0 = arith.constant 0 : i32
    %c0_i32_1 = arith.constant 0 : i32
    return %arg0, %c0_i32, %c0_i32_0 : i32, i32, i32
  }
  func.func @transform_15(%arg0: i32) -> (i32, i32, i32) {
    %c0_i32 = arith.constant 0 : i32
    %c0_i32_0 = arith.constant 0 : i32
    %c0_i32_1 = arith.constant 0 : i32
    return %arg0, %c0_i32, %c0_i32_0 : i32, i32, i32
  }
  func.func @transform_16(%arg0: i32) -> (i32, i32, i32) {
    %c0_i32 = arith.constant 0 : i32
    %c0_i32_0 = arith.constant 0 : i32
    %c0_i32_1 = arith.constant 0 : i32
    return %arg0, %c0_i32, %c0_i32_0 : i32, i32, i32
  }
  func.func @transform_17(%arg0: i32) -> (i32, i32, i32) {
    %c0_i32 = arith.constant 0 : i32
    %c0_i32_0 = arith.constant 0 : i32
    %c0_i32_1 = arith.constant 0 : i32
    return %arg0, %c0_i32, %c0_i32_0 : i32, i32, i32
  }
  func.func @transform_18(%arg0: i32) -> (i32, i32, i32) {
    %c0_i32 = arith.constant 0 : i32
    %c0_i32_0 = arith.constant 0 : i32
    %c0_i32_1 = arith.constant 0 : i32
    return %arg0, %c0_i32, %c0_i32_0 : i32, i32, i32
  }
  func.func @transform_19(%arg0: i32) -> (i32, i32, i32) {
    %c0_i32 = arith.constant 0 : i32
    %c0_i32_0 = arith.constant 0 : i32
    %c0_i32_1 = arith.constant 0 : i32
    return %arg0, %c0_i32, %c0_i32_0 : i32, i32, i32
  }
  func.func @transform_20(%arg0: i32) -> (i32, i32, i32) {
    %c0_i32 = arith.constant 0 : i32
    %c0_i32_0 = arith.constant 0 : i32
    %c0_i32_1 = arith.constant 0 : i32
    return %arg0, %c0_i32, %c0_i32_0 : i32, i32, i32
  }
  func.func @transform_21(%arg0: i32) -> (i32, i32) {
    %c0_i32 = arith.constant 0 : i32
    %c0_i32_0 = arith.constant 0 : i32
    %c0_i32_1 = arith.constant 0 : i32
    return %c0_i32, %c0_i32_0 : i32, i32
  }
  func.func @transform_22(%arg0: i32) -> (i32, i32) {
    %c0_i32 = arith.constant 0 : i32
    %c0_i32_0 = arith.constant 0 : i32
    %c0_i32_1 = arith.constant 0 : i32
    return %c0_i32, %c0_i32_0 : i32, i32
  }
  func.func @transform_23(%arg0: i32) -> (i32, i32) {
    %c0_i32 = arith.constant 0 : i32
    %c0_i32_0 = arith.constant 0 : i32
    %c0_i32_1 = arith.constant 0 : i32
    return %c0_i32, %c0_i32_0 : i32, i32
  }
  func.func @transform_24(%arg0: i32) -> (i32, i32) {
    %c0_i32 = arith.constant 0 : i32
    %c0_i32_0 = arith.constant 0 : i32
    %c0_i32_1 = arith.constant 0 : i32
    return %c0_i32, %c0_i32_0 : i32, i32
  }
  func.func @transform_25(%arg0: i32) -> (i32, i32) {
    %c0_i32 = arith.constant 0 : i32
    %c0_i32_0 = arith.constant 0 : i32
    %c0_i32_1 = arith.constant 0 : i32
    return %c0_i32, %c0_i32_0 : i32, i32
  }
  func.func @transform_26(%arg0: i32) -> (i32, i32) {
    %c0_i32 = arith.constant 0 : i32
    %c0_i32_0 = arith.constant 0 : i32
    %c0_i32_1 = arith.constant 0 : i32
    return %c0_i32, %c0_i32_0 : i32, i32
  }
}

</mosaic_0001>

<llo_original>
// kernel: tpu_custom_call.1
$region0: #{tpu_custom_call.1}
  #allocation0 [shape = 'u32[]', space=smem, size = 0x4, offset = 0x4, fixed_abs, tag = 'smem constant byte address 0x4 - core index']
  #allocation1 [shape = 'u32[72,128]{1,0:T(1,128)}', space=vmem, size = 0x9000, scoped, tag = 'internal scratch']
  #allocation2 [shape = 'f32[16,32]{1,0:T(8,128)}', space=vmem, size = 0x2000, scoped, tag = 'scratch operand']
  %s0 = inlined_call_operand.vmem [shape: f32[16,1], index: 0, kind: input, shape index: {}]
  %s1 = inlined_call_operand.vmem [shape: f32[16,1], index: 1, kind: input, shape index: {}]
  %s2 = inlined_call_operand.vmem [shape: f32[2,32], index: 2, kind: input, shape index: {}]
  %s3 = inlined_call_operand.vmem [shape: f32[2,24], index: 3, kind: input, shape index: {}]
  %s4 = inlined_call_operand.vmem [shape: s32[2,1], index: 4, kind: input, shape index: {}]
  %s5 = inlined_call_operand.vmem [shape: f32[16,16], index: 5, kind: input, shape index: {}]
  %s6 = inlined_call_operand.vmem [shape: f32[1,16], index: 6, kind: input, shape index: {}]
  %s7 = inlined_call_operand.vmem [shape: f32[1,16], index: 7, kind: input, shape index: {}]
  %s8 = inlined_call_operand.vmem [shape: f32[1,16], index: 8, kind: input, shape index: {}]
  %s9 = inlined_call_operand.vmem [shape: bf16[2,32,96], index: 9, kind: input, shape index: {}]
  %s10 = inlined_call_operand.vmem [shape: f32[2,1,96], index: 10, kind: input, shape index: {}]
  %s11 = inlined_call_operand.vmem [shape: bf16[2,32,32], index: 11, kind: input, shape index: {}]
  %s12 = inlined_call_operand.vmem [shape: f32[2,1,32], index: 12, kind: input, shape index: {}]
  %s13 = inlined_call_operand.vmem [shape: f32[2,1,32], index: 13, kind: input, shape index: {}]
  %s14 = inlined_call_operand.vmem [shape: f32[2,1,32], index: 14, kind: input, shape index: {}]
  %s15 = inlined_call_operand.vmem [shape: bf16[2,32,2048], index: 15, kind: input, shape index: {}]
  %s16 = inlined_call_operand.vmem [shape: f32[2,1,2048], index: 16, kind: input, shape index: {}]
  %s17 = inlined_call_operand.vmem [shape: bf16[2,2048,32], index: 17, kind: input, shape index: {}]
  %s18 = inlined_call_operand.vmem [shape: f32[2,1,32], index: 18, kind: input, shape index: {}]
  %s19 = inlined_call_operand.vmem [shape: f32[2,1,32], index: 19, kind: input, shape index: {}]
  %s20 = inlined_call_operand.vmem [shape: f32[2,1,32], index: 20, kind: input, shape index: {}]
  %s21 = inlined_call_operand.vmem [shape: bf16[24,64], index: 21, kind: input, shape index: {}]
  %s22 = inlined_call_operand.vmem [shape: f32[1,64], index: 22, kind: input, shape index: {}]
  %s23 = inlined_call_operand.vmem [shape: bf16[64,128], index: 23, kind: input, shape index: {}]
  %s24 = inlined_call_operand.vmem [shape: f32[1,128], index: 24, kind: input, shape index: {}]
  %s25 = inlined_call_operand.hbm [shape: f32[2,128], index: 25, kind: output, shape index: {0}]
  %s26 = inlined_call_operand.hbm [shape: f32[1,128], index: 26, kind: output, shape index: {1}]
  %27 = xla_tuple %s25, %s26
  %s28 = sld [smem:[#allocation0]]
  $region149: #{tpu_custom_call.1} parent=0
    _
  %s30 = ssub.s32 1, %s28
  %s31 = scalar_select 0, %s30, %s28
  $region1: #{tpu_custom_call.1} parent=0
    #allocation3 [shape = 'u8[1024]{0}', space=vmem, size = 0x400, scoped, tag = 'output window, operand 0, single buffered']
    #allocation4 [shape = 's32[2]{0}', space=sflag, size = 0x8, scoped, tag = 'scoped memory for tpu_custom_call.1']
    #allocation5 [shape = 'u8[512]{0}', space=vmem, size = 0x400, scoped, tag = 'output window, operand 1, single buffered']
    #allocation6 [shape = 's32[1]{0}', space=sflag, size = 0x4, scoped, tag = 'scoped memory for tpu_custom_call.1']
    %32 = vsyncpa [#allocation4], 0
    %33 = vsyncpa [#allocation6], 0
    loop: start=0, step=1, limit=4
    $region2: #{tpu_custom_call.1} parent=1 // loop_pre_header
      _
    $region3: #{tpu_custom_call.1} parent=1 // loop_header
      %s35 = sphi 0, %s39
      %p36 = scmp.ge.s32.totalorder %s35, 4
      %s43 = sphi 0, %s43
      %s45 = sphi 0, %s43
      %s46 = sphi 0, %s45
      %s60 = sphi 0, %s46
      %s64 = sphi 0, %s64
      %s66 = sphi 0, %s64
      %s67 = sphi 0, %s66
      %s81 = sphi 0, %s67
      %s85 = sphi 0, %s85
      %s87 = sphi 0, %s85
      %s88 = sphi 0, %s87
      %s102 = sphi 0, %s88
      %s106 = sphi 0, %s106
      %s108 = sphi 0, %s106
      %s109 = sphi 0, %s108
      %s123 = sphi 0, %s109
      %s127 = sphi 0, %s127
      %s129 = sphi 0, %s127
      %s130 = sphi 0, %s129
      %s144 = sphi 0, %s130
      %s148 = sphi 0, %s148
      %s150 = sphi 0, %s148
      %s151 = sphi 0, %s150
      %s165 = sphi 0, %s151
      %s169 = sphi 0, %s169
      %s171 = sphi 0, %s169
      %s172 = sphi 0, %s171
      %s186 = sphi 0, %s172
      %s190 = sphi 0, %s190
      %s192 = sphi 0, %s190
      %s193 = sphi 0, %s192
      %s207 = sphi 0, %s193
      %s211 = sphi 0, %s211
      %s213 = sphi 0, %s211
      %s214 = sphi 0, %s213
      %s228 = sphi 0, %s214
      %s234 = sphi 0, %s236
      %s237 = sphi 0, %s234
      %s238 = sphi 0, %s237
      %s254 = sphi 0, %s238
      %s260 = sphi 0, %s262
      %s263 = sphi 0, %s260
      %s264 = sphi 0, %s263
      %s280 = sphi 0, %s264
      %s286 = sphi 0, %s288
      %s289 = sphi 0, %s286
      %s290 = sphi 0, %s289
      %s306 = sphi 0, %s290
      %s312 = sphi 0, %s314
      %s315 = sphi 0, %s312
      %s316 = sphi 0, %s315
      %s332 = sphi 0, %s316
      %s338 = sphi 0, %s340
      %s341 = sphi 0, %s338
      %s342 = sphi 0, %s341
      %s358 = sphi 0, %s342
      %s364 = sphi 0, %s366
      %s367 = sphi 0, %s364
      %s368 = sphi 0, %s367
      %s384 = sphi 0, %s368
      %s390 = sphi 0, %s392
      %s393 = sphi 0, %s390
      %s394 = sphi 0, %s393
      %s410 = sphi 0, %s394
      %s416 = sphi 0, %s418
      %s419 = sphi 0, %s416
      %s420 = sphi 0, %s419
      %s436 = sphi 0, %s420
      %s442 = sphi 0, %s444
      %s445 = sphi 0, %s442
      %s446 = sphi 0, %s445
      %s462 = sphi 0, %s446
      %s468 = sphi 0, %s470
      %s471 = sphi 0, %s468
      %s472 = sphi 0, %s471
      %s488 = sphi 0, %s472
      %s494 = sphi 0, %s496
      %s497 = sphi 0, %s494
      %s498 = sphi 0, %s497
      %s514 = sphi 0, %s498
      %s520 = sphi 0, %s522
      %s523 = sphi 0, %s520
      %s524 = sphi 0, %s523
      %s540 = sphi 0, %s524
      %s544 = sphi 0, %s544
      %s546 = sphi 0, %s544
      %s547 = sphi 0, %s546
      %s561 = sphi 0, %s547
      %s565 = sphi 0, %s565
      %s567 = sphi 0, %s565
      %s568 = sphi 0, %s567
      %s582 = sphi 0, %s568
      %s586 = sphi 0, %s586
      %s588 = sphi 0, %s586
      %s589 = sphi 0, %s588
      %s603 = sphi 0, %s589
      %s607 = sphi 0, %s607
      %s609 = sphi 0, %s607
      %s610 = sphi 0, %s609
      %s624 = sphi 0, %s610
      %s628 = sphi 0, %s628
      %s630 = sphi 0, %s628
      %s631 = sphi 0, %s630
      %s645 = sphi 0, %s631
      %s649 = sphi 0, %s649
      %s651 = sphi 0, %s649
      %s652 = sphi 0, %s651
      %s666 = sphi 0, %s652
    $region4: #{tpu_custom_call.1} parent=1 // loop_header_branch
      %38 = sbr.rel (%p36) target = $region8
    $region5: #{tpu_custom_call.1} parent=1 // loop_body
      %s40 = ssub.s32 %s35, 1
      %s41 = ssub.s32 %s35, 2
      %s42 = sadd.s32 %s35, 1
      %s44 = sadd.s32 %s43, 1
      %p47 = scmp.eq.s32.totalorder %s35, 1
      %p48 = scmp.ne.s32.totalorder %s43, %s45
      %p49 = scmp.eq.s32.totalorder %s35, 0
      %p50 = por %p48, %p49
      %p51 = scmp.ne.s32.totalorder %s43, %s45
      %p52 = scmp.eq.s32.totalorder %s40, 1
      %p53 = por %p51, %p52
      %p54 = scmp.ne.s32.totalorder %s45, %s46
      %p55 = scmp.eq.s32.totalorder %s40, 0
      %p56 = por %p54, %p55
      %p57 = scmp.ne.s32.totalorder %s45, %s46
      %p58 = scmp.eq.s32.totalorder %s41, 1
      %p59 = por %p57, %p58
      %p61 = scmp.ne.s32.totalorder %s46, %s60
      %p62 = scmp.eq.s32.totalorder %s41, 0
      %p63 = por %p61, %p62
      %s65 = sadd.s32 %s64, 1
      %p68 = scmp.eq.s32.totalorder %s35, 1
      %p69 = scmp.ne.s32.totalorder %s64, %s66
      %p70 = scmp.eq.s32.totalorder %s35, 0
      %p71 = por %p69, %p70
      %p72 = scmp.ne.s32.totalorder %s64, %s66
      %p73 = scmp.eq.s32.totalorder %s40, 1
      %p74 = por %p72, %p73
      %p75 = scmp.ne.s32.totalorder %s66, %s67
      %p76 = scmp.eq.s32.totalorder %s40, 0
      %p77 = por %p75, %p76
      %p78 = scmp.ne.s32.totalorder %s66, %s67
      %p79 = scmp.eq.s32.totalorder %s41, 1
      %p80 = por %p78, %p79
      %p82 = scmp.ne.s32.totalorder %s67, %s81
      %p83 = scmp.eq.s32.totalorder %s41, 0
      %p84 = por %p82, %p83
      %s86 = sadd.s32 %s85, 1
      %p89 = scmp.eq.s32.totalorder %s35, 1
      %p90 = scmp.ne.s32.totalorder %s85, %s87
      %p91 = scmp.eq.s32.totalorder %s35, 0
      %p92 = por %p90, %p91
      %p93 = scmp.ne.s32.totalorder %s85, %s87
      %p94 = scmp.eq.s32.totalorder %s40, 1
      %p95 = por %p93, %p94
      %p96 = scmp.ne.s32.totalorder %s87, %s88
      %p97 = scmp.eq.s32.totalorder %s40, 0
      %p98 = por %p96, %p97
      %p99 = scmp.ne.s32.totalorder %s87, %s88
      %p100 = scmp.eq.s32.totalorder %s41, 1
      %p101 = por %p99, %p100
      %p103 = scmp.ne.s32.totalorder %s88, %s102
      %p104 = scmp.eq.s32.totalorder %s41, 0
      %p105 = por %p103, %p104
      %s107 = sadd.s32 %s106, 1
      %p110 = scmp.eq.s32.totalorder %s35, 1
      %p111 = scmp.ne.s32.totalorder %s106, %s108
      %p112 = scmp.eq.s32.totalorder %s35, 0
      %p113 = por %p111, %p112
      %p114 = scmp.ne.s32.totalorder %s106, %s108
      %p115 = scmp.eq.s32.totalorder %s40, 1
      %p116 = por %p114, %p115
      %p117 = scmp.ne.s32.totalorder %s108, %s109
      %p118 = scmp.eq.s32.totalorder %s40, 0
      %p119 = por %p117, %p118
      %p120 = scmp.ne.s32.totalorder %s108, %s109
      %p121 = scmp.eq.s32.totalorder %s41, 1
      %p122 = por %p120, %p121
      %p124 = scmp.ne.s32.totalorder %s109, %s123
      %p125 = scmp.eq.s32.totalorder %s41, 0
      %p126 = por %p124, %p125
      %s128 = sadd.s32 %s127, 1
      %p131 = scmp.eq.s32.totalorder %s35, 1
      %p132 = scmp.ne.s32.totalorder %s127, %s129
      %p133 = scmp.eq.s32.totalorder %s35, 0
      %p134 = por %p132, %p133
      %p135 = scmp.ne.s32.totalorder %s127, %s129
      %p136 = scmp.eq.s32.totalorder %s40, 1
      %p137 = por %p135, %p136
      %p138 = scmp.ne.s32.totalorder %s129, %s130
      %p139 = scmp.eq.s32.totalorder %s40, 0
      %p140 = por %p138, %p139
      %p141 = scmp.ne.s32.totalorder %s129, %s130
      %p142 = scmp.eq.s32.totalorder %s41, 1
      %p143 = por %p141, %p142
      %p145 = scmp.ne.s32.totalorder %s130, %s144
      %p146 = scmp.eq.s32.totalorder %s41, 0
      %p147 = por %p145, %p146
      %s149 = sadd.s32 %s148, 1
      %p152 = scmp.eq.s32.totalorder %s35, 1
      %p153 = scmp.ne.s32.totalorder %s148, %s150
      %p154 = scmp.eq.s32.totalorder %s35, 0
      %p155 = por %p153, %p154
      %p156 = scmp.ne.s32.totalorder %s148, %s150
      %p157 = scmp.eq.s32.totalorder %s40, 1
      %p158 = por %p156, %p157
      %p159 = scmp.ne.s32.totalorder %s150, %s151
      %p160 = scmp.eq.s32.totalorder %s40, 0
      %p161 = por %p159, %p160
      %p162 = scmp.ne.s32.totalorder %s150, %s151
      %p163 = scmp.eq.s32.totalorder %s41, 1
      %p164 = por %p162, %p163
      %p166 = scmp.ne.s32.totalorder %s151, %s165
      %p167 = scmp.eq.s32.totalorder %s41, 0
      %p168 = por %p166, %p167
      %s170 = sadd.s32 %s169, 1
      %p173 = scmp.eq.s32.totalorder %s35, 1
      %p174 = scmp.ne.s32.totalorder %s169, %s171
      %p175 = scmp.eq.s32.totalorder %s35, 0
      %p176 = por %p174, %p175
      %p177 = scmp.ne.s32.totalorder %s169, %s171
      %p178 = scmp.eq.s32.totalorder %s40, 1
      %p179 = por %p177, %p178
      %p180 = scmp.ne.s32.totalorder %s171, %s172
      %p181 = scmp.eq.s32.totalorder %s40, 0
      %p182 = por %p180, %p181
      %p183 = scmp.ne.s32.totalorder %s171, %s172
      %p184 = scmp.eq.s32.totalorder %s41, 1
      %p185 = por %p183, %p184
      %p187 = scmp.ne.s32.totalorder %s172, %s186
      %p188 = scmp.eq.s32.totalorder %s41, 0
      %p189 = por %p187, %p188
      %s191 = sadd.s32 %s190, 1
      %p194 = scmp.eq.s32.totalorder %s35, 1
      %p195 = scmp.ne.s32.totalorder %s190, %s192
      %p196 = scmp.eq.s32.totalorder %s35, 0
      %p197 = por %p195, %p196
      %p198 = scmp.ne.s32.totalorder %s190, %s192
      %p199 = scmp.eq.s32.totalorder %s40, 1
      %p200 = por %p198, %p199
      %p201 = scmp.ne.s32.totalorder %s192, %s193
      %p202 = scmp.eq.s32.totalorder %s40, 0
      %p203 = por %p201, %p202
      %p204 = scmp.ne.s32.totalorder %s192, %s193
      %p205 = scmp.eq.s32.totalorder %s41, 1
      %p206 = por %p204, %p205
      %p208 = scmp.ne.s32.totalorder %s193, %s207
      %p209 = scmp.eq.s32.totalorder %s41, 0
      %p210 = por %p208, %p209
      %s212 = sadd.s32 %s211, 1
      %p215 = scmp.eq.s32.totalorder %s35, 1
      %p216 = scmp.ne.s32.totalorder %s211, %s213
      %p217 = scmp.eq.s32.totalorder %s35, 0
      %p218 = por %p216, %p217
      %p219 = scmp.ne.s32.totalorder %s211, %s213
      %p220 = scmp.eq.s32.totalorder %s40, 1
      %p221 = por %p219, %p220
      %p222 = scmp.ne.s32.totalorder %s213, %s214
      %p223 = scmp.eq.s32.totalorder %s40, 0
      %p224 = por %p222, %p223
      %p225 = scmp.ne.s32.totalorder %s213, %s214
      %p226 = scmp.eq.s32.totalorder %s41, 1
      %p227 = por %p225, %p226
      %p229 = scmp.ne.s32.totalorder %s214, %s228
      %p230 = scmp.eq.s32.totalorder %s41, 0
      %p231 = por %p229, %p230
      %s232 = ssub.s32 %s35, %s42
      %p233 = scmp.eq.s32.totalorder %s232, 0
      %s235 = sadd.s32 %s234, 1
      %s236 = scalar_select %p233, %s234, %s235
      %p239 = pneg %p233
      %p240 = scmp.eq.s32.totalorder %s35, 1
      %p241 = por %p239, %p240
      %p242 = scmp.ne.s32.totalorder %s234, %s237
      %p243 = scmp.eq.s32.totalorder %s35, 0
      %p244 = por %p242, %p243
      %p245 = scmp.ne.s32.totalorder %s234, %s237
      %p246 = scmp.eq.s32.totalorder %s40, 1
      %p247 = por %p245, %p246
      %p248 = scmp.ne.s32.totalorder %s237, %s238
      %p249 = scmp.eq.s32.totalorder %s40, 0
      %p250 = por %p248, %p249
      %p251 = scmp.ne.s32.totalorder %s237, %s238
      %p252 = scmp.eq.s32.totalorder %s41, 1
      %p253 = por %p251, %p252
      %p255 = scmp.ne.s32.totalorder %s238, %s254
      %p256 = scmp.eq.s32.totalorder %s41, 0
      %p257 = por %p255, %p256
      %s258 = ssub.s32 %s35, %s42
      %p259 = scmp.eq.s32.totalorder %s258, 0
      %s261 = sadd.s32 %s260, 1
      %s262 = scalar_select %p259, %s260, %s261
      %p265 = pneg %p259
      %p266 = scmp.eq.s32.totalorder %s35, 1
      %p267 = por %p265, %p266
      %p268 = scmp.ne.s32.totalorder %s260, %s263
      %p269 = scmp.eq.s32.totalorder %s35, 0
      %p270 = por %p268, %p269
      %p271 = scmp.ne.s32.totalorder %s260, %s263
      %p272 = scmp.eq.s32.totalorder %s40, 1
      %p273 = por %p271, %p272
      %p274 = scmp.ne.s32.totalorder %s263, %s264
      %p275 = scmp.eq.s32.totalorder %s40, 0
      %p276 = por %p274, %p275
      %p277 = scmp.ne.s32.totalorder %s263, %s264
      %p278 = scmp.eq.s32.totalorder %s41, 1
      %p279 = por %p277, %p278
      %p281 = scmp.ne.s32.totalorder %s264, %s280
      %p282 = scmp.eq.s32.totalorder %s41, 0
      %p283 = por %p281, %p282
      %s284 = ssub.s32 %s35, %s42
      %p285 = scmp.eq.s32.totalorder %s284, 0
      %s287 = sadd.s32 %s286, 1
      %s288 = scalar_select %p285, %s286, %s287
      %p291 = pneg %p285
      %p292 = scmp.eq.s32.totalorder %s35, 1
      %p293 = por %p291, %p292
      %p294 = scmp.ne.s32.totalorder %s286, %s289
      %p295 = scmp.eq.s32.totalorder %s35, 0
      %p296 = por %p294, %p295
      %p297 = scmp.ne.s32.totalorder %s286, %s289
      %p298 = scmp.eq.s32.totalorder %s40, 1
      %p299 = por %p297, %p298
      %p300 = scmp.ne.s32.totalorder %s289, %s290
      %p301 = scmp.eq.s32.totalorder %s40, 0
      %p302 = por %p300, %p301
      %p303 = scmp.ne.s32.totalorder %s289, %s290
      %p304 = scmp.eq.s32.totalorder %s41, 1
      %p305 = por %p303, %p304
      %p307 = scmp.ne.s32.totalorder %s290, %s306
      %p308 = scmp.eq.s32.totalorder %s41, 0
      %p309 = por %p307, %p308
      %s310 = ssub.s32 %s35, %s42
      %p311 = scmp.eq.s32.totalorder %s310, 0
      %s313 = sadd.s32 %s312, 1
      %s314 = scalar_select %p311, %s312, %s313
      %p317 = pneg %p311
      %p318 = scmp.eq.s32.totalorder %s35, 1
      %p319 = por %p317, %p318
      %p320 = scmp.ne.s32.totalorder %s312, %s315
      %p321 = scmp.eq.s32.totalorder %s35, 0
      %p322 = por %p320, %p321
      %p323 = scmp.ne.s32.totalorder %s312, %s315
      %p324 = scmp.eq.s32.totalorder %s40, 1
      %p325 = por %p323, %p324
      %p326 = scmp.ne.s32.totalorder %s315, %s316
      %p327 = scmp.eq.s32.totalorder %s40, 0
      %p328 = por %p326, %p327
      %p329 = scmp.ne.s32.totalorder %s315, %s316
      %p330 = scmp.eq.s32.totalorder %s41, 1
      %p331 = por %p329, %p330
      %p333 = scmp.ne.s32.totalorder %s316, %s332
      %p334 = scmp.eq.s32.totalorder %s41, 0
      %p335 = por %p333, %p334
      %s336 = ssub.s32 %s35, %s42
      %p337 = scmp.eq.s32.totalorder %s336, 0
      %s339 = sadd.s32 %s338, 1
      %s340 = scalar_select %p337, %s338, %s339
      %p343 = pneg %p337
      %p344 = scmp.eq.s32.totalorder %s35, 1
      %p345 = por %p343, %p344
      %p346 = scmp.ne.s32.totalorder %s338, %s341
      %p347 = scmp.eq.s32.totalorder %s35, 0
      %p348 = por %p346, %p347
      %p349 = scmp.ne.s32.totalorder %s338, %s341
      %p350 = scmp.eq.s32.totalorder %s40, 1
      %p351 = por %p349, %p350
      %p352 = scmp.ne.s32.totalorder %s341, %s342
      %p353 = scmp.eq.s32.totalorder %s40, 0
      %p354 = por %p352, %p353
      %p355 = scmp.ne.s32.totalorder %s341, %s342
      %p356 = scmp.eq.s32.totalorder %s41, 1
      %p357 = por %p355, %p356
      %p359 = scmp.ne.s32.totalorder %s342, %s358
      %p360 = scmp.eq.s32.totalorder %s41, 0
      %p361 = por %p359, %p360
      %s362 = ssub.s32 %s35, %s42
      %p363 = scmp.eq.s32.totalorder %s362, 0
      %s365 = sadd.s32 %s364, 1
      %s366 = scalar_select %p363, %s364, %s365
      %p369 = pneg %p363
      %p370 = scmp.eq.s32.totalorder %s35, 1
      %p371 = por %p369, %p370
      %p372 = scmp.ne.s32.totalorder %s364, %s367
      %p373 = scmp.eq.s32.totalorder %s35, 0
      %p374 = por %p372, %p373
      %p375 = scmp.ne.s32.totalorder %s364, %s367
      %p376 = scmp.eq.s32.totalorder %s40, 1
      %p377 = por %p375, %p376
      %p378 = scmp.ne.s32.totalorder %s367, %s368
      %p379 = scmp.eq.s32.totalorder %s40, 0
      %p380 = por %p378, %p379
      %p381 = scmp.ne.s32.totalorder %s367, %s368
      %p382 = scmp.eq.s32.totalorder %s41, 1
      %p383 = por %p381, %p382
      %p385 = scmp.ne.s32.totalorder %s368, %s384
      %p386 = scmp.eq.s32.totalorder %s41, 0
      %p387 = por %p385, %p386
      %s388 = ssub.s32 %s35, %s42
      %p389 = scmp.eq.s32.totalorder %s388, 0
      %s391 = sadd.s32 %s390, 1
      %s392 = scalar_select %p389, %s390, %s391
      %p395 = pneg %p389
      %p396 = scmp.eq.s32.totalorder %s35, 1
      %p397 = por %p395, %p396
      %p398 = scmp.ne.s32.totalorder %s390, %s393
      %p399 = scmp.eq.s32.totalorder %s35, 0
      %p400 = por %p398, %p399
      %p401 = scmp.ne.s32.totalorder %s390, %s393
      %p402 = scmp.eq.s32.totalorder %s40, 1
      %p403 = por %p401, %p402
      %p404 = scmp.ne.s32.totalorder %s393, %s394
      %p405 = scmp.eq.s32.totalorder %s40, 0
      %p406 = por %p404, %p405
      %p407 = scmp.ne.s32.totalorder %s393, %s394
      %p408 = scmp.eq.s32.totalorder %s41, 1
      %p409 = por %p407, %p408
      %p411 = scmp.ne.s32.totalorder %s394, %s410
      %p412 = scmp.eq.s32.totalorder %s41, 0
      %p413 = por %p411, %p412
      %s414 = ssub.s32 %s35, %s42
      %p415 = scmp.eq.s32.totalorder %s414, 0
      %s417 = sadd.s32 %s416, 1
      %s418 = scalar_select %p415, %s416, %s417
      %p421 = pneg %p415
      %p422 = scmp.eq.s32.totalorder %s35, 1
      %p423 = por %p421, %p422
      %p424 = scmp.ne.s32.totalorder %s416, %s419
      %p425 = scmp.eq.s32.totalorder %s35, 0
      %p426 = por %p424, %p425
      %p427 = scmp.ne.s32.totalorder %s416, %s419
      %p428 = scmp.eq.s32.totalorder %s40, 1
      %p429 = por %p427, %p428
      %p430 = scmp.ne.s32.totalorder %s419, %s420
      %p431 = scmp.eq.s32.totalorder %s40, 0
      %p432 = por %p430, %p431
      %p433 = scmp.ne.s32.totalorder %s419, %s420
      %p434 = scmp.eq.s32.totalorder %s41, 1
      %p435 = por %p433, %p434
      %p437 = scmp.ne.s32.totalorder %s420, %s436
      %p438 = scmp.eq.s32.totalorder %s41, 0
      %p439 = por %p437, %p438
      %s440 = ssub.s32 %s35, %s42
      %p441 = scmp.eq.s32.totalorder %s440, 0
      %s443 = sadd.s32 %s442, 1
      %s444 = scalar_select %p441, %s442, %s443
      %p447 = pneg %p441
      %p448 = scmp.eq.s32.totalorder %s35, 1
      %p449 = por %p447, %p448
      %p450 = scmp.ne.s32.totalorder %s442, %s445
      %p451 = scmp.eq.s32.totalorder %s35, 0
      %p452 = por %p450, %p451
      %p453 = scmp.ne.s32.totalorder %s442, %s445
      %p454 = scmp.eq.s32.totalorder %s40, 1
      %p455 = por %p453, %p454
      %p456 = scmp.ne.s32.totalorder %s445, %s446
      %p457 = scmp.eq.s32.totalorder %s40, 0
      %p458 = por %p456, %p457
      %p459 = scmp.ne.s32.totalorder %s445, %s446
      %p460 = scmp.eq.s32.totalorder %s41, 1
      %p461 = por %p459, %p460
      %p463 = scmp.ne.s32.totalorder %s446, %s462
      %p464 = scmp.eq.s32.totalorder %s41, 0
      %p465 = por %p463, %p464
      %s466 = ssub.s32 %s35, %s42
      %p467 = scmp.eq.s32.totalorder %s466, 0
      %s469 = sadd.s32 %s468, 1
      %s470 = scalar_select %p467, %s468, %s469
      %p473 = pneg %p467
      %p474 = scmp.eq.s32.totalorder %s35, 1
      %p475 = por %p473, %p474
      %p476 = scmp.ne.s32.totalorder %s468, %s471
      %p477 = scmp.eq.s32.totalorder %s35, 0
      %p478 = por %p476, %p477
      %p479 = scmp.ne.s32.totalorder %s468, %s471
      %p480 = scmp.eq.s32.totalorder %s40, 1
      %p481 = por %p479, %p480
      %p482 = scmp.ne.s32.totalorder %s471, %s472
      %p483 = scmp.eq.s32.totalorder %s40, 0
      %p484 = por %p482, %p483
      %p485 = scmp.ne.s32.totalorder %s471, %s472
      %p486 = scmp.eq.s32.totalorder %s41, 1
      %p487 = por %p485, %p486
      %p489 = scmp.ne.s32.totalorder %s472, %s488
      %p490 = scmp.eq.s32.totalorder %s41, 0
      %p491 = por %p489, %p490
      %s492 = ssub.s32 %s35, %s42
      %p493 = scmp.eq.s32.totalorder %s492, 0
      %s495 = sadd.s32 %s494, 1
      %s496 = scalar_select %p493, %s494, %s495
      %p499 = pneg %p493
      %p500 = scmp.eq.s32.totalorder %s35, 1
      %p501 = por %p499, %p500
      %p502 = scmp.ne.s32.totalorder %s494, %s497
      %p503 = scmp.eq.s32.totalorder %s35, 0
      %p504 = por %p502, %p503
      %p505 = scmp.ne.s32.totalorder %s494, %s497
      %p506 = scmp.eq.s32.totalorder %s40, 1
      %p507 = por %p505, %p506
      %p508 = scmp.ne.s32.totalorder %s497, %s498
      %p509 = scmp.eq.s32.totalorder %s40, 0
      %p510 = por %p508, %p509
      %p511 = scmp.ne.s32.totalorder %s497, %s498
      %p512 = scmp.eq.s32.totalorder %s41, 1
      %p513 = por %p511, %p512
      %p515 = scmp.ne.s32.totalorder %s498, %s514
      %p516 = scmp.eq.s32.totalorder %s41, 0
      %p517 = por %p515, %p516
      %s518 = ssub.s32 %s35, %s42
      %p519 = scmp.eq.s32.totalorder %s518, 0
      %s521 = sadd.s32 %s520, 1
      %s522 = scalar_select %p519, %s520, %s521
      %p525 = pneg %p519
      %p526 = scmp.eq.s32.totalorder %s35, 1
      %p527 = por %p525, %p526
      %p528 = scmp.ne.s32.totalorder %s520, %s523
      %p529 = scmp.eq.s32.totalorder %s35, 0
      %p530 = por %p528, %p529
      %p531 = scmp.ne.s32.totalorder %s520, %s523
      %p532 = scmp.eq.s32.totalorder %s40, 1
      %p533 = por %p531, %p532
      %p534 = scmp.ne.s32.totalorder %s523, %s524
      %p535 = scmp.eq.s32.totalorder %s40, 0
      %p536 = por %p534, %p535
      %p537 = scmp.ne.s32.totalorder %s523, %s524
      %p538 = scmp.eq.s32.totalorder %s41, 1
      %p539 = por %p537, %p538
      %p541 = scmp.ne.s32.totalorder %s524, %s540
      %p542 = scmp.eq.s32.totalorder %s41, 0
      %p543 = por %p541, %p542
      %s545 = sadd.s32 %s544, 1
      %p548 = scmp.eq.s32.totalorder %s35, 1
      %p549 = scmp.ne.s32.totalorder %s544, %s546
      %p550 = scmp.eq.s32.totalorder %s35, 0
      %p551 = por %p549, %p550
      %p552 = scmp.ne.s32.totalorder %s544, %s546
      %p553 = scmp.eq.s32.totalorder %s40, 1
      %p554 = por %p552, %p553
      %p555 = scmp.ne.s32.totalorder %s546, %s547
      %p556 = scmp.eq.s32.totalorder %s40, 0
      %p557 = por %p555, %p556
      %p558 = scmp.ne.s32.totalorder %s546, %s547
      %p559 = scmp.eq.s32.totalorder %s41, 1
      %p560 = por %p558, %p559
      %p562 = scmp.ne.s32.totalorder %s547, %s561
      %p563 = scmp.eq.s32.totalorder %s41, 0
      %p564 = por %p562, %p563
      %s566 = sadd.s32 %s565, 1
      %p569 = scmp.eq.s32.totalorder %s35, 1
      %p570 = scmp.ne.s32.totalorder %s565, %s567
      %p571 = scmp.eq.s32.totalorder %s35, 0
      %p572 = por %p570, %p571
      %p573 = scmp.ne.s32.totalorder %s565, %s567
      %p574 = scmp.eq.s32.totalorder %s40, 1
      %p575 = por %p573, %p574
      %p576 = scmp.ne.s32.totalorder %s567, %s568
      %p577 = scmp.eq.s32.totalorder %s40, 0
      %p578 = por %p576, %p577
      %p579 = scmp.ne.s32.totalorder %s567, %s568
      %p580 = scmp.eq.s32.totalorder %s41, 1
      %p581 = por %p579, %p580
      %p583 = scmp.ne.s32.totalorder %s568, %s582
      %p584 = scmp.eq.s32.totalorder %s41, 0
      %p585 = por %p583, %p584
      %s587 = sadd.s32 %s586, 1
      %p590 = scmp.eq.s32.totalorder %s35, 1
      %p591 = scmp.ne.s32.totalorder %s586, %s588
      %p592 = scmp.eq.s32.totalorder %s35, 0
      %p593 = por %p591, %p592
      %p594 = scmp.ne.s32.totalorder %s586, %s588
      %p595 = scmp.eq.s32.totalorder %s40, 1
      %p596 = por %p594, %p595
      %p597 = scmp.ne.s32.totalorder %s588, %s589
      %p598 = scmp.eq.s32.totalorder %s40, 0
      %p599 = por %p597, %p598
      %p600 = scmp.ne.s32.totalorder %s588, %s589
      %p601 = scmp.eq.s32.totalorder %s41, 1
      %p602 = por %p600, %p601
      %p604 = scmp.ne.s32.totalorder %s589, %s603
      %p605 = scmp.eq.s32.totalorder %s41, 0
      %p606 = por %p604, %p605
      %s608 = sadd.s32 %s607, 1
      %p611 = scmp.eq.s32.totalorder %s35, 1
      %p612 = scmp.ne.s32.totalorder %s607, %s609
      %p613 = scmp.eq.s32.totalorder %s35, 0
      %p614 = por %p612, %p613
      %p615 = scmp.ne.s32.totalorder %s607, %s609
      %p616 = scmp.eq.s32.totalorder %s40, 1
      %p617 = por %p615, %p616
      %p618 = scmp.ne.s32.totalorder %s609, %s610
      %p619 = scmp.eq.s32.totalorder %s40, 0
      %p620 = por %p618, %p619
      %p621 = scmp.ne.s32.totalorder %s609, %s610
      %p622 = scmp.eq.s32.totalorder %s41, 1
      %p623 = por %p621, %p622
      %p625 = scmp.ne.s32.totalorder %s610, %s624
      %p626 = scmp.eq.s32.totalorder %s41, 0
      %p627 = por %p625, %p626
      %s629 = sadd.s32 %s628, 1
      %p632 = scmp.eq.s32.totalorder %s35, 1
      %p633 = scmp.ne.s32.totalorder %s628, %s630
      %p634 = scmp.eq.s32.totalorder %s35, 0
      %p635 = por %p633, %p634
      %p636 = scmp.ne.s32.totalorder %s628, %s630
      %p637 = scmp.eq.s32.totalorder %s40, 1
      %p638 = por %p636, %p637
      %p639 = scmp.ne.s32.totalorder %s630, %s631
      %p640 = scmp.eq.s32.totalorder %s40, 0
      %p641 = por %p639, %p640
      %p642 = scmp.ne.s32.totalorder %s630, %s631
      %p643 = scmp.eq.s32.totalorder %s41, 1
      %p644 = por %p642, %p643
      %p646 = scmp.ne.s32.totalorder %s631, %s645
      %p647 = scmp.eq.s32.totalorder %s41, 0
      %p648 = por %p646, %p647
      %s650 = sadd.s32 %s649, 1
      %p653 = scmp.eq.s32.totalorder %s35, 1
      %p654 = scmp.ne.s32.totalorder %s649, %s651
      %p655 = scmp.eq.s32.totalorder %s35, 0
      %p656 = por %p654, %p655
      %p657 = scmp.ne.s32.totalorder %s649, %s651
      %p658 = scmp.eq.s32.totalorder %s40, 1
      %p659 = por %p657, %p658
      %p660 = scmp.ne.s32.totalorder %s651, %s652
      %p661 = scmp.eq.s32.totalorder %s40, 0
      %p662 = por %p660, %p661
      %p663 = scmp.ne.s32.totalorder %s651, %s652
      %p664 = scmp.eq.s32.totalorder %s41, 1
      %p665 = por %p663, %p664
      %p667 = scmp.ne.s32.totalorder %s652, %s666
      %p668 = scmp.eq.s32.totalorder %s41, 0
      %p669 = por %p667, %p668
      %p670 = scmp.le.s32.totalorder 1, %s35
      %p671 = scmp.lt.s32.totalorder %s35, 3
      %p672 = pnand %p670, %p671
      %p673 = pneg %p672
      // Predicated region
      $region9: #{tpu_custom_call.1} parent=5 // pred_check
        _
      $region10: #{tpu_custom_call.1} parent=5 // pred_check_branch
        %675 = sbr.rel (%p672) target = $region12
      $region11: #{tpu_custom_call.1} parent=5 // pred_region
        %s676 = ssub.s32 %s35, 1
        // Predicated region
        $region13: #{tpu_custom_call.1} parent=11 // pred_check
          %p677 = pneg %p56
        $region14: #{tpu_custom_call.1} parent=11 // pred_check_branch
          %679 = sbr.rel (%p677) target = $region16
        $region15: #{tpu_custom_call.1} parent=11 // pred_region
          _
        $region16: #{tpu_custom_call.1} parent=11 // pred_fallthru
          _
        // Predicated region
        $region17: #{tpu_custom_call.1} parent=11 // pred_check
          %p680 = pneg %p77
        $region18: #{tpu_custom_call.1} parent=11 // pred_check_branch
          %682 = sbr.rel (%p680) target = $region20
        $region19: #{tpu_custom_call.1} parent=11 // pred_region
          _
        $region20: #{tpu_custom_call.1} parent=11 // pred_fallthru
          _
        // Predicated region
        $region21: #{tpu_custom_call.1} parent=11 // pred_check
          %p683 = pneg %p98
        $region22: #{tpu_custom_call.1} parent=11 // pred_check_branch
          %685 = sbr.rel (%p683) target = $region24
        $region23: #{tpu_custom_call.1} parent=11 // pred_region
          _
        $region24: #{tpu_custom_call.1} parent=11 // pred_fallthru
          _
        // Predicated region
        $region25: #{tpu_custom_call.1} parent=11 // pred_check
          %p686 = pneg %p119
        $region26: #{tpu_custom_call.1} parent=11 // pred_check_branch
          %688 = sbr.rel (%p686) target = $region28
        $region27: #{tpu_custom_call.1} parent=11 // pred_region
          _
        $region28: #{tpu_custom_call.1} parent=11 // pred_fallthru
          _
        // Predicated region
        $region29: #{tpu_custom_call.1} parent=11 // pred_check
          %p689 = pneg %p140
        $region30: #{tpu_custom_call.1} parent=11 // pred_check_branch
          %691 = sbr.rel (%p689) target = $region32
        $region31: #{tpu_custom_call.1} parent=11 // pred_region
          _
        $region32: #{tpu_custom_call.1} parent=11 // pred_fallthru
          _
        // Predicated region
        $region33: #{tpu_custom_call.1} parent=11 // pred_check
          %p692 = pneg %p161
        $region34: #{tpu_custom_call.1} parent=11 // pred_check_branch
          %694 = sbr.rel (%p692) target = $region36
        $region35: #{tpu_custom_call.1} parent=11 // pred_region
          _
        $region36: #{tpu_custom_call.1} parent=11 // pred_fallthru
          _
        // Predicated region
        $region37: #{tpu_custom_call.1} parent=11 // pred_check
          %p695 = pneg %p182
        $region38: #{tpu_custom_call.1} parent=11 // pred_check_branch
          %697 = sbr.rel (%p695) target = $region40
        $region39: #{tpu_custom_call.1} parent=11 // pred_region
          _
        $region40: #{tpu_custom_call.1} parent=11 // pred_fallthru
          _
        // Predicated region
        $region41: #{tpu_custom_call.1} parent=11 // pred_check
          %p698 = pneg %p203
        $region42: #{tpu_custom_call.1} parent=11 // pred_check_branch
          %700 = sbr.rel (%p698) target = $region44
        $region43: #{tpu_custom_call.1} parent=11 // pred_region
          _
        $region44: #{tpu_custom_call.1} parent=11 // pred_fallthru
          _
        // Predicated region
        $region45: #{tpu_custom_call.1} parent=11 // pred_check
          %p701 = pneg %p224
        $region46: #{tpu_custom_call.1} parent=11 // pred_check_branch
          %703 = sbr.rel (%p701) target = $region48
        $region47: #{tpu_custom_call.1} parent=11 // pred_region
          _
        $region48: #{tpu_custom_call.1} parent=11 // pred_fallthru
          _
        // Predicated region
        $region49: #{tpu_custom_call.1} parent=11 // pred_check
          %p704 = pneg %p557
        $region50: #{tpu_custom_call.1} parent=11 // pred_check_branch
          %706 = sbr.rel (%p704) target = $region52
        $region51: #{tpu_custom_call.1} parent=11 // pred_region
          _
        $region52: #{tpu_custom_call.1} parent=11 // pred_fallthru
          _
        // Predicated region
        $region53: #{tpu_custom_call.1} parent=11 // pred_check
          %p707 = pneg %p578
        $region54: #{tpu_custom_call.1} parent=11 // pred_check_branch
          %709 = sbr.rel (%p707) target = $region56
        $region55: #{tpu_custom_call.1} parent=11 // pred_region
          _
        $region56: #{tpu_custom_call.1} parent=11 // pred_fallthru
          _
        // Predicated region
        $region57: #{tpu_custom_call.1} parent=11 // pred_check
          %p710 = pneg %p599
        $region58: #{tpu_custom_call.1} parent=11 // pred_check_branch
          %712 = sbr.rel (%p710) target = $region60
        $region59: #{tpu_custom_call.1} parent=11 // pred_region
          _
        $region60: #{tpu_custom_call.1} parent=11 // pred_fallthru
          _
        // Predicated region
        $region61: #{tpu_custom_call.1} parent=11 // pred_check
          %p713 = pneg %p620
        $region62: #{tpu_custom_call.1} parent=11 // pred_check_branch
          %715 = sbr.rel (%p713) target = $region64
        $region63: #{tpu_custom_call.1} parent=11 // pred_region
          _
        $region64: #{tpu_custom_call.1} parent=11 // pred_fallthru
          _
      $region12: #{tpu_custom_call.1} parent=5 // pred_fallthru
        _
      %p716 = scmp.lt.s32.totalorder %s35, 2
      // Predicated region
      $region65: #{tpu_custom_call.1} parent=5 // pred_check
        %p717 = pneg %p716
      $region66: #{tpu_custom_call.1} parent=5 // pred_check_branch
        %719 = sbr.rel (%p717) target = $region68
      $region67: #{tpu_custom_call.1} parent=5 // pred_region
        // Predicated region
        $region69: #{tpu_custom_call.1} parent=67 // pred_check
          %p720 = pneg %p244
        $region70: #{tpu_custom_call.1} parent=67 // pred_check_branch
          %722 = sbr.rel (%p720) target = $region72
        $region71: #{tpu_custom_call.1} parent=67 // pred_region
          %p723 = scmp.lt.s32.totalorder %s35, 1
          %s724 = scalar_select %p723, %s35, 1
          %s725 = smul.addr %s724, 4
          %s726 = smul.addr %s725, 4
          %s727 = scalar_lea.vmem %s9, %s726
        $region72: #{tpu_custom_call.1} parent=67 // pred_fallthru
          _
        // Predicated region
        $region73: #{tpu_custom_call.1} parent=67 // pred_check
          %p728 = pneg %p270
        $region74: #{tpu_custom_call.1} parent=67 // pred_check_branch
          %730 = sbr.rel (%p728) target = $region76
        $region75: #{tpu_custom_call.1} parent=67 // pred_region
          %p731 = scmp.lt.s32.totalorder %s35, 1
          %s732 = scalar_select %p731, %s35, 1
          %s733 = scalar_lea.vmem %s10, %s732
        $region76: #{tpu_custom_call.1} parent=67 // pred_fallthru
          _
        // Predicated region
        $region77: #{tpu_custom_call.1} parent=67 // pred_check
          %p734 = pneg %p296
        $region78: #{tpu_custom_call.1} parent=67 // pred_check_branch
          %736 = sbr.rel (%p734) target = $region80
        $region79: #{tpu_custom_call.1} parent=67 // pred_region
          %p737 = scmp.lt.s32.totalorder %s35, 1
          %s738 = scalar_select %p737, %s35, 1
          %s739 = smul.addr %s738, 4
          %s740 = smul.addr %s739, 4
          %s741 = scalar_lea.vmem %s11, %s740
        $region80: #{tpu_custom_call.1} parent=67 // pred_fallthru
          _
        // Predicated region
        $region81: #{tpu_custom_call.1} parent=67 // pred_check
          %p742 = pneg %p322
        $region82: #{tpu_custom_call.1} parent=67 // pred_check_branch
          %744 = sbr.rel (%p742) target = $region84
        $region83: #{tpu_custom_call.1} parent=67 // pred_region
          %p745 = scmp.lt.s32.totalorder %s35, 1
          %s746 = scalar_select %p745, %s35, 1
          %s747 = scalar_lea.vmem %s12, %s746
        $region84: #{tpu_custom_call.1} parent=67 // pred_fallthru
          _
        // Predicated region
        $region85: #{tpu_custom_call.1} parent=67 // pred_check
          %p748 = pneg %p348
        $region86: #{tpu_custom_call.1} parent=67 // pred_check_branch
          %750 = sbr.rel (%p748) target = $region88
        $region87: #{tpu_custom_call.1} parent=67 // pred_region
          %p751 = scmp.lt.s32.totalorder %s35, 1
          %s752 = scalar_select %p751, %s35, 1
          %s753 = scalar_lea.vmem %s13, %s752
        $region88: #{tpu_custom_call.1} parent=67 // pred_fallthru
          _
        // Predicated region
        $region89: #{tpu_custom_call.1} parent=67 // pred_check
          %p754 = pneg %p374
        $region90: #{tpu_custom_call.1} parent=67 // pred_check_branch
          %756 = sbr.rel (%p754) target = $region92
        $region91: #{tpu_custom_call.1} parent=67 // pred_region
          %p757 = scmp.lt.s32.totalorder %s35, 1
          %s758 = scalar_select %p757, %s35, 1
          %s759 = scalar_lea.vmem %s14, %s758
        $region92: #{tpu_custom_call.1} parent=67 // pred_fallthru
          _
        // Predicated region
        $region93: #{tpu_custom_call.1} parent=67 // pred_check
          %p760 = pneg %p400
        $region94: #{tpu_custom_call.1} parent=67 // pred_check_branch
          %762 = sbr.rel (%p760) target = $region96
        $region95: #{tpu_custom_call.1} parent=67 // pred_region
          %p763 = scmp.lt.s32.totalorder %s35, 1
          %s764 = scalar_select %p763, %s35, 1
          %s765 = smul.addr %s764, 64
          %s766 = smul.addr %s765, 4
          %s767 = scalar_lea.vmem %s15, %s766
        $region96: #{tpu_custom_call.1} parent=67 // pred_fallthru
          _
        // Predicated region
        $region97: #{tpu_custom_call.1} parent=67 // pred_check
          %p768 = pneg %p426
        $region98: #{tpu_custom_call.1} parent=67 // pred_check_branch
          %770 = sbr.rel (%p768) target = $region100
        $region99: #{tpu_custom_call.1} parent=67 // pred_region
          %p771 = scmp.lt.s32.totalorder %s35, 1
          %s772 = scalar_select %p771, %s35, 1
          %s773 = smul.addr %s772, 16
          %s774 = scalar_lea.vmem %s16, %s773
        $region100: #{tpu_custom_call.1} parent=67 // pred_fallthru
          _
        // Predicated region
        $region101: #{tpu_custom_call.1} parent=67 // pred_check
          %p775 = pneg %p452
        $region102: #{tpu_custom_call.1} parent=67 // pred_check_branch
          %777 = sbr.rel (%p775) target = $region104
        $region103: #{tpu_custom_call.1} parent=67 // pred_region
          %p778 = scmp.lt.s32.totalorder %s35, 1
          %s779 = scalar_select %p778, %s35, 1
          %s780 = smul.addr %s779, 256
          %s781 = smul.addr %s780, 4
          %s782 = scalar_lea.vmem %s17, %s781
        $region104: #{tpu_custom_call.1} parent=67 // pred_fallthru
          _
        // Predicated region
        $region105: #{tpu_custom_call.1} parent=67 // pred_check
          %p783 = pneg %p478
        $region106: #{tpu_custom_call.1} parent=67 // pred_check_branch
          %785 = sbr.rel (%p783) target = $region108
        $region107: #{tpu_custom_call.1} parent=67 // pred_region
          %p786 = scmp.lt.s32.totalorder %s35, 1
          %s787 = scalar_select %p786, %s35, 1
          %s788 = scalar_lea.vmem %s18, %s787
        $region108: #{tpu_custom_call.1} parent=67 // pred_fallthru
          _
        // Predicated region
        $region109: #{tpu_custom_call.1} parent=67 // pred_check
          %p789 = pneg %p504
        $region110: #{tpu_custom_call.1} parent=67 // pred_check_branch
          %791 = sbr.rel (%p789) target = $region112
        $region111: #{tpu_custom_call.1} parent=67 // pred_region
          %p792 = scmp.lt.s32.totalorder %s35, 1
          %s793 = scalar_select %p792, %s35, 1
          %s794 = scalar_lea.vmem %s19, %s793
        $region112: #{tpu_custom_call.1} parent=67 // pred_fallthru
          _
        // Predicated region
        $region113: #{tpu_custom_call.1} parent=67 // pred_check
          %p795 = pneg %p530
        $region114: #{tpu_custom_call.1} parent=67 // pred_check_branch
          %797 = sbr.rel (%p795) target = $region116
        $region115: #{tpu_custom_call.1} parent=67 // pred_region
          %p798 = scmp.lt.s32.totalorder %s35, 1
          %s799 = scalar_select %p798, %s35, 1
          %s800 = scalar_lea.vmem %s20, %s799
        $region116: #{tpu_custom_call.1} parent=67 // pred_fallthru
          _
      $region68: #{tpu_custom_call.1} parent=5 // pred_fallthru
        _
      %p801 = scmp.le.s32.totalorder 1, %s35
      %p802 = scmp.lt.s32.totalorder %s35, 3
      %p803 = pnand %p801, %p802
      %p804 = pneg %p803
      // Predicated region
      $region117: #{tpu_custom_call.1} parent=5 // pred_check
        _
      $region118: #{tpu_custom_call.1} parent=5 // pred_check_branch
        %806 = sbr.rel (%p803) target = $region120
      $region119: #{tpu_custom_call.1} parent=5 // pred_region
        %s807 = ssub.s32 %s35, 1
        %p808 = pneg %p56
        %p809 = pneg %p53
        %p810 = pneg %p77
        %p811 = pneg %p74
        %p812 = pneg %p98
        %p813 = pneg %p95
        %p814 = pneg %p119
        %p815 = pneg %p116
        %p816 = pneg %p140
        %p817 = pneg %p137
        %p818 = pneg %p161
        %p819 = pneg %p158
        %p820 = pneg %p182
        %p821 = pneg %p179
        %p822 = pneg %p203
        %p823 = pneg %p200
        %p824 = pneg %p224
        %p825 = pneg %p221
        %p826 = scmp.lt.s32.totalorder %s40, 1
        %s827 = scalar_select %p826, %s40, 1
        %s828 = smul.addr %s827, 4
        %s829 = smul.addr %s828, 4
        %s830 = scalar_lea.vmem %s9, %s829
        %p831 = pneg %p250
        %p832 = pneg %p247
        %p833 = scmp.lt.s32.totalorder %s40, 1
        %s834 = scalar_select %p833, %s40, 1
        %s835 = scalar_lea.vmem %s10, %s834
        %p836 = pneg %p276
        %p837 = pneg %p273
        %p838 = scmp.lt.s32.totalorder %s40, 1
        %s839 = scalar_select %p838, %s40, 1
        %s840 = smul.addr %s839, 4
        %s841 = smul.addr %s840, 4
        %s842 = scalar_lea.vmem %s11, %s841
        %p843 = pneg %p302
        %p844 = pneg %p299
        %p845 = scmp.lt.s32.totalorder %s40, 1
        %s846 = scalar_select %p845, %s40, 1
        %s847 = scalar_lea.vmem %s12, %s846
        %p848 = pneg %p328
        %p849 = pneg %p325
        %p850 = scmp.lt.s32.totalorder %s40, 1
        %s851 = scalar_select %p850, %s40, 1
        %s852 = scalar_lea.vmem %s13, %s851
        %p853 = pneg %p354
        %p854 = pneg %p351
        %p855 = scmp.lt.s32.totalorder %s40, 1
        %s856 = scalar_select %p855, %s40, 1
        %s857 = scalar_lea.vmem %s14, %s856
        %p858 = pneg %p380
        %p859 = pneg %p377
        %p860 = scmp.lt.s32.totalorder %s40, 1
        %s861 = scalar_select %p860, %s40, 1
        %s862 = smul.addr %s861, 64
        %s863 = smul.addr %s862, 4
        %s864 = scalar_lea.vmem %s15, %s863
        %p865 = pneg %p406
        %p866 = pneg %p403
        %p867 = scmp.lt.s32.totalorder %s40, 1
        %s868 = scalar_select %p867, %s40, 1
        %s869 = smul.addr %s868, 16
        %s870 = scalar_lea.vmem %s16, %s869
        %p871 = pneg %p432
        %p872 = pneg %p429
        %p873 = scmp.lt.s32.totalorder %s40, 1
        %s874 = scalar_select %p873, %s40, 1
        %s875 = smul.addr %s874, 256
        %s876 = smul.addr %s875, 4
        %s877 = scalar_lea.vmem %s17, %s876
        %p878 = pneg %p458
        %p879 = pneg %p455
        %p880 = scmp.lt.s32.totalorder %s40, 1
        %s881 = scalar_select %p880, %s40, 1
        %s882 = scalar_lea.vmem %s18, %s881
        %p883 = pneg %p484
        %p884 = pneg %p481
        %p885 = scmp.lt.s32.totalorder %s40, 1
        %s886 = scalar_select %p885, %s40, 1
        %s887 = scalar_lea.vmem %s19, %s886
        %p888 = pneg %p510
        %p889 = pneg %p507
        %p890 = scmp.lt.s32.totalorder %s40, 1
        %s891 = scalar_select %p890, %s40, 1
        %s892 = scalar_lea.vmem %s20, %s891
        %p893 = pneg %p536
        %p894 = pneg %p533
        %p895 = pneg %p557
        %p896 = pneg %p554
        %p897 = pneg %p578
        %p898 = pneg %p575
        %p899 = pneg %p599
        %p900 = pneg %p596
        %p901 = pneg %p620
        %p902 = pneg %p617
        %p903 = pneg %p641
        %p904 = pneg %p638
        %p905 = pneg %p662
        %p906 = pneg %p659
        %p907 = scmp.lt.s32.totalorder %s40, 1
        %s908 = scalar_select %p907, %s40, 1
        %s909 = smul.addr %s908, 4
        %s910 = smul.addr %s909, 4
        %s911 = scalar_lea.vmem %s9, %s910
        %p912 = scmp.lt.s32.totalorder %s40, 1
        %s913 = scalar_select %p912, %s40, 1
        %s914 = scalar_lea.vmem %s10, %s913
        %p915 = scmp.lt.s32.totalorder %s40, 1
        %s916 = scalar_select %p915, %s40, 1
        %s917 = smul.addr %s916, 4
        %s918 = smul.addr %s917, 4
        %s919 = scalar_lea.vmem %s11, %s918
        %p920 = scmp.lt.s32.totalorder %s40, 1
        %s921 = scalar_select %p920, %s40, 1
        %s922 = scalar_lea.vmem %s12, %s921
        %p923 = scmp.lt.s32.totalorder %s40, 1
        %s924 = scalar_select %p923, %s40, 1
        %s925 = scalar_lea.vmem %s13, %s924
        %p926 = scmp.lt.s32.totalorder %s40, 1
        %s927 = scalar_select %p926, %s40, 1
        %s928 = scalar_lea.vmem %s14, %s927
        %p929 = scmp.lt.s32.totalorder %s40, 1
        %s930 = scalar_select %p929, %s40, 1
        %s931 = smul.addr %s930, 64
        %s932 = smul.addr %s931, 4
        %s933 = scalar_lea.vmem %s15, %s932
        %p934 = scmp.lt.s32.totalorder %s40, 1
        %s935 = scalar_select %p934, %s40, 1
        %s936 = smul.addr %s935, 16
        %s937 = scalar_lea.vmem %s16, %s936
        %p938 = scmp.lt.s32.totalorder %s40, 1
        %s939 = scalar_select %p938, %s40, 1
        %s940 = smul.addr %s939, 256
        %s941 = smul.addr %s940, 4
        %s942 = scalar_lea.vmem %s17, %s941
        %p943 = scmp.lt.s32.totalorder %s40, 1
        %s944 = scalar_select %p943, %s40, 1
        %s945 = scalar_lea.vmem %s18, %s944
        %p946 = scmp.lt.s32.totalorder %s40, 1
        %s947 = scalar_select %p946, %s40, 1
        %s948 = scalar_lea.vmem %s19, %s947
        %p949 = scmp.lt.s32.totalorder %s40, 1
        %s950 = scalar_select %p949, %s40, 1
        %s951 = scalar_lea.vmem %s20, %s950
        %p953 = scmp.eq.s32.totalorder %s40, 0
        // Predicated region
        $region121: #{tpu_custom_call.1} parent=119 // pred_check
          %p954 = pneg %p953
        $region122: #{tpu_custom_call.1} parent=119 // pred_check_branch
          %956 = sbr.rel (%p954) target = $region124
        $region123: #{tpu_custom_call.1} parent=119 // pred_region
          %v957 = vld [vmem:[%s0] sm:$0xff]
          %v958 = vld [vmem:[%s0 + $0x8] sm:$0xff]
          %v959 = vld [vmem:[%s6] sm:$0x1]
          %961 = vset.pattern.permute.xlu0 0
          %962 = vperm.xlu0 %961, %v957
          %v963 = vpop.permute.xlu0 %962
          %966 = vset.pattern.permute.xlu0 0
          %967 = vperm.xlu0 %966, %v958
          %v968 = vpop.permute.xlu0 %967
          %v971 = vperm.slane %v959, 0
          %v973 = vmul.f32 %v963, %v971
          %v974 = vmul.f32 %v968, %v971
          %v975 = vld [vmem:[%s1] sm:$0xff]
          %v976 = vld [vmem:[%s1 + $0x8] sm:$0xff]
          %v977 = vld [vmem:[%s7] sm:$0x1]
          %979 = vset.pattern.permute.xlu0 0
          %980 = vperm.xlu0 %979, %v975
          %v981 = vpop.permute.xlu0 %980
          %984 = vset.pattern.permute.xlu0 0
          %985 = vperm.xlu0 %984, %v976
          %v986 = vpop.permute.xlu0 %985
          %v989 = vperm.slane %v977, 0
          %v991 = vmul.f32 %v981, %v989
          %v992 = vmul.f32 %v986, %v989
          %v993 = vadd.f32 %v973, %v991
          %v994 = vadd.f32 %v974, %v992
          %v995 = vld [vmem:[%s8] sm:$0x1]
          %v997 = vperm.slane %v995, 0
          %v999 = vadd.f32 %v993, %v997
          %v1000 = vadd.f32 %v994, %v997
          %v1001 = vand.u32 2147483647, %v999
          %vm1002 = vcmp.le.f32.partialorder %v1001, 0.7853982
          %vm1003 = vcmp.lt.s32.totalorder %v999, 0
          %v1004 = vand.u32 %v999, 2139095040
          %v1005 = vshrl.u32 %v1004, 23
          %v1006 = vsub.s32 %v1005, 127
          %v1007 = vand.u32 2147483647, %v999
          %v1008 = vand.u32 %v1007, 8388607
          %v1009 = vor.u32 %v1008, 8388608
          %v1010 = vsub.s32 0, %v1009
          %v1011 = vadd.s32 %v1006, 1
          %vm1012 = vcmp.gt.s32.totalorder %v1011, 0
          %v1013 = vsel %vm1012, %v1011, 0
          %v1014 = vshrl.u32 %v1013, 5
          %v1015 = vand.u32 %v1013, 31
          %v1016 = vsub.s32 32, %v1015
          %v1017 = vshrl.u32 683565275, %v1016
          %v1018 = vshll.u32 683565275, %v1015
          %v1019 = vshrl.u32 2475754826, %v1016
          %v1020 = vor.u32 %v1018, %v1019
          %v1021 = vshll.u32 2475754826, %v1015
          %v1022 = vshrl.u32 2131351028, %v1016
          %v1023 = vor.u32 %v1021, %v1022
          %v1024 = vshll.u32 2131351028, %v1015
          %v1025 = vshrl.u32 2102212464, %v1016
          %v1026 = vor.u32 %v1024, %v1025
          %v1027 = vshll.u32 2102212464, %v1015
          %v1028 = vshrl.u32 920167782, %v1016
          %v1029 = vor.u32 %v1027, %v1028
          %v1030 = vshll.u32 920167782, %v1015
          %v1031 = vshrl.u32 1326507024, %v1016
          %v1032 = vor.u32 %v1030, %v1031
          %vm1033 = vcmp.lt.s32.totalorder %v1014, 1
          %vm1034 = vcmp.lt.s32.totalorder %v1014, 2
          %vm1035 = vcmp.lt.s32.totalorder %v1014, 3
          %vm1036 = vcmp.lt.s32.totalorder %v1014, 4
          %v1037 = vsel %vm1033, %v1017, %v1020
          %v1038 = vsel %vm1036, %v1026, 2102212464
          %v1039 = vsel %vm1035, %v1023, %v1038
          %v1040 = vsel %vm1034, %v1037, %v1039
          %v1041 = vsel %vm1033, %v1020, %v1023
          %v1042 = vsel %vm1036, %v1029, 920167782
          %v1043 = vsel %vm1035, %v1026, %v1042
          %v1044 = vsel %vm1034, %v1041, %v1043
          %v1045 = vsel %vm1033, %v1023, %v1026
          %v1046 = vsel %vm1036, %v1032, 1326507024
          %v1047 = vsel %vm1035, %v1029, %v1046
          %v1048 = vsel %vm1034, %v1045, %v1047
          %v1049 = vshll.u32 %v1009, 8
          %v1050 = vand.u32 %v1049, 65535
          %v1051 = vshrl.u32 %v1049, 16
          %v1052 = vand.u32 %v1048, 65535
          %v1053 = vshrl.u32 %v1048, 16
          %v1054 = vmul.u32 %v1050, %v1052
          %v1055 = vmul.u32 %v1050, %v1053
          %v1056 = vmul.u32 %v1051, %v1052
          %v1057 = vmul.u32 %v1051, %v1053
          %v1058 = vshll.u32 %v1055, 16
          %v1059 = vshrl.u32 %v1055, 16
          %v1060 = vshll.u32 %v1056, 16
          %v1061 = vshrl.u32 %v1056, 16
          %vm1062 = vc.u32 %v1054, %v1058
          %v1063 = vsel %vm1062, 1, 0
          %v1064 = vadd.s32 %v1054, %v1058
          %v1065 = vadd.s32 %v1057, %v1063
          %vm1066 = vc.u32 %v1064, %v1060
          %v1067 = vsel %vm1066, 1, 0
          %v1068 = vadd.s32 %v1064, %v1060
          %v1069 = vadd.s32 %v1065, %v1067
          %v1070 = vadd.s32 %v1069, %v1059
          %v1071 = vadd.s32 %v1070, %v1061
          %v1072 = vand.u32 %v1049, 65535
          %v1073 = vshrl.u32 %v1049, 16
          %v1074 = vand.u32 %v1044, 65535
          %v1075 = vshrl.u32 %v1044, 16
          %v1076 = vmul.u32 %v1072, %v1074
          %v1077 = vmul.u32 %v1072, %v1075
          %v1078 = vmul.u32 %v1073, %v1074
          %v1079 = vmul.u32 %v1073, %v1075
          %v1080 = vshll.u32 %v1077, 16
          %v1081 = vshrl.u32 %v1077, 16
          %v1082 = vshll.u32 %v1078, 16
          %v1083 = vshrl.u32 %v1078, 16
          %vm1084 = vc.u32 %v1076, %v1080
          %v1085 = vsel %vm1084, 1, 0
          %v1086 = vadd.s32 %v1076, %v1080
          %v1087 = vadd.s32 %v1079, %v1085
          %vm1088 = vc.u32 %v1086, %v1082
          %v1089 = vsel %vm1088, 1, 0
          %v1090 = vadd.s32 %v1086, %v1082
          %v1091 = vadd.s32 %v1087, %v1089
          %v1092 = vadd.s32 %v1091, %v1081
          %v1093 = vadd.s32 %v1092, %v1083
          %v1094 = vmul.u32 %v1049, %v1040
          %v1095 = vadd.s32 %v1071, %v1090
          %vm1096 = vc.u32 %v1071, %v1090
          %v1097 = vadd.s32 %v1093, 1
          %v1098 = vsel %vm1096, %v1097, %v1093
          %v1099 = vadd.s32 %v1094, %v1098
          %v1100 = vadd.s32 %v1099, 536870912
          %v1101 = vshrl.u32 %v1100, 30
          %v1102 = vshll.u32 %v1101, 30
          %v1103 = vsub.s32 %v1099, %v1102
          %vm1104 = vcmp.lt.s32.totalorder %v1103, 0
          %v1105 = vsub.s32 0, %v1103
          %v1106 = vsel %vm1104, %v1105, %v1103
          %v1107 = vclz %v1106
          %v1108 = vsub.s32 %v1107, 2
          %vm1109 = vcmp.gt.s32.totalorder 0, %v1108
          %v1110 = vsel %vm1109, 0, %v1108
          %v1111 = vsub.s32 32, %v1110
          %v1112 = vshll.u32 %v1103, %v1110
          %v1113 = vshrl.u32 %v1095, %v1111
          %v1114 = vor.u32 %v1112, %v1113
          %v1115 = vsub.s32 4294967266, %v1110
          %v1116 = vadd.s32 %v1115, 127
          %v1117 = vshll.u32 %v1116, 23
          %v1118 = vor.u32 4788187, %v1117
          %v1119 = vand.u32 2147483647, %v1118
          %v1121 = vcvt.s32.f32 %v1114
          %v1122 = vmul.f32 %v1121, %v1119
          %v1123 = vxor.u32 %v1122, 2147483648
          %v1124 = vsel %vm1003, %v1123, %v1122
          %v1125 = vsub.s32 4, %v1101
          %v1126 = vsel %vm1003, %v1125, %v1101
          %v1127 = vsel %vm1002, %v999, %v1124
          %v1128 = vsel %vm1002, 0, %v1126
          %v1129 = vmul.f32 %v1127, %v1127
          %v1130 = vmul.f32 %v1129, -0.001358992
          %v1131 = vadd.f32 %v1130, 0.041655596
          %v1132 = vmul.f32 %v1129, %v1131
          %v1133 = vadd.f32 %v1132, -0.4999988
          %v1134 = vmul.f32 %v1129, %v1133
          %v1135 = vadd.f32 1.0, %v1134
          %v1136 = vmul.f32 %v1127, %v1127
          %v1137 = vmul.f32 %v1136, -0.00019511016
          %v1138 = vadd.f32 %v1137, 0.008332121
          %v1139 = vmul.f32 %v1136, %v1138
          %v1140 = vadd.f32 %v1139, -0.16666654
          %v1141 = vmul.f32 %v1136, %v1140
          %v1142 = vadd.f32 %v1141, 1.0
          %v1143 = vmul.f32 %v1142, %v1127
          %vm1144 = vweird.f32 %v999
          %v1145 = vadd.s32 %v1128, 3
          %v1146 = vand.u32 %v1145, 3
          %vm1147 = vcmp.lt.s32.totalorder %v1146, 2
          %vm1148 = vcmp.eq.s32.totalorder %v1146, 0
          %v1149 = vxor.u32 %v1143, 2147483648
          %v1150 = vsel %vm1148, %v1135, %v1149
          %vm1151 = vcmp.eq.s32.totalorder %v1146, 2
          %v1152 = vxor.u32 %v1135, 2147483648
          %v1153 = vsel %vm1151, %v1152, %v1143
          %v1154 = vsel %vm1147, %v1150, %v1153
          %v1155 = vsel %vm1144, nan, %v1154
          %v1156 = vand.u32 2147483647, %v1000
          %vm1157 = vcmp.le.f32.partialorder %v1156, 0.7853982
          %vm1158 = vcmp.lt.s32.totalorder %v1000, 0
          %v1159 = vand.u32 %v1000, 2139095040
          %v1160 = vshrl.u32 %v1159, 23
          %v1161 = vsub.s32 %v1160, 127
          %v1162 = vand.u32 2147483647, %v1000
          %v1163 = vand.u32 %v1162, 8388607
          %v1164 = vor.u32 %v1163, 8388608
          %v1165 = vsub.s32 0, %v1164
          %v1166 = vadd.s32 %v1161, 1
          %vm1167 = vcmp.gt.s32.totalorder %v1166, 0
          %v1168 = vsel %vm1167, %v1166, 0
          %v1169 = vshrl.u32 %v1168, 5
          %v1170 = vand.u32 %v1168, 31
          %v1171 = vsub.s32 32, %v1170
          %v1172 = vshrl.u32 683565275, %v1171
          %v1173 = vshll.u32 683565275, %v1170
          %v1174 = vshrl.u32 2475754826, %v1171
          %v1175 = vor.u32 %v1173, %v1174
          %v1176 = vshll.u32 2475754826, %v1170
          %v1177 = vshrl.u32 2131351028, %v1171
          %v1178 = vor.u32 %v1176, %v1177
          %v1179 = vshll.u32 2131351028, %v1170
          %v1180 = vshrl.u32 2102212464, %v1171
          %v1181 = vor.u32 %v1179, %v1180
          %v1182 = vshll.u32 2102212464, %v1170
          %v1183 = vshrl.u32 920167782, %v1171
          %v1184 = vor.u32 %v1182, %v1183
          %v1185 = vshll.u32 920167782, %v1170
          %v1186 = vshrl.u32 1326507024, %v1171
          %v1187 = vor.u32 %v1185, %v1186
          %vm1188 = vcmp.lt.s32.totalorder %v1169, 1
          %vm1189 = vcmp.lt.s32.totalorder %v1169, 2
          %vm1190 = vcmp.lt.s32.totalorder %v1169, 3
          %vm1191 = vcmp.lt.s32.totalorder %v1169, 4
          %v1192 = vsel %vm1188, %v1172, %v1175
          %v1193 = vsel %vm1191, %v1181, 2102212464
          %v1194 = vsel %vm1190, %v1178, %v1193
          %v1195 = vsel %vm1189, %v1192, %v1194
          %v1196 = vsel %vm1188, %v1175, %v1178
          %v1197 = vsel %vm1191, %v1184, 920167782
          %v1198 = vsel %vm1190, %v1181, %v1197
          %v1199 = vsel %vm1189, %v1196, %v1198
          %v1200 = vsel %vm1188, %v1178, %v1181
          %v1201 = vsel %vm1191, %v1187, 1326507024
          %v1202 = vsel %vm1190, %v1184, %v1201
          %v1203 = vsel %vm1189, %v1200, %v1202
          %v1204 = vshll.u32 %v1164, 8
          %v1205 = vand.u32 %v1204, 65535
          %v1206 = vshrl.u32 %v1204, 16
          %v1207 = vand.u32 %v1203, 65535
          %v1208 = vshrl.u32 %v1203, 16
          %v1209 = vmul.u32 %v1205, %v1207
          %v1210 = vmul.u32 %v1205, %v1208
          %v1211 = vmul.u32 %v1206, %v1207
          %v1212 = vmul.u32 %v1206, %v1208
          %v1213 = vshll.u32 %v1210, 16
          %v1214 = vshrl.u32 %v1210, 16
          %v1215 = vshll.u32 %v1211, 16
          %v1216 = vshrl.u32 %v1211, 16
          %vm1217 = vc.u32 %v1209, %v1213
          %v1218 = vsel %vm1217, 1, 0
          %v1219 = vadd.s32 %v1209, %v1213
          %v1220 = vadd.s32 %v1212, %v1218
          %vm1221 = vc.u32 %v1219, %v1215
          %v1222 = vsel %vm1221, 1, 0
          %v1223 = vadd.s32 %v1219, %v1215
          %v1224 = vadd.s32 %v1220, %v1222
          %v1225 = vadd.s32 %v1224, %v1214
          %v1226 = vadd.s32 %v1225, %v1216
          %v1227 = vand.u32 %v1204, 65535
          %v1228 = vshrl.u32 %v1204, 16
          %v1229 = vand.u32 %v1199, 65535
          %v1230 = vshrl.u32 %v1199, 16
          %v1231 = vmul.u32 %v1227, %v1229
          %v1232 = vmul.u32 %v1227, %v1230
          %v1233 = vmul.u32 %v1228, %v1229
          %v1234 = vmul.u32 %v1228, %v1230
          %v1235 = vshll.u32 %v1232, 16
          %v1236 = vshrl.u32 %v1232, 16
          %v1237 = vshll.u32 %v1233, 16
          %v1238 = vshrl.u32 %v1233, 16
          %vm1239 = vc.u32 %v1231, %v1235
          %v1240 = vsel %vm1239, 1, 0
          %v1241 = vadd.s32 %v1231, %v1235
          %v1242 = vadd.s32 %v1234, %v1240
          %vm1243 = vc.u32 %v1241, %v1237
          %v1244 = vsel %vm1243, 1, 0
          %v1245 = vadd.s32 %v1241, %v1237
          %v1246 = vadd.s32 %v1242, %v1244
          %v1247 = vadd.s32 %v1246, %v1236
          %v1248 = vadd.s32 %v1247, %v1238
          %v1249 = vmul.u32 %v1204, %v1195
          %v1250 = vadd.s32 %v1226, %v1245
          %vm1251 = vc.u32 %v1226, %v1245
          %v1252 = vadd.s32 %v1248, 1
          %v1253 = vsel %vm1251, %v1252, %v1248
          %v1254 = vadd.s32 %v1249, %v1253
          %v1255 = vadd.s32 %v1254, 536870912
          %v1256 = vshrl.u32 %v1255, 30
          %v1257 = vshll.u32 %v1256, 30
          %v1258 = vsub.s32 %v1254, %v1257
          %vm1259 = vcmp.lt.s32.totalorder %v1258, 0
          %v1260 = vsub.s32 0, %v1258
          %v1261 = vsel %vm1259, %v1260, %v1258
          %v1262 = vclz %v1261
          %v1263 = vsub.s32 %v1262, 2
          %vm1264 = vcmp.gt.s32.totalorder 0, %v1263
          %v1265 = vsel %vm1264, 0, %v1263
          %v1266 = vsub.s32 32, %v1265
          %v1267 = vshll.u32 %v1258, %v1265
          %v1268 = vshrl.u32 %v1250, %v1266
          %v1269 = vor.u32 %v1267, %v1268
          %v1270 = vsub.s32 4294967266, %v1265
          %v1271 = vadd.s32 %v1270, 127
          %v1272 = vshll.u32 %v1271, 23
          %v1273 = vor.u32 4788187, %v1272
          %v1274 = vand.u32 2147483647, %v1273
          %v1276 = vcvt.s32.f32 %v1269
          %v1277 = vmul.f32 %v1276, %v1274
          %v1278 = vxor.u32 %v1277, 2147483648
          %v1279 = vsel %vm1158, %v1278, %v1277
          %v1280 = vsub.s32 4, %v1256
          %v1281 = vsel %vm1158, %v1280, %v1256
          %v1282 = vsel %vm1157, %v1000, %v1279
          %v1283 = vsel %vm1157, 0, %v1281
          %v1284 = vmul.f32 %v1282, %v1282
          %v1285 = vmul.f32 %v1284, -0.001358992
          %v1286 = vadd.f32 %v1285, 0.041655596
          %v1287 = vmul.f32 %v1284, %v1286
          %v1288 = vadd.f32 %v1287, -0.4999988
          %v1289 = vmul.f32 %v1284, %v1288
          %v1290 = vadd.f32 1.0, %v1289
          %v1291 = vmul.f32 %v1282, %v1282
          %v1292 = vmul.f32 %v1291, -0.00019511016
          %v1293 = vadd.f32 %v1292, 0.008332121
          %v1294 = vmul.f32 %v1291, %v1293
          %v1295 = vadd.f32 %v1294, -0.16666654
          %v1296 = vmul.f32 %v1291, %v1295
          %v1297 = vadd.f32 %v1296, 1.0
          %v1298 = vmul.f32 %v1297, %v1282
          %vm1299 = vweird.f32 %v1000
          %v1300 = vadd.s32 %v1283, 3
          %v1301 = vand.u32 %v1300, 3
          %vm1302 = vcmp.lt.s32.totalorder %v1301, 2
          %vm1303 = vcmp.eq.s32.totalorder %v1301, 0
          %v1304 = vxor.u32 %v1298, 2147483648
          %v1305 = vsel %vm1303, %v1290, %v1304
          %vm1306 = vcmp.eq.s32.totalorder %v1301, 2
          %v1307 = vxor.u32 %v1290, 2147483648
          %v1308 = vsel %vm1306, %v1307, %v1298
          %v1309 = vsel %vm1302, %v1305, %v1308
          %v1310 = vsel %vm1299, nan, %v1309
          %v1311 = vand.u32 2147483647, %v999
          %vm1312 = vcmp.le.f32.partialorder %v1311, 0.7853982
          %vm1313 = vcmp.lt.s32.totalorder %v999, 0
          %v1314 = vand.u32 %v999, 2139095040
          %v1315 = vshrl.u32 %v1314, 23
          %v1316 = vsub.s32 %v1315, 127
          %v1317 = vand.u32 2147483647, %v999
          %v1318 = vand.u32 %v1317, 8388607
          %v1319 = vor.u32 %v1318, 8388608
          %v1320 = vsub.s32 0, %v1319
          %v1321 = vadd.s32 %v1316, 1
          %vm1322 = vcmp.gt.s32.totalorder %v1321, 0
          %v1323 = vsel %vm1322, %v1321, 0
          %v1324 = vshrl.u32 %v1323, 5
          %v1325 = vand.u32 %v1323, 31
          %v1326 = vsub.s32 32, %v1325
          %v1327 = vshrl.u32 683565275, %v1326
          %v1328 = vshll.u32 683565275, %v1325
          %v1329 = vshrl.u32 2475754826, %v1326
          %v1330 = vor.u32 %v1328, %v1329
          %v1331 = vshll.u32 2475754826, %v1325
          %v1332 = vshrl.u32 2131351028, %v1326
          %v1333 = vor.u32 %v1331, %v1332
          %v1334 = vshll.u32 2131351028, %v1325
          %v1335 = vshrl.u32 2102212464, %v1326
          %v1336 = vor.u32 %v1334, %v1335
          %v1337 = vshll.u32 2102212464, %v1325
          %v1338 = vshrl.u32 920167782, %v1326
          %v1339 = vor.u32 %v1337, %v1338
          %v1340 = vshll.u32 920167782, %v1325
          %v1341 = vshrl.u32 1326507024, %v1326
          %v1342 = vor.u32 %v1340, %v1341
          %vm1343 = vcmp.lt.s32.totalorder %v1324, 1
          %vm1344 = vcmp.lt.s32.totalorder %v1324, 2
          %vm1345 = vcmp.lt.s32.totalorder %v1324, 3
          %vm1346 = vcmp.lt.s32.totalorder %v1324, 4
          %v1347 = vsel %vm1343, %v1327, %v1330
          %v1348 = vsel %vm1346, %v1336, 2102212464
          %v1349 = vsel %vm1345, %v1333, %v1348
          %v1350 = vsel %vm1344, %v1347, %v1349
          %v1351 = vsel %vm1343, %v1330, %v1333
          %v1352 = vsel %vm1346, %v1339, 920167782
          %v1353 = vsel %vm1345, %v1336, %v1352
          %v1354 = vsel %vm1344, %v1351, %v1353
          %v1355 = vsel %vm1343, %v1333, %v1336
          %v1356 = vsel %vm1346, %v1342, 1326507024
          %v1357 = vsel %vm1345, %v1339, %v1356
          %v1358 = vsel %vm1344, %v1355, %v1357
          %v1359 = vshll.u32 %v1319, 8
          %v1360 = vand.u32 %v1359, 65535
          %v1361 = vshrl.u32 %v1359, 16
          %v1362 = vand.u32 %v1358, 65535
          %v1363 = vshrl.u32 %v1358, 16
          %v1364 = vmul.u32 %v1360, %v1362
          %v1365 = vmul.u32 %v1360, %v1363
          %v1366 = vmul.u32 %v1361, %v1362
          %v1367 = vmul.u32 %v1361, %v1363
          %v1368 = vshll.u32 %v1365, 16
          %v1369 = vshrl.u32 %v1365, 16
          %v1370 = vshll.u32 %v1366, 16
          %v1371 = vshrl.u32 %v1366, 16
          %vm1372 = vc.u32 %v1364, %v1368
          %v1373 = vsel %vm1372, 1, 0
          %v1374 = vadd.s32 %v1364, %v1368
          %v1375 = vadd.s32 %v1367, %v1373
          %vm1376 = vc.u32 %v1374, %v1370
          %v1377 = vsel %vm1376, 1, 0
          %v1378 = vadd.s32 %v1374, %v1370
          %v1379 = vadd.s32 %v1375, %v1377
          %v1380 = vadd.s32 %v1379, %v1369
          %v1381 = vadd.s32 %v1380, %v1371
          %v1382 = vand.u32 %v1359, 65535
          %v1383 = vshrl.u32 %v1359, 16
          %v1384 = vand.u32 %v1354, 65535
          %v1385 = vshrl.u32 %v1354, 16
          %v1386 = vmul.u32 %v1382, %v1384
          %v1387 = vmul.u32 %v1382, %v1385
          %v1388 = vmul.u32 %v1383, %v1384
          %v1389 = vmul.u32 %v1383, %v1385
          %v1390 = vshll.u32 %v1387, 16
          %v1391 = vshrl.u32 %v1387, 16
          %v1392 = vshll.u32 %v1388, 16
          %v1393 = vshrl.u32 %v1388, 16
          %vm1394 = vc.u32 %v1386, %v1390
          %v1395 = vsel %vm1394, 1, 0
          %v1396 = vadd.s32 %v1386, %v1390
          %v1397 = vadd.s32 %v1389, %v1395
          %vm1398 = vc.u32 %v1396, %v1392
          %v1399 = vsel %vm1398, 1, 0
          %v1400 = vadd.s32 %v1396, %v1392
          %v1401 = vadd.s32 %v1397, %v1399
          %v1402 = vadd.s32 %v1401, %v1391
          %v1403 = vadd.s32 %v1402, %v1393
          %v1404 = vmul.u32 %v1359, %v1350
          %v1405 = vadd.s32 %v1381, %v1400
          %vm1406 = vc.u32 %v1381, %v1400
          %v1407 = vadd.s32 %v1403, 1
          %v1408 = vsel %vm1406, %v1407, %v1403
          %v1409 = vadd.s32 %v1404, %v1408
          %v1410 = vadd.s32 %v1409, 536870912
          %v1411 = vshrl.u32 %v1410, 30
          %v1412 = vshll.u32 %v1411, 30
          %v1413 = vsub.s32 %v1409, %v1412
          %vm1414 = vcmp.lt.s32.totalorder %v1413, 0
          %v1415 = vsub.s32 0, %v1413
          %v1416 = vsel %vm1414, %v1415, %v1413
          %v1417 = vclz %v1416
          %v1418 = vsub.s32 %v1417, 2
          %vm1419 = vcmp.gt.s32.totalorder 0, %v1418
          %v1420 = vsel %vm1419, 0, %v1418
          %v1421 = vsub.s32 32, %v1420
          %v1422 = vshll.u32 %v1413, %v1420
          %v1423 = vshrl.u32 %v1405, %v1421
          %v1424 = vor.u32 %v1422, %v1423
          %v1425 = vsub.s32 4294967266, %v1420
          %v1426 = vadd.s32 %v1425, 127
          %v1427 = vshll.u32 %v1426, 23
          %v1428 = vor.u32 4788187, %v1427
          %v1429 = vand.u32 2147483647, %v1428
          %v1431 = vcvt.s32.f32 %v1424
          %v1432 = vmul.f32 %v1431, %v1429
          %v1433 = vxor.u32 %v1432, 2147483648
          %v1434 = vsel %vm1313, %v1433, %v1432
          %v1435 = vsub.s32 4, %v1411
          %v1436 = vsel %vm1313, %v1435, %v1411
          %v1437 = vsel %vm1312, %v999, %v1434
          %v1438 = vsel %vm1312, 0, %v1436
          %v1439 = vmul.f32 %v1437, %v1437
          %v1440 = vmul.f32 %v1439, -0.001358992
          %v1441 = vadd.f32 %v1440, 0.041655596
          %v1442 = vmul.f32 %v1439, %v1441
          %v1443 = vadd.f32 %v1442, -0.4999988
          %v1444 = vmul.f32 %v1439, %v1443
          %v1445 = vadd.f32 1.0, %v1444
          %v1446 = vmul.f32 %v1437, %v1437
          %v1447 = vmul.f32 %v1446, -0.00019511016
          %v1448 = vadd.f32 %v1447, 0.008332121
          %v1449 = vmul.f32 %v1446, %v1448
          %v1450 = vadd.f32 %v1449, -0.16666654
          %v1451 = vmul.f32 %v1446, %v1450
          %v1452 = vadd.f32 %v1451, 1.0
          %v1453 = vmul.f32 %v1452, %v1437
          %vm1454 = vweird.f32 %v999
          %v1455 = vand.u32 %v1438, 3
          %vm1456 = vcmp.lt.s32.totalorder %v1455, 2
          %vm1457 = vcmp.eq.s32.totalorder %v1455, 0
          %v1458 = vxor.u32 %v1453, 2147483648
          %v1459 = vsel %vm1457, %v1445, %v1458
          %vm1460 = vcmp.eq.s32.totalorder %v1455, 2
          %v1461 = vxor.u32 %v1445, 2147483648
          %v1462 = vsel %vm1460, %v1461, %v1453
          %v1463 = vsel %vm1456, %v1459, %v1462
          %v1464 = vsel %vm1454, nan, %v1463
          %v1465 = vand.u32 2147483647, %v1000
          %vm1466 = vcmp.le.f32.partialorder %v1465, 0.7853982
          %vm1467 = vcmp.lt.s32.totalorder %v1000, 0
          %v1468 = vand.u32 %v1000, 2139095040
          %v1469 = vshrl.u32 %v1468, 23
          %v1470 = vsub.s32 %v1469, 127
          %v1471 = vand.u32 2147483647, %v1000
          %v1472 = vand.u32 %v1471, 8388607
          %v1473 = vor.u32 %v1472, 8388608
          %v1474 = vsub.s32 0, %v1473
          %v1475 = vadd.s32 %v1470, 1
          %vm1476 = vcmp.gt.s32.totalorder %v1475, 0
          %v1477 = vsel %vm1476, %v1475, 0
          %v1478 = vshrl.u32 %v1477, 5
          %v1479 = vand.u32 %v1477, 31
          %v1480 = vsub.s32 32, %v1479
          %v1481 = vshrl.u32 683565275, %v1480
          %v1482 = vshll.u32 683565275, %v1479
          %v1483 = vshrl.u32 2475754826, %v1480
          %v1484 = vor.u32 %v1482, %v1483
          %v1485 = vshll.u32 2475754826, %v1479
          %v1486 = vshrl.u32 2131351028, %v1480
          %v1487 = vor.u32 %v1485, %v1486
          %v1488 = vshll.u32 2131351028, %v1479
          %v1489 = vshrl.u32 2102212464, %v1480
          %v1490 = vor.u32 %v1488, %v1489
          %v1491 = vshll.u32 2102212464, %v1479
          %v1492 = vshrl.u32 920167782, %v1480
          %v1493 = vor.u32 %v1491, %v1492
          %v1494 = vshll.u32 920167782, %v1479
          %v1495 = vshrl.u32 1326507024, %v1480
          %v1496 = vor.u32 %v1494, %v1495
          %vm1497 = vcmp.lt.s32.totalorder %v1478, 1
          %vm1498 = vcmp.lt.s32.totalorder %v1478, 2
          %vm1499 = vcmp.lt.s32.totalorder %v1478, 3
          %vm1500 = vcmp.lt.s32.totalorder %v1478, 4
          %v1501 = vsel %vm1497, %v1481, %v1484
          %v1502 = vsel %vm1500, %v1490, 2102212464
          %v1503 = vsel %vm1499, %v1487, %v1502
          %v1504 = vsel %vm1498, %v1501, %v1503
          %v1505 = vsel %vm1497, %v1484, %v1487
          %v1506 = vsel %vm1500, %v1493, 920167782
          %v1507 = vsel %vm1499, %v1490, %v1506
          %v1508 = vsel %vm1498, %v1505, %v1507
          %v1509 = vsel %vm1497, %v1487, %v1490
          %v1510 = vsel %vm1500, %v1496, 1326507024
          %v1511 = vsel %vm1499, %v1493, %v1510
          %v1512 = vsel %vm1498, %v1509, %v1511
          %v1513 = vshll.u32 %v1473, 8
          %v1514 = vand.u32 %v1513, 65535
          %v1515 = vshrl.u32 %v1513, 16
          %v1516 = vand.u32 %v1512, 65535
          %v1517 = vshrl.u32 %v1512, 16
          %v1518 = vmul.u32 %v1514, %v1516
          %v1519 = vmul.u32 %v1514, %v1517
          %v1520 = vmul.u32 %v1515, %v1516
          %v1521 = vmul.u32 %v1515, %v1517
          %v1522 = vshll.u32 %v1519, 16
          %v1523 = vshrl.u32 %v1519, 16
          %v1524 = vshll.u32 %v1520, 16
          %v1525 = vshrl.u32 %v1520, 16
          %vm1526 = vc.u32 %v1518, %v1522
          %v1527 = vsel %vm1526, 1, 0
          %v1528 = vadd.s32 %v1518, %v1522
          %v1529 = vadd.s32 %v1521, %v1527
          %vm1530 = vc.u32 %v1528, %v1524
          %v1531 = vsel %vm1530, 1, 0
          %v1532 = vadd.s32 %v1528, %v1524
          %v1533 = vadd.s32 %v1529, %v1531
          %v1534 = vadd.s32 %v1533, %v1523
          %v1535 = vadd.s32 %v1534, %v1525
          %v1536 = vand.u32 %v1513, 65535
          %v1537 = vshrl.u32 %v1513, 16
          %v1538 = vand.u32 %v1508, 65535
          %v1539 = vshrl.u32 %v1508, 16
          %v1540 = vmul.u32 %v1536, %v1538
          %v1541 = vmul.u32 %v1536, %v1539
          %v1542 = vmul.u32 %v1537, %v1538
          %v1543 = vmul.u32 %v1537, %v1539
          %v1544 = vshll.u32 %v1541, 16
          %v1545 = vshrl.u32 %v1541, 16
          %v1546 = vshll.u32 %v1542, 16
          %v1547 = vshrl.u32 %v1542, 16
          %vm1548 = vc.u32 %v1540, %v1544
          %v1549 = vsel %vm1548, 1, 0
          %v1550 = vadd.s32 %v1540, %v1544
          %v1551 = vadd.s32 %v1543, %v1549
          %vm1552 = vc.u32 %v1550, %v1546
          %v1553 = vsel %vm1552, 1, 0
          %v1554 = vadd.s32 %v1550, %v1546
          %v1555 = vadd.s32 %v1551, %v1553
          %v1556 = vadd.s32 %v1555, %v1545
          %v1557 = vadd.s32 %v1556, %v1547
          %v1558 = vmul.u32 %v1513, %v1504
          %v1559 = vadd.s32 %v1535, %v1554
          %vm1560 = vc.u32 %v1535, %v1554
          %v1561 = vadd.s32 %v1557, 1
          %v1562 = vsel %vm1560, %v1561, %v1557
          %v1563 = vadd.s32 %v1558, %v1562
          %v1564 = vadd.s32 %v1563, 536870912
          %v1565 = vshrl.u32 %v1564, 30
          %v1566 = vshll.u32 %v1565, 30
          %v1567 = vsub.s32 %v1563, %v1566
          %vm1568 = vcmp.lt.s32.totalorder %v1567, 0
          %v1569 = vsub.s32 0, %v1567
          %v1570 = vsel %vm1568, %v1569, %v1567
          %v1571 = vclz %v1570
          %v1572 = vsub.s32 %v1571, 2
          %vm1573 = vcmp.gt.s32.totalorder 0, %v1572
          %v1574 = vsel %vm1573, 0, %v1572
          %v1575 = vsub.s32 32, %v1574
          %v1576 = vshll.u32 %v1567, %v1574
          %v1577 = vshrl.u32 %v1559, %v1575
          %v1578 = vor.u32 %v1576, %v1577
          %v1579 = vsub.s32 4294967266, %v1574
          %v1580 = vadd.s32 %v1579, 127
          %v1581 = vshll.u32 %v1580, 23
          %v1582 = vor.u32 4788187, %v1581
          %v1583 = vand.u32 2147483647, %v1582
          %v1585 = vcvt.s32.f32 %v1578
          %v1586 = vmul.f32 %v1585, %v1583
          %v1587 = vxor.u32 %v1586, 2147483648
          %v1588 = vsel %vm1467, %v1587, %v1586
          %v1589 = vsub.s32 4, %v1565
          %v1590 = vsel %vm1467, %v1589, %v1565
          %v1591 = vsel %vm1466, %v1000, %v1588
          %v1592 = vsel %vm1466, 0, %v1590
          %v1593 = vmul.f32 %v1591, %v1591
          %v1594 = vmul.f32 %v1593, -0.001358992
          %v1595 = vadd.f32 %v1594, 0.041655596
          %v1596 = vmul.f32 %v1593, %v1595
          %v1597 = vadd.f32 %v1596, -0.4999988
          %v1598 = vmul.f32 %v1593, %v1597
          %v1599 = vadd.f32 1.0, %v1598
          %v1600 = vmul.f32 %v1591, %v1591
          %v1601 = vmul.f32 %v1600, -0.00019511016
          %v1602 = vadd.f32 %v1601, 0.008332121
          %v1603 = vmul.f32 %v1600, %v1602
          %v1604 = vadd.f32 %v1603, -0.16666654
          %v1605 = vmul.f32 %v1600, %v1604
          %v1606 = vadd.f32 %v1605, 1.0
          %v1607 = vmul.f32 %v1606, %v1591
          %vm1608 = vweird.f32 %v1000
          %v1609 = vand.u32 %v1592, 3
          %vm1610 = vcmp.lt.s32.totalorder %v1609, 2
          %vm1611 = vcmp.eq.s32.totalorder %v1609, 0
          %v1612 = vxor.u32 %v1607, 2147483648
          %v1613 = vsel %vm1611, %v1599, %v1612
          %vm1614 = vcmp.eq.s32.totalorder %v1609, 2
          %v1615 = vxor.u32 %v1599, 2147483648
          %v1616 = vsel %vm1614, %v1615, %v1607
          %v1617 = vsel %vm1610, %v1613, %v1616
          %v1618 = vsel %vm1608, nan, %v1617
          %1621 = vrot.lane.b32.xlu0 %v1464, 16
          %v1622 = vpop.permute.xlu0 %1621
          %1623 = vrot.lane.b32.xlu0 %v1618, 16
          %v1624 = vpop.permute.xlu0 %1623
          %vm1627 = vcmask 130048
          %v1628 = vsel %vm1627, %v1155, %v1622
          %v1629 = vsel %vm1627, %v1310, %v1624
          %vm1630 = vcmask 261120
          %1631 = vst.msk [vmem:[#allocation2] sm:$0xff] %vm1630, %v1628
          %1632 = vst.msk [vmem:[#allocation2 + $0x8] sm:$0xff] %vm1630, %v1629
        $region124: #{tpu_custom_call.1} parent=119 // pred_fallthru
          _
        %v1633 = vld [vmem:[#allocation2] sm:$0xff]
        %v1634 = vld [vmem:[#allocation2 + $0x8] sm:$0xff]
        %v1635 = vpack.c.bf16 %v1634, %v1633
        %v1636 = vld [vmem:[%s911] sm:$0xf]
        %v1637 = vld [vmem:[%s911 + $0x4] sm:$0xf]
        %v1638 = vld [vmem:[%s911 + $0x8] sm:$0xf]
        %v1639 = vld [vmem:[%s911 + $0xc] sm:$0xf]
        %v1640 = vld [vmem:[%s914] sm:$0x1]
        %v1642 = vperm.slane %v1640, 0
        %v1648 = vunpack.c.l.b16 %v1636
        %v1649 = vunpack.c.l.b16 %v1637
        %v1650 = vunpack.c.l.b16 %v1638
        %v1651 = vunpack.c.l.b16 %v1639
        %v1652 = vpack.c.b16 %v1649, %v1648
        %v1653 = vpack.c.b16 %v1651, %v1650
        %vm1656 = vcmask 261120
        %v1658 = vsel %vm1656, %v1635, 0
        %1660 = vmatpush.bf16.msra.mxu0 0
        %1661 = vmatpush.bf16.msra.mxu0 0
        %1662 = vmatpush.bf16.msra.mxu0 0
        %1663 = vmatpush.bf16.msra.mxu0 0
        %1664 = vmatpush.bf16.msra.mxu0 0
        %1665 = vmatpush.bf16.msra.mxu0 0
        %1666 = vmatpush.bf16.msra.mxu0 %v1653
        %1667 = vmatpush.bf16.msra.mxu0 %v1652
        %1668 = vmatmul.bf16.gmra.mxu0 %v1658
        %v1669 = vpop.f32.mrf.mxu0
        %v1670 = vadd.f32 %v1642, %v1669
        %v1671 = vpop.f32.mrf.mxu0
        %v1672 = vadd.f32 %v1642, %v1671
        %1673 = vdwg.mxu0
        %v1674 = vld [vmem:[%s5] sm:$0xff]
        %v1675 = vld [vmem:[%s5 + $0x8] sm:$0xff]
        %v1676 = vpack.c.bf16 %v1672, %v1670
        %1678 = vrot.lane.b32.xlu0 %v1676, 96
        %v1679 = vpop.permute.xlu0 %1678
        %vm1680 = vcmask 64512
        %v1682 = vsel %vm1680, %v1676, 0
        %v1685 = vsel %vm1680, %v1679, 0
        %1687 = vmatpush.bf16.xpose.msra.mxu0 0
        %1688 = vmatpush.bf16.xpose.msra.mxu0 0
        %1689 = vmatpush.bf16.xpose.msra.mxu0 0
        %1690 = vmatpush.bf16.xpose.msra.mxu0 0
        %1691 = vmatpush.bf16.xpose.msra.mxu0 0
        %1692 = vmatpush.bf16.xpose.msra.mxu0 0
        %1693 = vmatpush.bf16.xpose.msra.mxu0 0
        %1694 = vmatpush.bf16.xpose.msra.mxu0 %v1685
        %1695 = vmatmul.bf16.gmra.mxu0 %v1682
        %v1696 = vpop.f32.mrf.mxu0
        %v1697 = vadd.f32 %v1674, %v1696
        %v1698 = vpop.f32.mrf.mxu0
        %v1699 = vadd.f32 %v1675, %v1698
        %1700 = vdwg.mxu0
        %vm1701 = vcmask 130048
        %v1702 = vsel %vm1701, %v1697, -inf
        %1703 = vmax.xlane.f32.xlu0 %v1702
        %v1704 = vpop.xlane.xlu0 %1703
        %v1705 = vsel %vm1701, %v1699, -inf
        %1706 = vmax.xlane.f32.xlu0 %v1705
        %v1707 = vpop.xlane.xlu0 %1706
        %v1708 = vsub.f32 %v1697, %v1704
        %v1709 = vsub.f32 %v1699, %v1707
        %v1710 = vmul.f32 %v1708, 1.442695
        %v1711 = vpow.pop %v1710
        %v1712 = vmul.f32 %v1709, 1.442695
        %v1713 = vpow.pop %v1712
        %v1714 = vsel %vm1701, %v1711, 0.0
        %1715 = vadd.xlane.f32.xlu0 %v1714
        %v1716 = vpop.xlane.xlu0 %1715
        %v1717 = vsel %vm1701, %v1713, 0.0
        %1718 = vadd.xlane.f32.xlu0 %v1717
        %v1719 = vpop.xlane.xlu0 %1718
        %v1720 = vrcp.pop %v1716
        %v1721 = vrcp.pop %v1719
        %v1722 = vmul.f32 %v1711, %v1720
        %v1723 = vmul.f32 %v1713, %v1721
        %v1724 = vpack.c.bf16 %v1723, %v1722
        %1725 = vrot.lane.b32.xlu0 %v1676, 64
        %v1726 = vpop.permute.xlu0 %1725
        %v1729 = vsel %vm1701, %v1724, 0
        %1731 = vmatpush.bf16.msra.mxu0 0
        %1732 = vmatpush.bf16.msra.mxu0 0
        %1733 = vmatpush.bf16.msra.mxu0 0
        %1734 = vmatpush.bf16.msra.mxu0 0
        %1735 = vmatpush.bf16.msra.mxu0 0
        %1736 = vmatpush.bf16.msra.mxu0 0
        %1737 = vmatpush.bf16.msra.mxu0 0
        %1738 = vmatpush.bf16.msra.mxu0 %v1726
        %1739 = vmatmul.bf16.gmra.mxu0 %v1729
        %v1740 = vpop.f32.mrf.mxu0
        %v1741 = vadd.f32 0.0, %v1740
        %v1742 = vpop.f32.mrf.mxu0
        %v1743 = vadd.f32 0.0, %v1742
        %1744 = vdwg.mxu0
        %1745 = vrot.lane.b32.xlu0 %v1676, 120
        %v1746 = vpop.permute.xlu0 %1745
        %1747 = vrot.lane.b32.xlu0 %v1676, 88
        %v1748 = vpop.permute.xlu0 %1747
        %v1750 = vsel %vm1680, %v1746, 0
        %v1753 = vsel %vm1680, %v1748, 0
        %1755 = vmatpush.bf16.xpose.msra.mxu0 0
        %1756 = vmatpush.bf16.xpose.msra.mxu0 0
        %1757 = vmatpush.bf16.xpose.msra.mxu0 0
        %1758 = vmatpush.bf16.xpose.msra.mxu0 0
        %1759 = vmatpush.bf16.xpose.msra.mxu0 0
        %1760 = vmatpush.bf16.xpose.msra.mxu0 0
        %1761 = vmatpush.bf16.xpose.msra.mxu0 0
        %1762 = vmatpush.bf16.xpose.msra.mxu0 %v1753
        %1763 = vmatmul.bf16.gmra.mxu0 %v1750
        %v1764 = vpop.f32.mrf.mxu0
        %v1765 = vadd.f32 %v1674, %v1764
        %v1766 = vpop.f32.mrf.mxu0
        %v1767 = vadd.f32 %v1675, %v1766
        %1768 = vdwg.mxu0
        %v1769 = vsel %vm1701, %v1765, -inf
        %1770 = vmax.xlane.f32.xlu0 %v1769
        %v1771 = vpop.xlane.xlu0 %1770
        %v1772 = vsel %vm1701, %v1767, -inf
        %1773 = vmax.xlane.f32.xlu0 %v1772
        %v1774 = vpop.xlane.xlu0 %1773
        %v1775 = vsub.f32 %v1765, %v1771
        %v1776 = vsub.f32 %v1767, %v1774
        %v1777 = vmul.f32 %v1775, 1.442695
        %v1778 = vpow.pop %v1777
        %v1779 = vmul.f32 %v1776, 1.442695
        %v1780 = vpow.pop %v1779
        %v1781 = vsel %vm1701, %v1778, 0.0
        %1782 = vadd.xlane.f32.xlu0 %v1781
        %v1783 = vpop.xlane.xlu0 %1782
        %v1784 = vsel %vm1701, %v1780, 0.0
        %1785 = vadd.xlane.f32.xlu0 %v1784
        %v1786 = vpop.xlane.xlu0 %1785
        %v1787 = vrcp.pop %v1783
        %v1788 = vrcp.pop %v1786
        %v1789 = vmul.f32 %v1778, %v1787
        %v1790 = vmul.f32 %v1780, %v1788
        %v1791 = vpack.c.bf16 %v1790, %v1789
        %1792 = vrot.lane.b32.xlu0 %v1676, 56
        %v1793 = vpop.permute.xlu0 %1792
        %v1796 = vsel %vm1701, %v1791, 0
        %1798 = vmatpush.bf16.msra.mxu0 0
        %1799 = vmatpush.bf16.msra.mxu0 0
        %1800 = vmatpush.bf16.msra.mxu0 0
        %1801 = vmatpush.bf16.msra.mxu0 0
        %1802 = vmatpush.bf16.msra.mxu0 0
        %1803 = vmatpush.bf16.msra.mxu0 0
        %1804 = vmatpush.bf16.msra.mxu0 0
        %1805 = vmatpush.bf16.msra.mxu0 %v1793
        %1806 = vmatmul.bf16.gmra.mxu0 %v1796
        %v1807 = vpop.f32.mrf.mxu0
        %v1808 = vadd.f32 0.0, %v1807
        %v1809 = vpop.f32.mrf.mxu0
        %v1810 = vadd.f32 0.0, %v1809
        %1811 = vdwg.mxu0
        %1812 = vrot.lane.b32.xlu0 %v1676, 112
        %v1813 = vpop.permute.xlu0 %1812
        %1814 = vrot.lane.b32.xlu0 %v1676, 80
        %v1815 = vpop.permute.xlu0 %1814
        %v1817 = vsel %vm1680, %v1813, 0
        %v1820 = vsel %vm1680, %v1815, 0
        %1822 = vmatpush.bf16.xpose.msra.mxu0 0
        %1823 = vmatpush.bf16.xpose.msra.mxu0 0
        %1824 = vmatpush.bf16.xpose.msra.mxu0 0
        %1825 = vmatpush.bf16.xpose.msra.mxu0 0
        %1826 = vmatpush.bf16.xpose.msra.mxu0 0
        %1827 = vmatpush.bf16.xpose.msra.mxu0 0
        %1828 = vmatpush.bf16.xpose.msra.mxu0 0
        %1829 = vmatpush.bf16.xpose.msra.mxu0 %v1820
        %1830 = vmatmul.bf16.gmra.mxu0 %v1817
        %v1831 = vpop.f32.mrf.mxu0
        %v1832 = vadd.f32 %v1674, %v1831
        %v1833 = vpop.f32.mrf.mxu0
        %v1834 = vadd.f32 %v1675, %v1833
        %1835 = vdwg.mxu0
        %v1836 = vsel %vm1701, %v1832, -inf
        %1837 = vmax.xlane.f32.xlu0 %v1836
        %v1838 = vpop.xlane.xlu0 %1837
        %v1839 = vsel %vm1701, %v1834, -inf
        %1840 = vmax.xlane.f32.xlu0 %v1839
        %v1841 = vpop.xlane.xlu0 %1840
        %v1842 = vsub.f32 %v1832, %v1838
        %v1843 = vsub.f32 %v1834, %v1841
        %v1844 = vmul.f32 %v1842, 1.442695
        %v1845 = vpow.pop %v1844
        %v1846 = vmul.f32 %v1843, 1.442695
        %v1847 = vpow.pop %v1846
        %v1848 = vsel %vm1701, %v1845, 0.0
        %1849 = vadd.xlane.f32.xlu0 %v1848
        %v1850 = vpop.xlane.xlu0 %1849
        %v1851 = vsel %vm1701, %v1847, 0.0
        %1852 = vadd.xlane.f32.xlu0 %v1851
        %v1853 = vpop.xlane.xlu0 %1852
        %v1854 = vrcp.pop %v1850
        %v1855 = vrcp.pop %v1853
        %v1856 = vmul.f32 %v1845, %v1854
        %v1857 = vmul.f32 %v1847, %v1855
        %v1858 = vpack.c.bf16 %v1857, %v1856
        %1859 = vrot.lane.b32.xlu0 %v1676, 48
        %v1860 = vpop.permute.xlu0 %1859
        %v1863 = vsel %vm1701, %v1858, 0
        %1865 = vmatpush.bf16.msra.mxu0 0
        %1866 = vmatpush.bf16.msra.mxu0 0
        %1867 = vmatpush.bf16.msra.mxu0 0
        %1868 = vmatpush.bf16.msra.mxu0 0
        %1869 = vmatpush.bf16.msra.mxu0 0
        %1870 = vmatpush.bf16.msra.mxu0 0
        %1871 = vmatpush.bf16.msra.mxu0 0
        %1872 = vmatpush.bf16.msra.mxu0 %v1860
        %1873 = vmatmul.bf16.gmra.mxu0 %v1863
        %v1874 = vpop.f32.mrf.mxu0
        %v1875 = vadd.f32 0.0, %v1874
        %v1876 = vpop.f32.mrf.mxu0
        %v1877 = vadd.f32 0.0, %v1876
        %1878 = vdwg.mxu0
        %1879 = vrot.lane.b32.xlu0 %v1676, 104
        %v1880 = vpop.permute.xlu0 %1879
        %1881 = vrot.lane.b32.xlu0 %v1676, 72
        %v1882 = vpop.permute.xlu0 %1881
        %v1884 = vsel %vm1680, %v1880, 0
        %v1887 = vsel %vm1680, %v1882, 0
        %1889 = vmatpush.bf16.xpose.msra.mxu0 0
        %1890 = vmatpush.bf16.xpose.msra.mxu0 0
        %1891 = vmatpush.bf16.xpose.msra.mxu0 0
        %1892 = vmatpush.bf16.xpose.msra.mxu0 0
        %1893 = vmatpush.bf16.xpose.msra.mxu0 0
        %1894 = vmatpush.bf16.xpose.msra.mxu0 0
        %1895 = vmatpush.bf16.xpose.msra.mxu0 0
        %1896 = vmatpush.bf16.xpose.msra.mxu0 %v1887
        %1897 = vmatmul.bf16.gmra.mxu0 %v1884
        %v1898 = vpop.f32.mrf.mxu0
        %v1899 = vadd.f32 %v1674, %v1898
        %v1900 = vpop.f32.mrf.mxu0
        %v1901 = vadd.f32 %v1675, %v1900
        %1902 = vdwg.mxu0
        %v1903 = vsel %vm1701, %v1899, -inf
        %1904 = vmax.xlane.f32.xlu0 %v1903
        %v1905 = vpop.xlane.xlu0 %1904
        %v1906 = vsel %vm1701, %v1901, -inf
        %1907 = vmax.xlane.f32.xlu0 %v1906
        %v1908 = vpop.xlane.xlu0 %1907
        %v1909 = vsub.f32 %v1899, %v1905
        %v1910 = vsub.f32 %v1901, %v1908
        %v1911 = vmul.f32 %v1909, 1.442695
        %v1912 = vpow.pop %v1911
        %v1913 = vmul.f32 %v1910, 1.442695
        %v1914 = vpow.pop %v1913
        %v1915 = vsel %vm1701, %v1912, 0.0
        %1916 = vadd.xlane.f32.xlu0 %v1915
        %v1917 = vpop.xlane.xlu0 %1916
        %v1918 = vsel %vm1701, %v1914, 0.0
        %1919 = vadd.xlane.f32.xlu0 %v1918
        %v1920 = vpop.xlane.xlu0 %1919
        %v1921 = vrcp.pop %v1917
        %v1922 = vrcp.pop %v1920
        %v1923 = vmul.f32 %v1912, %v1921
        %v1924 = vmul.f32 %v1914, %v1922
        %v1925 = vpack.c.bf16 %v1924, %v1923
        %1926 = vrot.lane.b32.xlu0 %v1676, 40
        %v1927 = vpop.permute.xlu0 %1926
        %v1930 = vsel %vm1701, %v1925, 0
        %1932 = vmatpush.bf16.msra.mxu0 0
        %1933 = vmatpush.bf16.msra.mxu0 0
        %1934 = vmatpush.bf16.msra.mxu0 0
        %1935 = vmatpush.bf16.msra.mxu0 0
        %1936 = vmatpush.bf16.msra.mxu0 0
        %1937 = vmatpush.bf16.msra.mxu0 0
        %1938 = vmatpush.bf16.msra.mxu0 0
        %1939 = vmatpush.bf16.msra.mxu0 %v1927
        %1940 = vmatmul.bf16.gmra.mxu0 %v1930
        %v1941 = vpop.f32.mrf.mxu0
        %v1942 = vadd.f32 0.0, %v1941
        %v1943 = vpop.f32.mrf.mxu0
        %v1944 = vadd.f32 0.0, %v1943
        %1945 = vdwg.mxu0
        %1948 = vrot.lane.b32.xlu0 %v1808, 8
        %v1949 = vpop.permute.xlu0 %1948
        %1950 = vrot.lane.b32.xlu0 %v1810, 8
        %v1951 = vpop.permute.xlu0 %1950
        %1956 = vrot.lane.b32.xlu0 %v1875, 16
        %v1957 = vpop.permute.xlu0 %1956
        %1958 = vrot.lane.b32.xlu0 %v1877, 16
        %v1959 = vpop.permute.xlu0 %1958
        %1964 = vrot.lane.b32.xlu0 %v1942, 24
        %v1965 = vpop.permute.xlu0 %1964
        %1966 = vrot.lane.b32.xlu0 %v1944, 24
        %v1967 = vpop.permute.xlu0 %1966
        %v1970 = vsel %vm1680, %v1741, %v1949
        %v1971 = vsel %vm1680, %v1743, %v1951
        %v1972 = vsel %vm1701, %v1970, %v1957
        %v1973 = vsel %vm1701, %v1971, %v1959
        %vm1974 = vcmask 195584
        %v1975 = vsel %vm1974, %v1972, %v1965
        %v1976 = vsel %vm1974, %v1973, %v1967
        %v1977 = vpack.c.bf16 %v1976, %v1975
        %v1978 = vld [vmem:[%s919] sm:$0xf]
        %v1979 = vld [vmem:[%s919 + $0x4] sm:$0xf]
        %v1980 = vld [vmem:[%s919 + $0x8] sm:$0xf]
        %v1981 = vld [vmem:[%s919 + $0xc] sm:$0xf]
        %v1982 = vld [vmem:[%s922] sm:$0x1]
        %v1984 = vperm.slane %v1982, 0
        %v1990 = vunpack.c.l.b16 %v1978
        %v1991 = vunpack.c.l.b16 %v1979
        %v1992 = vunpack.c.l.b16 %v1980
        %v1993 = vunpack.c.l.b16 %v1981
        %v1994 = vpack.c.b16 %v1991, %v1990
        %v1995 = vpack.c.b16 %v1993, %v1992
        %v1999 = vsel %vm1656, %v1977, 0
        %2001 = vmatpush.bf16.msra.mxu0 0
        %2002 = vmatpush.bf16.msra.mxu0 0
        %2003 = vmatpush.bf16.msra.mxu0 0
        %2004 = vmatpush.bf16.msra.mxu0 0
        %2005 = vmatpush.bf16.msra.mxu0 0
        %2006 = vmatpush.bf16.msra.mxu0 0
        %2007 = vmatpush.bf16.msra.mxu0 %v1995
        %2008 = vmatpush.bf16.msra.mxu0 %v1994
        %2009 = vmatmul.bf16.gmra.mxu0 %v1999
        %v2010 = vpop.f32.mrf.mxu0
        %v2011 = vadd.f32 %v1984, %v2010
        %v2012 = vpop.f32.mrf.mxu0
        %v2013 = vadd.f32 %v1984, %v2012
        %2014 = vdwg.mxu0
        %v2015 = vadd.f32 %v1633, %v2011
        %v2016 = vadd.f32 %v1634, %v2013
        %v2017 = vld [vmem:[%s925] sm:$0x1]
        %v2018 = vld [vmem:[%s928] sm:$0x1]
        %v2019 = vsel %vm1656, %v2015, 0.0
        %2020 = vadd.xlane.f32.xlu0 %v2019
        %v2021 = vpop.xlane.xlu0 %2020
        %v2022 = vsel %vm1656, %v2016, 0.0
        %2023 = vadd.xlane.f32.xlu0 %v2022
        %v2024 = vpop.xlane.xlu0 %2023
        %v2025 = vrcp.pop 32.0
        %v2026 = vmul.f32 32.0, %v2025
        %v2027 = vsub.f32 1.0, %v2026
        %v2028 = vmul.f32 %v2025, %v2027
        %v2029 = vadd.f32 %v2025, %v2028
        %vm2030 = vweird.f32 %v2025
        %v2031 = vsel %vm2030, %v2025, %v2029
        %v2032 = vmul.f32 %v2021, %v2031
        %v2033 = vmul.f32 %v2024, %v2031
        %v2034 = vsub.f32 %v2015, %v2032
        %v2035 = vsub.f32 %v2016, %v2033
        %v2036 = vmul.f32 %v2034, %v2034
        %v2037 = vmul.f32 %v2035, %v2035
        %v2038 = vsel %vm1656, %v2036, 0.0
        %2039 = vadd.xlane.f32.xlu0 %v2038
        %v2040 = vpop.xlane.xlu0 %2039
        %v2041 = vsel %vm1656, %v2037, 0.0
        %2042 = vadd.xlane.f32.xlu0 %v2041
        %v2043 = vpop.xlane.xlu0 %2042
        %v2044 = vmul.f32 %v2040, %v2031
        %v2045 = vmul.f32 %v2043, %v2031
        %v2046 = vadd.f32 %v2044, 1e-05
        %v2047 = vadd.f32 %v2045, 1e-05
        %v2048 = vrsqrt.pop %v2046
        %v2049 = vmul.f32 %v2048, %v2046
        %v2050 = vmul.f32 %v2049, %v2048
        %v2051 = vmul.f32 0.5, %v2050
        %v2052 = vsub.f32 1.5, %v2051
        %v2053 = vmul.f32 %v2048, %v2052
        %vm2054 = vweird.f32 %v2046
        %vm2055 = vweird.f32 %v2048
        %vm2056 = vmor %vm2054, %vm2055
        %v2057 = vsel %vm2056, %v2048, %v2053
        %v2058 = vrsqrt.pop %v2047
        %v2059 = vmul.f32 %v2058, %v2047
        %v2060 = vmul.f32 %v2059, %v2058
        %v2061 = vmul.f32 0.5, %v2060
        %v2062 = vsub.f32 1.5, %v2061
        %v2063 = vmul.f32 %v2058, %v2062
        %vm2064 = vweird.f32 %v2047
        %vm2065 = vweird.f32 %v2058
        %vm2066 = vmor %vm2064, %vm2065
        %v2067 = vsel %vm2066, %v2058, %v2063
        %v2068 = vmul.f32 %v2034, %v2057
        %v2069 = vmul.f32 %v2035, %v2067
        %v2071 = vperm.slane %v2017, 0
        %v2073 = vmul.f32 %v2068, %v2071
        %v2074 = vmul.f32 %v2069, %v2071
        %v2076 = vperm.slane %v2018, 0
        %v2078 = vadd.f32 %v2073, %v2076
        %v2079 = vadd.f32 %v2074, %v2076
        %v2080 = vpack.c.bf16 %v2079, %v2078
        %v2081 = vld [vmem:[%s933] sm:$0xff]
        %v2082 = vld [vmem:[%s933 + $0x8] sm:$0xff]
        %v2083 = vld [vmem:[%s933 + $0x10] sm:$0xff]
        %v2084 = vld [vmem:[%s933 + $0x18] sm:$0xff]
        %v2085 = vld [vmem:[%s933 + $0x20] sm:$0xff]
        %v2086 = vld [vmem:[%s933 + $0x28] sm:$0xff]
        %v2087 = vld [vmem:[%s933 + $0x30] sm:$0xff]
        %v2088 = vld [vmem:[%s933 + $0x38] sm:$0xff]
        %v2089 = vld [vmem:[%s933 + $0x40] sm:$0xff]
        %v2090 = vld [vmem:[%s933 + $0x48] sm:$0xff]
        %v2091 = vld [vmem:[%s933 + $0x50] sm:$0xff]
        %v2092 = vld [vmem:[%s933 + $0x58] sm:$0xff]
        %v2093 = vld [vmem:[%s933 + $0x60] sm:$0xff]
        %v2094 = vld [vmem:[%s933 + $0x68] sm:$0xff]
        %v2095 = vld [vmem:[%s933 + $0x70] sm:$0xff]
        %v2096 = vld [vmem:[%s933 + $0x78] sm:$0xff]
        %v2097 = vld [vmem:[%s933 + $0x80] sm:$0xff]
        %v2098 = vld [vmem:[%s933 + $0x88] sm:$0xff]
        %v2099 = vld [vmem:[%s933 + $0x90] sm:$0xff]
        %v2100 = vld [vmem:[%s933 + $0x98] sm:$0xff]
        %v2101 = vld [vmem:[%s933 + $0xa0] sm:$0xff]
        %v2102 = vld [vmem:[%s933 + $0xa8] sm:$0xff]
        %v2103 = vld [vmem:[%s933 + $0xb0] sm:$0xff]
        %v2104 = vld [vmem:[%s933 + $0xb8] sm:$0xff]
        %v2105 = vld [vmem:[%s933 + $0xc0] sm:$0xff]
        %v2106 = vld [vmem:[%s933 + $0xc8] sm:$0xff]
        %v2107 = vld [vmem:[%s933 + $0xd0] sm:$0xff]
        %v2108 = vld [vmem:[%s933 + $0xd8] sm:$0xff]
        %v2109 = vld [vmem:[%s933 + $0xe0] sm:$0xff]
        %v2110 = vld [vmem:[%s933 + $0xe8] sm:$0xff]
        %v2111 = vld [vmem:[%s933 + $0xf0] sm:$0xff]
        %v2112 = vld [vmem:[%s933 + $0xf8] sm:$0xff]
        %v2113 = vld [vmem:[%s937] sm:$0xff]
        %v2114 = vld [vmem:[%s937 + $0x8] sm:$0xff]
        %v2117 = vperm.slane %v2113, 0
        %v2118 = vperm.slane %v2113, 1
        %v2119 = vperm.slane %v2113, 2
        %v2120 = vperm.slane %v2113, 3
        %v2121 = vperm.slane %v2113, 4
        %v2122 = vperm.slane %v2113, 5
        %v2123 = vperm.slane %v2113, 6
        %v2124 = vperm.slane %v2113, 7
        %v2125 = vperm.slane %v2114, 0
        %v2126 = vperm.slane %v2114, 1
        %v2127 = vperm.slane %v2114, 2
        %v2128 = vperm.slane %v2114, 3
        %v2129 = vperm.slane %v2114, 4
        %v2130 = vperm.slane %v2114, 5
        %v2131 = vperm.slane %v2114, 6
        %v2132 = vperm.slane %v2114, 7
        %v2181 = vunpack.c.l.b16 %v2081
        %v2182 = vunpack.c.h.b16 %v2081
        %v2183 = vunpack.c.l.b16 %v2082
        %v2184 = vunpack.c.h.b16 %v2082
        %v2185 = vunpack.c.l.b16 %v2083
        %v2186 = vunpack.c.h.b16 %v2083
        %v2187 = vunpack.c.l.b16 %v2084
        %v2188 = vunpack.c.h.b16 %v2084
        %v2189 = vunpack.c.l.b16 %v2085
        %v2190 = vunpack.c.h.b16 %v2085
        %v2191 = vunpack.c.l.b16 %v2086
        %v2192 = vunpack.c.h.b16 %v2086
        %v2193 = vunpack.c.l.b16 %v2087
        %v2194 = vunpack.c.h.b16 %v2087
        %v2195 = vunpack.c.l.b16 %v2088
        %v2196 = vunpack.c.h.b16 %v2088
        %v2197 = vunpack.c.l.b16 %v2089
        %v2198 = vunpack.c.h.b16 %v2089
        %v2199 = vunpack.c.l.b16 %v2090
        %v2200 = vunpack.c.h.b16 %v2090
        %v2201 = vunpack.c.l.b16 %v2091
        %v2202 = vunpack.c.h.b16 %v2091
        %v2203 = vunpack.c.l.b16 %v2092
        %v2204 = vunpack.c.h.b16 %v2092
        %v2205 = vunpack.c.l.b16 %v2093
        %v2206 = vunpack.c.h.b16 %v2093
        %v2207 = vunpack.c.l.b16 %v2094
        %v2208 = vunpack.c.h.b16 %v2094
        %v2209 = vunpack.c.l.b16 %v2095
        %v2210 = vunpack.c.h.b16 %v2095
        %v2211 = vunpack.c.l.b16 %v2096
        %v2212 = vunpack.c.h.b16 %v2096
        %v2213 = vunpack.c.l.b16 %v2097
        %v2214 = vunpack.c.h.b16 %v2097
        %v2215 = vunpack.c.l.b16 %v2098
        %v2216 = vunpack.c.h.b16 %v2098
        %v2217 = vunpack.c.l.b16 %v2099
        %v2218 = vunpack.c.h.b16 %v2099
        %v2219 = vunpack.c.l.b16 %v2100
        %v2220 = vunpack.c.h.b16 %v2100
        %v2221 = vunpack.c.l.b16 %v2101
        %v2222 = vunpack.c.h.b16 %v2101
        %v2223 = vunpack.c.l.b16 %v2102
        %v2224 = vunpack.c.h.b16 %v2102
        %v2225 = vunpack.c.l.b16 %v2103
        %v2226 = vunpack.c.h.b16 %v2103
        %v2227 = vunpack.c.l.b16 %v2104
        %v2228 = vunpack.c.h.b16 %v2104
        %v2229 = vunpack.c.l.b16 %v2105
        %v2230 = vunpack.c.h.b16 %v2105
        %v2231 = vunpack.c.l.b16 %v2106
        %v2232 = vunpack.c.h.b16 %v2106
        %v2233 = vunpack.c.l.b16 %v2107
        %v2234 = vunpack.c.h.b16 %v2107
        %v2235 = vunpack.c.l.b16 %v2108
        %v2236 = vunpack.c.h.b16 %v2108
        %v2237 = vunpack.c.l.b16 %v2109
        %v2238 = vunpack.c.h.b16 %v2109
        %v2239 = vunpack.c.l.b16 %v2110
        %v2240 = vunpack.c.h.b16 %v2110
        %v2241 = vunpack.c.l.b16 %v2111
        %v2242 = vunpack.c.h.b16 %v2111
        %v2243 = vunpack.c.l.b16 %v2112
        %v2244 = vunpack.c.h.b16 %v2112
        %v2245 = vpack.c.b16 %v2197, %v2181
        %v2246 = vpack.c.b16 %v2198, %v2182
        %v2247 = vpack.c.b16 %v2199, %v2183
        %v2248 = vpack.c.b16 %v2200, %v2184
        %v2249 = vpack.c.b16 %v2201, %v2185
        %v2250 = vpack.c.b16 %v2202, %v2186
        %v2251 = vpack.c.b16 %v2203, %v2187
        %v2252 = vpack.c.b16 %v2204, %v2188
        %v2253 = vpack.c.b16 %v2205, %v2189
        %v2254 = vpack.c.b16 %v2206, %v2190
        %v2255 = vpack.c.b16 %v2207, %v2191
        %v2256 = vpack.c.b16 %v2208, %v2192
        %v2257 = vpack.c.b16 %v2209, %v2193
        %v2258 = vpack.c.b16 %v2210, %v2194
        %v2259 = vpack.c.b16 %v2211, %v2195
        %v2260 = vpack.c.b16 %v2212, %v2196
        %v2261 = vpack.c.b16 %v2229, %v2213
        %v2262 = vpack.c.b16 %v2230, %v2214
        %v2263 = vpack.c.b16 %v2231, %v2215
        %v2264 = vpack.c.b16 %v2232, %v2216
        %v2265 = vpack.c.b16 %v2233, %v2217
        %v2266 = vpack.c.b16 %v2234, %v2218
        %v2267 = vpack.c.b16 %v2235, %v2219
        %v2268 = vpack.c.b16 %v2236, %v2220
        %v2269 = vpack.c.b16 %v2237, %v2221
        %v2270 = vpack.c.b16 %v2238, %v2222
        %v2271 = vpack.c.b16 %v2239, %v2223
        %v2272 = vpack.c.b16 %v2240, %v2224
        %v2273 = vpack.c.b16 %v2241, %v2225
        %v2274 = vpack.c.b16 %v2242, %v2226
        %v2275 = vpack.c.b16 %v2243, %v2227
        %v2276 = vpack.c.b16 %v2244, %v2228
        %v2310 = vsel %vm1656, %v2080, 0
        %2312 = vmatpush.bf16.msra.mxu0 0
        %2313 = vmatpush.bf16.msra.mxu0 0
        %2314 = vmatpush.bf16.msra.mxu0 0
        %2315 = vmatpush.bf16.msra.mxu0 0
        %2316 = vmatpush.bf16.msra.mxu0 0
        %2317 = vmatpush.bf16.msra.mxu0 0
        %2318 = vmatpush.bf16.msra.mxu0 %v2261
        %2319 = vmatpush.bf16.msra.mxu0 %v2245
        %2320 = vmatmul.bf16.gmra.mxu0 %v2310
        %v2321 = vpop.f32.mrf.mxu0
        %v2322 = vadd.f32 %v2117, %v2321
        %v2323 = vpop.f32.mrf.mxu0
        %v2324 = vadd.f32 %v2117, %v2323
        %2325 = vdwg.mxu0
        %2326 = vmatpush.bf16.msra.mxu0 0
        %2327 = vmatpush.bf16.msra.mxu0 0
        %2328 = vmatpush.bf16.msra.mxu0 0
        %2329 = vmatpush.bf16.msra.mxu0 0
        %2330 = vmatpush.bf16.msra.mxu0 0
        %2331 = vmatpush.bf16.msra.mxu0 0
        %2332 = vmatpush.bf16.msra.mxu0 %v2262
        %2333 = vmatpush.bf16.msra.mxu0 %v2246
        %2334 = vmatmul.bf16.gmra.mxu0 %v2310
        %v2335 = vpop.f32.mrf.mxu0
        %v2336 = vadd.f32 %v2118, %v2335
        %v2337 = vpop.f32.mrf.mxu0
        %v2338 = vadd.f32 %v2118, %v2337
        %2339 = vdwg.mxu0
        %2340 = vmatpush.bf16.msra.mxu0 0
        %2341 = vmatpush.bf16.msra.mxu0 0
        %2342 = vmatpush.bf16.msra.mxu0 0
        %2343 = vmatpush.bf16.msra.mxu0 0
        %2344 = vmatpush.bf16.msra.mxu0 0
        %2345 = vmatpush.bf16.msra.mxu0 0
        %2346 = vmatpush.bf16.msra.mxu0 %v2263
        %2347 = vmatpush.bf16.msra.mxu0 %v2247
        %2348 = vmatmul.bf16.gmra.mxu0 %v2310
        %v2349 = vpop.f32.mrf.mxu0
        %v2350 = vadd.f32 %v2119, %v2349
        %v2351 = vpop.f32.mrf.mxu0
        %v2352 = vadd.f32 %v2119, %v2351
        %2353 = vdwg.mxu0
        %2354 = vmatpush.bf16.msra.mxu0 0
        %2355 = vmatpush.bf16.msra.mxu0 0
        %2356 = vmatpush.bf16.msra.mxu0 0
        %2357 = vmatpush.bf16.msra.mxu0 0
        %2358 = vmatpush.bf16.msra.mxu0 0
        %2359 = vmatpush.bf16.msra.mxu0 0
        %2360 = vmatpush.bf16.msra.mxu0 %v2264
        %2361 = vmatpush.bf16.msra.mxu0 %v2248
        %2362 = vmatmul.bf16.gmra.mxu0 %v2310
        %v2363 = vpop.f32.mrf.mxu0
        %v2364 = vadd.f32 %v2120, %v2363
        %v2365 = vpop.f32.mrf.mxu0
        %v2366 = vadd.f32 %v2120, %v2365
        %2367 = vdwg.mxu0
        %2368 = vmatpush.bf16.msra.mxu0 0
        %2369 = vmatpush.bf16.msra.mxu0 0
        %2370 = vmatpush.bf16.msra.mxu0 0
        %2371 = vmatpush.bf16.msra.mxu0 0
        %2372 = vmatpush.bf16.msra.mxu0 0
        %2373 = vmatpush.bf16.msra.mxu0 0
        %2374 = vmatpush.bf16.msra.mxu0 %v2265
        %2375 = vmatpush.bf16.msra.mxu0 %v2249
        %2376 = vmatmul.bf16.gmra.mxu0 %v2310
        %v2377 = vpop.f32.mrf.mxu0
        %v2378 = vadd.f32 %v2121, %v2377
        %v2379 = vpop.f32.mrf.mxu0
        %v2380 = vadd.f32 %v2121, %v2379
        %2381 = vdwg.mxu0
        %2382 = vmatpush.bf16.msra.mxu0 0
        %2383 = vmatpush.bf16.msra.mxu0 0
        %2384 = vmatpush.bf16.msra.mxu0 0
        %2385 = vmatpush.bf16.msra.mxu0 0
        %2386 = vmatpush.bf16.msra.mxu0 0
        %2387 = vmatpush.bf16.msra.mxu0 0
        %2388 = vmatpush.bf16.msra.mxu0 %v2266
        %2389 = vmatpush.bf16.msra.mxu0 %v2250
        %2390 = vmatmul.bf16.gmra.mxu0 %v2310
        %v2391 = vpop.f32.mrf.mxu0
        %v2392 = vadd.f32 %v2122, %v2391
        %v2393 = vpop.f32.mrf.mxu0
        %v2394 = vadd.f32 %v2122, %v2393
        %2395 = vdwg.mxu0
        %2396 = vmatpush.bf16.msra.mxu0 0
        %2397 = vmatpush.bf16.msra.mxu0 0
        %2398 = vmatpush.bf16.msra.mxu0 0
        %2399 = vmatpush.bf16.msra.mxu0 0
        %2400 = vmatpush.bf16.msra.mxu0 0
        %2401 = vmatpush.bf16.msra.mxu0 0
        %2402 = vmatpush.bf16.msra.mxu0 %v2267
        %2403 = vmatpush.bf16.msra.mxu0 %v2251
        %2404 = vmatmul.bf16.gmra.mxu0 %v2310
        %v2405 = vpop.f32.mrf.mxu0
        %v2406 = vadd.f32 %v2123, %v2405
        %v2407 = vpop.f32.mrf.mxu0
        %v2408 = vadd.f32 %v2123, %v2407
        %2409 = vdwg.mxu0
        %2410 = vmatpush.bf16.msra.mxu0 0
        %2411 = vmatpush.bf16.msra.mxu0 0
        %2412 = vmatpush.bf16.msra.mxu0 0
        %2413 = vmatpush.bf16.msra.mxu0 0
        %2414 = vmatpush.bf16.msra.mxu0 0
        %2415 = vmatpush.bf16.msra.mxu0 0
        %2416 = vmatpush.bf16.msra.mxu0 %v2268
        %2417 = vmatpush.bf16.msra.mxu0 %v2252
        %2418 = vmatmul.bf16.gmra.mxu0 %v2310
        %v2419 = vpop.f32.mrf.mxu0
        %v2420 = vadd.f32 %v2124, %v2419
        %v2421 = vpop.f32.mrf.mxu0
        %v2422 = vadd.f32 %v2124, %v2421
        %2423 = vdwg.mxu0
        %2424 = vmatpush.bf16.msra.mxu0 0
        %2425 = vmatpush.bf16.msra.mxu0 0
        %2426 = vmatpush.bf16.msra.mxu0 0
        %2427 = vmatpush.bf16.msra.mxu0 0
        %2428 = vmatpush.bf16.msra.mxu0 0
        %2429 = vmatpush.bf16.msra.mxu0 0
        %2430 = vmatpush.bf16.msra.mxu0 %v2269
        %2431 = vmatpush.bf16.msra.mxu0 %v2253
        %2432 = vmatmul.bf16.gmra.mxu0 %v2310
        %v2433 = vpop.f32.mrf.mxu0
        %v2434 = vadd.f32 %v2125, %v2433
        %v2435 = vpop.f32.mrf.mxu0
        %v2436 = vadd.f32 %v2125, %v2435
        %2437 = vdwg.mxu0
        %2438 = vmatpush.bf16.msra.mxu0 0
        %2439 = vmatpush.bf16.msra.mxu0 0
        %2440 = vmatpush.bf16.msra.mxu0 0
        %2441 = vmatpush.bf16.msra.mxu0 0
        %2442 = vmatpush.bf16.msra.mxu0 0
        %2443 = vmatpush.bf16.msra.mxu0 0
        %2444 = vmatpush.bf16.msra.mxu0 %v2270
        %2445 = vmatpush.bf16.msra.mxu0 %v2254
        %2446 = vmatmul.bf16.gmra.mxu0 %v2310
        %v2447 = vpop.f32.mrf.mxu0
        %v2448 = vadd.f32 %v2126, %v2447
        %v2449 = vpop.f32.mrf.mxu0
        %v2450 = vadd.f32 %v2126, %v2449
        %2451 = vdwg.mxu0
        %2452 = vmatpush.bf16.msra.mxu0 0
        %2453 = vmatpush.bf16.msra.mxu0 0
        %2454 = vmatpush.bf16.msra.mxu0 0
        %2455 = vmatpush.bf16.msra.mxu0 0
        %2456 = vmatpush.bf16.msra.mxu0 0
        %2457 = vmatpush.bf16.msra.mxu0 0
        %2458 = vmatpush.bf16.msra.mxu0 %v2271
        %2459 = vmatpush.bf16.msra.mxu0 %v2255
        %2460 = vmatmul.bf16.gmra.mxu0 %v2310
        %v2461 = vpop.f32.mrf.mxu0
        %v2462 = vadd.f32 %v2127, %v2461
        %v2463 = vpop.f32.mrf.mxu0
        %v2464 = vadd.f32 %v2127, %v2463
        %2465 = vdwg.mxu0
        %2466 = vmatpush.bf16.msra.mxu0 0
        %2467 = vmatpush.bf16.msra.mxu0 0
        %2468 = vmatpush.bf16.msra.mxu0 0
        %2469 = vmatpush.bf16.msra.mxu0 0
        %2470 = vmatpush.bf16.msra.mxu0 0
        %2471 = vmatpush.bf16.msra.mxu0 0
        %2472 = vmatpush.bf16.msra.mxu0 %v2272
        %2473 = vmatpush.bf16.msra.mxu0 %v2256
        %2474 = vmatmul.bf16.gmra.mxu0 %v2310
        %v2475 = vpop.f32.mrf.mxu0
        %v2476 = vadd.f32 %v2128, %v2475
        %v2477 = vpop.f32.mrf.mxu0
        %v2478 = vadd.f32 %v2128, %v2477
        %2479 = vdwg.mxu0
        %2480 = vmatpush.bf16.msra.mxu0 0
        %2481 = vmatpush.bf16.msra.mxu0 0
        %2482 = vmatpush.bf16.msra.mxu0 0
        %2483 = vmatpush.bf16.msra.mxu0 0
        %2484 = vmatpush.bf16.msra.mxu0 0
        %2485 = vmatpush.bf16.msra.mxu0 0
        %2486 = vmatpush.bf16.msra.mxu0 %v2273
        %2487 = vmatpush.bf16.msra.mxu0 %v2257
        %2488 = vmatmul.bf16.gmra.mxu0 %v2310
        %v2489 = vpop.f32.mrf.mxu0
        %v2490 = vadd.f32 %v2129, %v2489
        %v2491 = vpop.f32.mrf.mxu0
        %v2492 = vadd.f32 %v2129, %v2491
        %2493 = vdwg.mxu0
        %2494 = vmatpush.bf16.msra.mxu0 0
        %2495 = vmatpush.bf16.msra.mxu0 0
        %2496 = vmatpush.bf16.msra.mxu0 0
        %2497 = vmatpush.bf16.msra.mxu0 0
        %2498 = vmatpush.bf16.msra.mxu0 0
        %2499 = vmatpush.bf16.msra.mxu0 0
        %2500 = vmatpush.bf16.msra.mxu0 %v2274
        %2501 = vmatpush.bf16.msra.mxu0 %v2258
        %2502 = vmatmul.bf16.gmra.mxu0 %v2310
        %v2503 = vpop.f32.mrf.mxu0
        %v2504 = vadd.f32 %v2130, %v2503
        %v2505 = vpop.f32.mrf.mxu0
        %v2506 = vadd.f32 %v2130, %v2505
        %2507 = vdwg.mxu0
        %2508 = vmatpush.bf16.msra.mxu0 0
        %2509 = vmatpush.bf16.msra.mxu0 0
        %2510 = vmatpush.bf16.msra.mxu0 0
        %2511 = vmatpush.bf16.msra.mxu0 0
        %2512 = vmatpush.bf16.msra.mxu0 0
        %2513 = vmatpush.bf16.msra.mxu0 0
        %2514 = vmatpush.bf16.msra.mxu0 %v2275
        %2515 = vmatpush.bf16.msra.mxu0 %v2259
        %2516 = vmatmul.bf16.gmra.mxu0 %v2310
        %v2517 = vpop.f32.mrf.mxu0
        %v2518 = vadd.f32 %v2131, %v2517
        %v2519 = vpop.f32.mrf.mxu0
        %v2520 = vadd.f32 %v2131, %v2519
        %2521 = vdwg.mxu0
        %2522 = vmatpush.bf16.msra.mxu0 0
        %2523 = vmatpush.bf16.msra.mxu0 0
        %2524 = vmatpush.bf16.msra.mxu0 0
        %2525 = vmatpush.bf16.msra.mxu0 0
        %2526 = vmatpush.bf16.msra.mxu0 0
        %2527 = vmatpush.bf16.msra.mxu0 0
        %2528 = vmatpush.bf16.msra.mxu0 %v2276
        %2529 = vmatpush.bf16.msra.mxu0 %v2260
        %2530 = vmatmul.bf16.gmra.mxu0 %v2310
        %v2531 = vpop.f32.mrf.mxu0
        %v2532 = vadd.f32 %v2132, %v2531
        %v2533 = vpop.f32.mrf.mxu0
        %v2534 = vadd.f32 %v2132, %v2533
        %2535 = vdwg.mxu0
        %v2536 = vmax.f32 %v2322, 0.0
        %v2537 = vmax.f32 %v2336, 0.0
        %v2538 = vmax.f32 %v2350, 0.0
        %v2539 = vmax.f32 %v2364, 0.0
        %v2540 = vmax.f32 %v2378, 0.0
        %v2541 = vmax.f32 %v2392, 0.0
        %v2542 = vmax.f32 %v2406, 0.0
        %v2543 = vmax.f32 %v2420, 0.0
        %v2544 = vmax.f32 %v2434, 0.0
        %v2545 = vmax.f32 %v2448, 0.0
        %v2546 = vmax.f32 %v2462, 0.0
        %v2547 = vmax.f32 %v2476, 0.0
        %v2548 = vmax.f32 %v2490, 0.0
        %v2549 = vmax.f32 %v2504, 0.0
        %v2550 = vmax.f32 %v2518, 0.0
        %v2551 = vmax.f32 %v2532, 0.0
        %v2552 = vmax.f32 %v2324, 0.0
        %v2553 = vmax.f32 %v2338, 0.0
        %v2554 = vmax.f32 %v2352, 0.0
        %v2555 = vmax.f32 %v2366, 0.0
        %v2556 = vmax.f32 %v2380, 0.0
        %v2557 = vmax.f32 %v2394, 0.0
        %v2558 = vmax.f32 %v2408, 0.0
        %v2559 = vmax.f32 %v2422, 0.0
        %v2560 = vmax.f32 %v2436, 0.0
        %v2561 = vmax.f32 %v2450, 0.0
        %v2562 = vmax.f32 %v2464, 0.0
        %v2563 = vmax.f32 %v2478, 0.0
        %v2564 = vmax.f32 %v2492, 0.0
        %v2565 = vmax.f32 %v2506, 0.0
        %v2566 = vmax.f32 %v2520, 0.0
        %v2567 = vmax.f32 %v2534, 0.0
        %v2568 = vpack.c.bf16 %v2552, %v2536
        %v2569 = vpack.c.bf16 %v2553, %v2537
        %v2570 = vpack.c.bf16 %v2554, %v2538
        %v2571 = vpack.c.bf16 %v2555, %v2539
        %v2572 = vpack.c.bf16 %v2556, %v2540
        %v2573 = vpack.c.bf16 %v2557, %v2541
        %v2574 = vpack.c.bf16 %v2558, %v2542
        %v2575 = vpack.c.bf16 %v2559, %v2543
        %v2576 = vpack.c.bf16 %v2560, %v2544
        %v2577 = vpack.c.bf16 %v2561, %v2545
        %v2578 = vpack.c.bf16 %v2562, %v2546
        %v2579 = vpack.c.bf16 %v2563, %v2547
        %v2580 = vpack.c.bf16 %v2564, %v2548
        %v2581 = vpack.c.bf16 %v2565, %v2549
        %v2582 = vpack.c.bf16 %v2566, %v2550
        %v2583 = vpack.c.bf16 %v2567, %v2551
        %v2584 = vld [vmem:[%s942] sm:$0xf]
        %v2585 = vld [vmem:[%s942 + $0x4] sm:$0xf]
        %v2586 = vld [vmem:[%s942 + $0x8] sm:$0xf]
        %v2587 = vld [vmem:[%s942 + $0xc] sm:$0xf]
        %v2588 = vld [vmem:[%s942 + $0x10] sm:$0xf]
        %v2589 = vld [vmem:[%s942 + $0x14] sm:$0xf]
        %v2590 = vld [vmem:[%s942 + $0x18] sm:$0xf]
        %v2591 = vld [vmem:[%s942 + $0x1c] sm:$0xf]
        %v2592 = vld [vmem:[%s942 + $0x20] sm:$0xf]
        %v2593 = vld [vmem:[%s942 + $0x24] sm:$0xf]
        %v2594 = vld [vmem:[%s942 + $0x28] sm:$0xf]
        %v2595 = vld [vmem:[%s942 + $0x2c] sm:$0xf]
        %v2596 = vld [vmem:[%s942 + $0x30] sm:$0xf]
        %v2597 = vld [vmem:[%s942 + $0x34] sm:$0xf]
        %v2598 = vld [vmem:[%s942 + $0x38] sm:$0xf]
        %v2599 = vld [vmem:[%s942 + $0x3c] sm:$0xf]
        %v2600 = vld [vmem:[%s942 + $0x40] sm:$0xf]
        %v2601 = vld [vmem:[%s942 + $0x44] sm:$0xf]
        %v2602 = vld [vmem:[%s942 + $0x48] sm:$0xf]
        %v2603 = vld [vmem:[%s942 + $0x4c] sm:$0xf]
        %v2604 = vld [vmem:[%s942 + $0x50] sm:$0xf]
        %v2605 = vld [vmem:[%s942 + $0x54] sm:$0xf]
        %v2606 = vld [vmem:[%s942 + $0x58] sm:$0xf]
        %v2607 = vld [vmem:[%s942 + $0x5c] sm:$0xf]
        %v2608 = vld [vmem:[%s942 + $0x60] sm:$0xf]
        %v2609 = vld [vmem:[%s942 + $0x64] sm:$0xf]
        %v2610 = vld [vmem:[%s942 + $0x68] sm:$0xf]
        %v2611 = vld [vmem:[%s942 + $0x6c] sm:$0xf]
        %v2612 = vld [vmem:[%s942 + $0x70] sm:$0xf]
        %v2613 = vld [vmem:[%s942 + $0x74] sm:$0xf]
        %v2614 = vld [vmem:[%s942 + $0x78] sm:$0xf]
        %v2615 = vld [vmem:[%s942 + $0x7c] sm:$0xf]
        %v2616 = vld [vmem:[%s942 + $0x80] sm:$0xf]
        %v2617 = vld [vmem:[%s942 + $0x84] sm:$0xf]
        %v2618 = vld [vmem:[%s942 + $0x88] sm:$0xf]
        %v2619 = vld [vmem:[%s942 + $0x8c] sm:$0xf]
        %v2620 = vld [vmem:[%s942 + $0x90] sm:$0xf]
        %v2621 = vld [vmem:[%s942 + $0x94] sm:$0xf]
        %v2622 = vld [vmem:[%s942 + $0x98] sm:$0xf]
        %v2623 = vld [vmem:[%s942 + $0x9c] sm:$0xf]
        %v2624 = vld [vmem:[%s942 + $0xa0] sm:$0xf]
        %v2625 = vld [vmem:[%s942 + $0xa4] sm:$0xf]
        %v2626 = vld [vmem:[%s942 + $0xa8] sm:$0xf]
        %v2627 = vld [vmem:[%s942 + $0xac] sm:$0xf]
        %v2628 = vld [vmem:[%s942 + $0xb0] sm:$0xf]
        %v2629 = vld [vmem:[%s942 + $0xb4] sm:$0xf]
        %v2630 = vld [vmem:[%s942 + $0xb8] sm:$0xf]
        %v2631 = vld [vmem:[%s942 + $0xbc] sm:$0xf]
        %v2632 = vld [vmem:[%s942 + $0xc0] sm:$0xf]
        %v2633 = vld [vmem:[%s942 + $0xc4] sm:$0xf]
        %v2634 = vld [vmem:[%s942 + $0xc8] sm:$0xf]
        %v2635 = vld [vmem:[%s942 + $0xcc] sm:$0xf]
        %v2636 = vld [vmem:[%s942 + $0xd0] sm:$0xf]
        %v2637 = vld [vmem:[%s942 + $0xd4] sm:$0xf]
        %v2638 = vld [vmem:[%s942 + $0xd8] sm:$0xf]
        %v2639 = vld [vmem:[%s942 + $0xdc] sm:$0xf]
        %v2640 = vld [vmem:[%s942 + $0xe0] sm:$0xf]
        %v2641 = vld [vmem:[%s942 + $0xe4] sm:$0xf]
        %v2642 = vld [vmem:[%s942 + $0xe8] sm:$0xf]
        %v2643 = vld [vmem:[%s942 + $0xec] sm:$0xf]
        %v2644 = vld [vmem:[%s942 + $0xf0] sm:$0xf]
        %v2645 = vld [vmem:[%s942 + $0xf4] sm:$0xf]
        %v2646 = vld [vmem:[%s942 + $0xf8] sm:$0xf]
        %v2647 = vld [vmem:[%s942 + $0xfc] sm:$0xf]
        %v2648 = vld [vmem:[%s942 + $0x100] sm:$0xf]
        %v2649 = vld [vmem:[%s942 + $0x104] sm:$0xf]
        %v2650 = vld [vmem:[%s942 + $0x108] sm:$0xf]
        %v2651 = vld [vmem:[%s942 + $0x10c] sm:$0xf]
        %v2652 = vld [vmem:[%s942 + $0x110] sm:$0xf]
        %v2653 = vld [vmem:[%s942 + $0x114] sm:$0xf]
        %v2654 = vld [vmem:[%s942 + $0x118] sm:$0xf]
        %v2655 = vld [vmem:[%s942 + $0x11c] sm:$0xf]
        %v2656 = vld [vmem:[%s942 + $0x120] sm:$0xf]
        %v2657 = vld [vmem:[%s942 + $0x124] sm:$0xf]
        %v2658 = vld [vmem:[%s942 + $0x128] sm:$0xf]
        %v2659 = vld [vmem:[%s942 + $0x12c] sm:$0xf]
        %v2660 = vld [vmem:[%s942 + $0x130] sm:$0xf]
        %v2661 = vld [vmem:[%s942 + $0x134] sm:$0xf]
        %v2662 = vld [vmem:[%s942 + $0x138] sm:$0xf]
        %v2663 = vld [vmem:[%s942 + $0x13c] sm:$0xf]
        %v2664 = vld [vmem:[%s942 + $0x140] sm:$0xf]
        %v2665 = vld [vmem:[%s942 + $0x144] sm:$0xf]
        %v2666 = vld [vmem:[%s942 + $0x148] sm:$0xf]
        %v2667 = vld [vmem:[%s942 + $0x14c] sm:$0xf]
        %v2668 = vld [vmem:[%s942 + $0x150] sm:$0xf]
        %v2669 = vld [vmem:[%s942 + $0x154] sm:$0xf]
        %v2670 = vld [vmem:[%s942 + $0x158] sm:$0xf]
        %v2671 = vld [vmem:[%s942 + $0x15c] sm:$0xf]
        %v2672 = vld [vmem:[%s942 + $0x160] sm:$0xf]
        %v2673 = vld [vmem:[%s942 + $0x164] sm:$0xf]
        %v2674 = vld [vmem:[%s942 + $0x168] sm:$0xf]
        %v2675 = vld [vmem:[%s942 + $0x16c] sm:$0xf]
        %v2676 = vld [vmem:[%s942 + $0x170] sm:$0xf]
        %v2677 = vld [vmem:[%s942 + $0x174] sm:$0xf]
        %v2678 = vld [vmem:[%s942 + $0x178] sm:$0xf]
        %v2679 = vld [vmem:[%s942 + $0x17c] sm:$0xf]
        %v2680 = vld [vmem:[%s942 + $0x180] sm:$0xf]
        %v2681 = vld [vmem:[%s942 + $0x184] sm:$0xf]
        %v2682 = vld [vmem:[%s942 + $0x188] sm:$0xf]
        %v2683 = vld [vmem:[%s942 + $0x18c] sm:$0xf]
        %v2684 = vld [vmem:[%s942 + $0x190] sm:$0xf]
        %v2685 = vld [vmem:[%s942 + $0x194] sm:$0xf]
        %v2686 = vld [vmem:[%s942 + $0x198] sm:$0xf]
        %v2687 = vld [vmem:[%s942 + $0x19c] sm:$0xf]
        %v2688 = vld [vmem:[%s942 + $0x1a0] sm:$0xf]
        %v2689 = vld [vmem:[%s942 + $0x1a4] sm:$0xf]
        %v2690 = vld [vmem:[%s942 + $0x1a8] sm:$0xf]
        %v2691 = vld [vmem:[%s942 + $0x1ac] sm:$0xf]
        %v2692 = vld [vmem:[%s942 + $0x1b0] sm:$0xf]
        %v2693 = vld [vmem:[%s942 + $0x1b4] sm:$0xf]
        %v2694 = vld [vmem:[%s942 + $0x1b8] sm:$0xf]
        %v2695 = vld [vmem:[%s942 + $0x1bc] sm:$0xf]
        %v2696 = vld [vmem:[%s942 + $0x1c0] sm:$0xf]
        %v2697 = vld [vmem:[%s942 + $0x1c4] sm:$0xf]
        %v2698 = vld [vmem:[%s942 + $0x1c8] sm:$0xf]
        %v2699 = vld [vmem:[%s942 + $0x1cc] sm:$0xf]
        %v2700 = vld [vmem:[%s942 + $0x1d0] sm:$0xf]
        %v2701 = vld [vmem:[%s942 + $0x1d4] sm:$0xf]
        %v2702 = vld [vmem:[%s942 + $0x1d8] sm:$0xf]
        %v2703 = vld [vmem:[%s942 + $0x1dc] sm:$0xf]
        %v2704 = vld [vmem:[%s942 + $0x1e0] sm:$0xf]
        %v2705 = vld [vmem:[%s942 + $0x1e4] sm:$0xf]
        %v2706 = vld [vmem:[%s942 + $0x1e8] sm:$0xf]
        %v2707 = vld [vmem:[%s942 + $0x1ec] sm:$0xf]
        %v2708 = vld [vmem:[%s942 + $0x1f0] sm:$0xf]
        %v2709 = vld [vmem:[%s942 + $0x1f4] sm:$0xf]
        %v2710 = vld [vmem:[%s942 + $0x1f8] sm:$0xf]
        %v2711 = vld [vmem:[%s942 + $0x1fc] sm:$0xf]
        %v2712 = vld [vmem:[%s942 + $0x200] sm:$0xf]
        %v2713 = vld [vmem:[%s942 + $0x204] sm:$0xf]
        %v2714 = vld [vmem:[%s942 + $0x208] sm:$0xf]
        %v2715 = vld [vmem:[%s942 + $0x20c] sm:$0xf]
        %v2716 = vld [vmem:[%s942 + $0x210] sm:$0xf]
        %v2717 = vld [vmem:[%s942 + $0x214] sm:$0xf]
        %v2718 = vld [vmem:[%s942 + $0x218] sm:$0xf]
        %v2719 = vld [vmem:[%s942 + $0x21c] sm:$0xf]
        %v2720 = vld [vmem:[%s942 + $0x220] sm:$0xf]
        %v2721 = vld [vmem:[%s942 + $0x224] sm:$0xf]
        %v2722 = vld [vmem:[%s942 + $0x228] sm:$0xf]
        %v2723 = vld [vmem:[%s942 + $0x22c] sm:$0xf]
        %v2724 = vld [vmem:[%s942 + $0x230] sm:$0xf]
        %v2725 = vld [vmem:[%s942 + $0x234] sm:$0xf]
        %v2726 = vld [vmem:[%s942 + $0x238] sm:$0xf]
        %v2727 = vld [vmem:[%s942 + $0x23c] sm:$0xf]
        %v2728 = vld [vmem:[%s942 + $0x240] sm:$0xf]
        %v2729 = vld [vmem:[%s942 + $0x244] sm:$0xf]
        %v2730 = vld [vmem:[%s942 + $0x248] sm:$0xf]
        %v2731 = vld [vmem:[%s942 + $0x24c] sm:$0xf]
        %v2732 = vld [vmem:[%s942 + $0x250] sm:$0xf]
        %v2733 = vld [vmem:[%s942 + $0x254] sm:$0xf]
        %v2734 = vld [vmem:[%s942 + $0x258] sm:$0xf]
        %v2735 = vld [vmem:[%s942 + $0x25c] sm:$0xf]
        %v2736 = vld [vmem:[%s942 + $0x260] sm:$0xf]
        %v2737 = vld [vmem:[%s942 + $0x264] sm:$0xf]
        %v2738 = vld [vmem:[%s942 + $0x268] sm:$0xf]
        %v2739 = vld [vmem:[%s942 + $0x26c] sm:$0xf]
        %v2740 = vld [vmem:[%s942 + $0x270] sm:$0xf]
        %v2741 = vld [vmem:[%s942 + $0x274] sm:$0xf]
        %v2742 = vld [vmem:[%s942 + $0x278] sm:$0xf]
        %v2743 = vld [vmem:[%s942 + $0x27c] sm:$0xf]
        %v2744 = vld [vmem:[%s942 + $0x280] sm:$0xf]
        %v2745 = vld [vmem:[%s942 + $0x284] sm:$0xf]
        %v2746 = vld [vmem:[%s942 + $0x288] sm:$0xf]
        %v2747 = vld [vmem:[%s942 + $0x28c] sm:$0xf]
        %v2748 = vld [vmem:[%s942 + $0x290] sm:$0xf]
        %v2749 = vld [vmem:[%s942 + $0x294] sm:$0xf]
        %v2750 = vld [vmem:[%s942 + $0x298] sm:$0xf]
        %v2751 = vld [vmem:[%s942 + $0x29c] sm:$0xf]
        %v2752 = vld [vmem:[%s942 + $0x2a0] sm:$0xf]
        %v2753 = vld [vmem:[%s942 + $0x2a4] sm:$0xf]
        %v2754 = vld [vmem:[%s942 + $0x2a8] sm:$0xf]
        %v2755 = vld [vmem:[%s942 + $0x2ac] sm:$0xf]
        %v2756 = vld [vmem:[%s942 + $0x2b0] sm:$0xf]
        %v2757 = vld [vmem:[%s942 + $0x2b4] sm:$0xf]
        %v2758 = vld [vmem:[%s942 + $0x2b8] sm:$0xf]
        %v2759 = vld [vmem:[%s942 + $0x2bc] sm:$0xf]
        %v2760 = vld [vmem:[%s942 + $0x2c0] sm:$0xf]
        %v2761 = vld [vmem:[%s942 + $0x2c4] sm:$0xf]
        %v2762 = vld [vmem:[%s942 + $0x2c8] sm:$0xf]
        %v2763 = vld [vmem:[%s942 + $0x2cc] sm:$0xf]
        %v2764 = vld [vmem:[%s942 + $0x2d0] sm:$0xf]
        %v2765 = vld [vmem:[%s942 + $0x2d4] sm:$0xf]
        %v2766 = vld [vmem:[%s942 + $0x2d8] sm:$0xf]
        %v2767 = vld [vmem:[%s942 + $0x2dc] sm:$0xf]
        %v2768 = vld [vmem:[%s942 + $0x2e0] sm:$0xf]
        %v2769 = vld [vmem:[%s942 + $0x2e4] sm:$0xf]
        %v2770 = vld [vmem:[%s942 + $0x2e8] sm:$0xf]
        %v2771 = vld [vmem:[%s942 + $0x2ec] sm:$0xf]
        %v2772 = vld [vmem:[%s942 + $0x2f0] sm:$0xf]
        %v2773 = vld [vmem:[%s942 + $0x2f4] sm:$0xf]
        %v2774 = vld [vmem:[%s942 + $0x2f8] sm:$0xf]
        %v2775 = vld [vmem:[%s942 + $0x2fc] sm:$0xf]
        %v2776 = vld [vmem:[%s942 + $0x300] sm:$0xf]
        %v2777 = vld [vmem:[%s942 + $0x304] sm:$0xf]
        %v2778 = vld [vmem:[%s942 + $0x308] sm:$0xf]
        %v2779 = vld [vmem:[%s942 + $0x30c] sm:$0xf]
        %v2780 = vld [vmem:[%s942 + $0x310] sm:$0xf]
        %v2781 = vld [vmem:[%s942 + $0x314] sm:$0xf]
        %v2782 = vld [vmem:[%s942 + $0x318] sm:$0xf]
        %v2783 = vld [vmem:[%s942 + $0x31c] sm:$0xf]
        %v2784 = vld [vmem:[%s942 + $0x320] sm:$0xf]
        %v2785 = vld [vmem:[%s942 + $0x324] sm:$0xf]
        %v2786 = vld [vmem:[%s942 + $0x328] sm:$0xf]
        %v2787 = vld [vmem:[%s942 + $0x32c] sm:$0xf]
        %v2788 = vld [vmem:[%s942 + $0x330] sm:$0xf]
        %v2789 = vld [vmem:[%s942 + $0x334] sm:$0xf]
        %v2790 = vld [vmem:[%s942 + $0x338] sm:$0xf]
        %v2791 = vld [vmem:[%s942 + $0x33c] sm:$0xf]
        %v2792 = vld [vmem:[%s942 + $0x340] sm:$0xf]
        %v2793 = vld [vmem:[%s942 + $0x344] sm:$0xf]
        %v2794 = vld [vmem:[%s942 + $0x348] sm:$0xf]
        %v2795 = vld [vmem:[%s942 + $0x34c] sm:$0xf]
        %v2796 = vld [vmem:[%s942 + $0x350] sm:$0xf]
        %v2797 = vld [vmem:[%s942 + $0x354] sm:$0xf]
        %v2798 = vld [vmem:[%s942 + $0x358] sm:$0xf]
        %v2799 = vld [vmem:[%s942 + $0x35c] sm:$0xf]
        %v2800 = vld [vmem:[%s942 + $0x360] sm:$0xf]
        %v2801 = vld [vmem:[%s942 + $0x364] sm:$0xf]
        %v2802 = vld [vmem:[%s942 + $0x368] sm:$0xf]
        %v2803 = vld [vmem:[%s942 + $0x36c] sm:$0xf]
        %v2804 = vld [vmem:[%s942 + $0x370] sm:$0xf]
        %v2805 = vld [vmem:[%s942 + $0x374] sm:$0xf]
        %v2806 = vld [vmem:[%s942 + $0x378] sm:$0xf]
        %v2807 = vld [vmem:[%s942 + $0x37c] sm:$0xf]
        %v2808 = vld [vmem:[%s942 + $0x380] sm:$0xf]
        %v2809 = vld [vmem:[%s942 + $0x384] sm:$0xf]
        %v2810 = vld [vmem:[%s942 + $0x388] sm:$0xf]
        %v2811 = vld [vmem:[%s942 + $0x38c] sm:$0xf]
        %v2812 = vld [vmem:[%s942 + $0x390] sm:$0xf]
        %v2813 = vld [vmem:[%s942 + $0x394] sm:$0xf]
        %v2814 = vld [vmem:[%s942 + $0x398] sm:$0xf]
        %v2815 = vld [vmem:[%s942 + $0x39c] sm:$0xf]
        %v2816 = vld [vmem:[%s942 + $0x3a0] sm:$0xf]
        %v2817 = vld [vmem:[%s942 + $0x3a4] sm:$0xf]
        %v2818 = vld [vmem:[%s942 + $0x3a8] sm:$0xf]
        %v2819 = vld [vmem:[%s942 + $0x3ac] sm:$0xf]
        %v2820 = vld [vmem:[%s942 + $0x3b0] sm:$0xf]
        %v2821 = vld [vmem:[%s942 + $0x3b4] sm:$0xf]
        %v2822 = vld [vmem:[%s942 + $0x3b8] sm:$0xf]
        %v2823 = vld [vmem:[%s942 + $0x3bc] sm:$0xf]
        %v2824 = vld [vmem:[%s942 + $0x3c0] sm:$0xf]
        %v2825 = vld [vmem:[%s942 + $0x3c4] sm:$0xf]
        %v2826 = vld [vmem:[%s942 + $0x3c8] sm:$0xf]
        %v2827 = vld [vmem:[%s942 + $0x3cc] sm:$0xf]
        %v2828 = vld [vmem:[%s942 + $0x3d0] sm:$0xf]
        %v2829 = vld [vmem:[%s942 + $0x3d4] sm:$0xf]
        %v2830 = vld [vmem:[%s942 + $0x3d8] sm:$0xf]
        %v2831 = vld [vmem:[%s942 + $0x3dc] sm:$0xf]
        %v2832 = vld [vmem:[%s942 + $0x3e0] sm:$0xf]
        %v2833 = vld [vmem:[%s942 + $0x3e4] sm:$0xf]
        %v2834 = vld [vmem:[%s942 + $0x3e8] sm:$0xf]
        %v2835 = vld [vmem:[%s942 + $0x3ec] sm:$0xf]
        %v2836 = vld [vmem:[%s942 + $0x3f0] sm:$0xf]
        %v2837 = vld [vmem:[%s942 + $0x3f4] sm:$0xf]
        %v2838 = vld [vmem:[%s942 + $0x3f8] sm:$0xf]
        %v2839 = vld [vmem:[%s942 + $0x3fc] sm:$0xf]
        %v2840 = vld [vmem:[%s945] sm:$0x1]
        %v2842 = vperm.slane %v2840, 0
        %v3100 = vunpack.c.l.b16 %v2584
        %v3101 = vunpack.c.l.b16 %v2585
        %v3102 = vunpack.c.l.b16 %v2586
        %v3103 = vunpack.c.l.b16 %v2587
        %v3104 = vunpack.c.l.b16 %v2588
        %v3105 = vunpack.c.l.b16 %v2589
        %v3106 = vunpack.c.l.b16 %v2590
        %v3107 = vunpack.c.l.b16 %v2591
        %v3108 = vunpack.c.l.b16 %v2592
        %v3109 = vunpack.c.l.b16 %v2593
        %v3110 = vunpack.c.l.b16 %v2594
        %v3111 = vunpack.c.l.b16 %v2595
        %v3112 = vunpack.c.l.b16 %v2596
        %v3113 = vunpack.c.l.b16 %v2597
        %v3114 = vunpack.c.l.b16 %v2598
        %v3115 = vunpack.c.l.b16 %v2599
        %v3116 = vunpack.c.l.b16 %v2600
        %v3117 = vunpack.c.l.b16 %v2601
        %v3118 = vunpack.c.l.b16 %v2602
        %v3119 = vunpack.c.l.b16 %v2603
        %v3120 = vunpack.c.l.b16 %v2604
        %v3121 = vunpack.c.l.b16 %v2605
        %v3122 = vunpack.c.l.b16 %v2606
        %v3123 = vunpack.c.l.b16 %v2607
        %v3124 = vunpack.c.l.b16 %v2608
        %v3125 = vunpack.c.l.b16 %v2609
        %v3126 = vunpack.c.l.b16 %v2610
        %v3127 = vunpack.c.l.b16 %v2611
        %v3128 = vunpack.c.l.b16 %v2612
        %v3129 = vunpack.c.l.b16 %v2613
        %v3130 = vunpack.c.l.b16 %v2614
        %v3131 = vunpack.c.l.b16 %v2615
        %v3132 = vunpack.c.l.b16 %v2616
        %v3133 = vunpack.c.l.b16 %v2617
        %v3134 = vunpack.c.l.b16 %v2618
        %v3135 = vunpack.c.l.b16 %v2619
        %v3136 = vunpack.c.l.b16 %v2620
        %v3137 = vunpack.c.l.b16 %v2621
        %v3138 = vunpack.c.l.b16 %v2622
        %v3139 = vunpack.c.l.b16 %v2623
        %v3140 = vunpack.c.l.b16 %v2624
        %v3141 = vunpack.c.l.b16 %v2625
        %v3142 = vunpack.c.l.b16 %v2626
        %v3143 = vunpack.c.l.b16 %v2627
        %v3144 = vunpack.c.l.b16 %v2628
        %v3145 = vunpack.c.l.b16 %v2629
        %v3146 = vunpack.c.l.b16 %v2630
        %v3147 = vunpack.c.l.b16 %v2631
        %v3148 = vunpack.c.l.b16 %v2632
        %v3149 = vunpack.c.l.b16 %v2633
        %v3150 = vunpack.c.l.b16 %v2634
        %v3151 = vunpack.c.l.b16 %v2635
        %v3152 = vunpack.c.l.b16 %v2636
        %v3153 = vunpack.c.l.b16 %v2637
        %v3154 = vunpack.c.l.b16 %v2638
        %v3155 = vunpack.c.l.b16 %v2639
        %v3156 = vunpack.c.l.b16 %v2640
        %v3157 = vunpack.c.l.b16 %v2641
        %v3158 = vunpack.c.l.b16 %v2642
        %v3159 = vunpack.c.l.b16 %v2643
        %v3160 = vunpack.c.l.b16 %v2644
        %v3161 = vunpack.c.l.b16 %v2645
        %v3162 = vunpack.c.l.b16 %v2646
        %v3163 = vunpack.c.l.b16 %v2647
        %v3164 = vunpack.c.l.b16 %v2648
        %v3165 = vunpack.c.l.b16 %v2649
        %v3166 = vunpack.c.l.b16 %v2650
        %v3167 = vunpack.c.l.b16 %v2651
        %v3168 = vunpack.c.l.b16 %v2652
        %v3169 = vunpack.c.l.b16 %v2653
        %v3170 = vunpack.c.l.b16 %v2654
        %v3171 = vunpack.c.l.b16 %v2655
        %v3172 = vunpack.c.l.b16 %v2656
        %v3173 = vunpack.c.l.b16 %v2657
        %v3174 = vunpack.c.l.b16 %v2658
        %v3175 = vunpack.c.l.b16 %v2659
        %v3176 = vunpack.c.l.b16 %v2660
        %v3177 = vunpack.c.l.b16 %v2661
        %v3178 = vunpack.c.l.b16 %v2662
        %v3179 = vunpack.c.l.b16 %v2663
        %v3180 = vunpack.c.l.b16 %v2664
        %v3181 = vunpack.c.l.b16 %v2665
        %v3182 = vunpack.c.l.b16 %v2666
        %v3183 = vunpack.c.l.b16 %v2667
        %v3184 = vunpack.c.l.b16 %v2668
        %v3185 = vunpack.c.l.b16 %v2669
        %v3186 = vunpack.c.l.b16 %v2670
        %v3187 = vunpack.c.l.b16 %v2671
        %v3188 = vunpack.c.l.b16 %v2672
        %v3189 = vunpack.c.l.b16 %v2673
        %v3190 = vunpack.c.l.b16 %v2674
        %v3191 = vunpack.c.l.b16 %v2675
        %v3192 = vunpack.c.l.b16 %v2676
        %v3193 = vunpack.c.l.b16 %v2677
        %v3194 = vunpack.c.l.b16 %v2678
        %v3195 = vunpack.c.l.b16 %v2679
        %v3196 = vunpack.c.l.b16 %v2680
        %v3197 = vunpack.c.l.b16 %v2681
        %v3198 = vunpack.c.l.b16 %v2682
        %v3199 = vunpack.c.l.b16 %v2683
        %v3200 = vunpack.c.l.b16 %v2684
        %v3201 = vunpack.c.l.b16 %v2685
        %v3202 = vunpack.c.l.b16 %v2686
        %v3203 = vunpack.c.l.b16 %v2687
        %v3204 = vunpack.c.l.b16 %v2688
        %v3205 = vunpack.c.l.b16 %v2689
        %v3206 = vunpack.c.l.b16 %v2690
        %v3207 = vunpack.c.l.b16 %v2691
        %v3208 = vunpack.c.l.b16 %v2692
        %v3209 = vunpack.c.l.b16 %v2693
        %v3210 = vunpack.c.l.b16 %v2694
        %v3211 = vunpack.c.l.b16 %v2695
        %v3212 = vunpack.c.l.b16 %v2696
        %v3213 = vunpack.c.l.b16 %v2697
        %v3214 = vunpack.c.l.b16 %v2698
        %v3215 = vunpack.c.l.b16 %v2699
        %v3216 = vunpack.c.l.b16 %v2700
        %v3217 = vunpack.c.l.b16 %v2701
        %v3218 = vunpack.c.l.b16 %v2702
        %v3219 = vunpack.c.l.b16 %v2703
        %v3220 = vunpack.c.l.b16 %v2704
        %v3221 = vunpack.c.l.b16 %v2705
        %v3222 = vunpack.c.l.b16 %v2706
        %v3223 = vunpack.c.l.b16 %v2707
        %v3224 = vunpack.c.l.b16 %v2708
        %v3225 = vunpack.c.l.b16 %v2709
        %v3226 = vunpack.c.l.b16 %v2710
        %v3227 = vunpack.c.l.b16 %v2711
        %v3228 = vunpack.c.l.b16 %v2712
        %v3229 = vunpack.c.l.b16 %v2713
        %v3230 = vunpack.c.l.b16 %v2714
        %v3231 = vunpack.c.l.b16 %v2715
        %v3232 = vunpack.c.l.b16 %v2716
        %v3233 = vunpack.c.l.b16 %v2717
        %v3234 = vunpack.c.l.b16 %v2718
        %v3235 = vunpack.c.l.b16 %v2719
        %v3236 = vunpack.c.l.b16 %v2720
        %v3237 = vunpack.c.l.b16 %v2721
        %v3238 = vunpack.c.l.b16 %v2722
        %v3239 = vunpack.c.l.b16 %v2723
        %v3240 = vunpack.c.l.b16 %v2724
        %v3241 = vunpack.c.l.b16 %v2725
        %v3242 = vunpack.c.l.b16 %v2726
        %v3243 = vunpack.c.l.b16 %v2727
        %v3244 = vunpack.c.l.b16 %v2728
        %v3245 = vunpack.c.l.b16 %v2729
        %v3246 = vunpack.c.l.b16 %v2730
        %v3247 = vunpack.c.l.b16 %v2731
        %v3248 = vunpack.c.l.b16 %v2732
        %v3249 = vunpack.c.l.b16 %v2733
        %v3250 = vunpack.c.l.b16 %v2734
        %v3251 = vunpack.c.l.b16 %v2735
        %v3252 = vunpack.c.l.b16 %v2736
        %v3253 = vunpack.c.l.b16 %v2737
        %v3254 = vunpack.c.l.b16 %v2738
        %v3255 = vunpack.c.l.b16 %v2739
        %v3256 = vunpack.c.l.b16 %v2740
        %v3257 = vunpack.c.l.b16 %v2741
        %v3258 = vunpack.c.l.b16 %v2742
        %v3259 = vunpack.c.l.b16 %v2743
        %v3260 = vunpack.c.l.b16 %v2744
        %v3261 = vunpack.c.l.b16 %v2745
        %v3262 = vunpack.c.l.b16 %v2746
        %v3263 = vunpack.c.l.b16 %v2747
        %v3264 = vunpack.c.l.b16 %v2748
        %v3265 = vunpack.c.l.b16 %v2749
        %v3266 = vunpack.c.l.b16 %v2750
        %v3267 = vunpack.c.l.b16 %v2751
        %v3268 = vunpack.c.l.b16 %v2752
        %v3269 = vunpack.c.l.b16 %v2753
        %v3270 = vunpack.c.l.b16 %v2754
        %v3271 = vunpack.c.l.b16 %v2755
        %v3272 = vunpack.c.l.b16 %v2756
        %v3273 = vunpack.c.l.b16 %v2757
        %v3274 = vunpack.c.l.b16 %v2758
        %v3275 = vunpack.c.l.b16 %v2759
        %v3276 = vunpack.c.l.b16 %v2760
        %v3277 = vunpack.c.l.b16 %v2761
        %v3278 = vunpack.c.l.b16 %v2762
        %v3279 = vunpack.c.l.b16 %v2763
        %v3280 = vunpack.c.l.b16 %v2764
        %v3281 = vunpack.c.l.b16 %v2765
        %v3282 = vunpack.c.l.b16 %v2766
        %v3283 = vunpack.c.l.b16 %v2767
        %v3284 = vunpack.c.l.b16 %v2768
        %v3285 = vunpack.c.l.b16 %v2769
        %v3286 = vunpack.c.l.b16 %v2770
        %v3287 = vunpack.c.l.b16 %v2771
        %v3288 = vunpack.c.l.b16 %v2772
        %v3289 = vunpack.c.l.b16 %v2773
        %v3290 = vunpack.c.l.b16 %v2774
        %v3291 = vunpack.c.l.b16 %v2775
        %v3292 = vunpack.c.l.b16 %v2776
        %v3293 = vunpack.c.l.b16 %v2777
        %v3294 = vunpack.c.l.b16 %v2778
        %v3295 = vunpack.c.l.b16 %v2779
        %v3296 = vunpack.c.l.b16 %v2780
        %v3297 = vunpack.c.l.b16 %v2781
        %v3298 = vunpack.c.l.b16 %v2782
        %v3299 = vunpack.c.l.b16 %v2783
        %v3300 = vunpack.c.l.b16 %v2784
        %v3301 = vunpack.c.l.b16 %v2785
        %v3302 = vunpack.c.l.b16 %v2786
        %v3303 = vunpack.c.l.b16 %v2787
        %v3304 = vunpack.c.l.b16 %v2788
        %v3305 = vunpack.c.l.b16 %v2789
        %v3306 = vunpack.c.l.b16 %v2790
        %v3307 = vunpack.c.l.b16 %v2791
        %v3308 = vunpack.c.l.b16 %v2792
        %v3309 = vunpack.c.l.b16 %v2793
        %v3310 = vunpack.c.l.b16 %v2794
        %v3311 = vunpack.c.l.b16 %v2795
        %v3312 = vunpack.c.l.b16 %v2796
        %v3313 = vunpack.c.l.b16 %v2797
        %v3314 = vunpack.c.l.b16 %v2798
        %v3315 = vunpack.c.l.b16 %v2799
        %v3316 = vunpack.c.l.b16 %v2800
        %v3317 = vunpack.c.l.b16 %v2801
        %v3318 = vunpack.c.l.b16 %v2802
        %v3319 = vunpack.c.l.b16 %v2803
        %v3320 = vunpack.c.l.b16 %v2804
        %v3321 = vunpack.c.l.b16 %v2805
        %v3322 = vunpack.c.l.b16 %v2806
        %v3323 = vunpack.c.l.b16 %v2807
        %v3324 = vunpack.c.l.b16 %v2808
        %v3325 = vunpack.c.l.b16 %v2809
        %v3326 = vunpack.c.l.b16 %v2810
        %v3327 = vunpack.c.l.b16 %v2811
        %v3328 = vunpack.c.l.b16 %v2812
        %v3329 = vunpack.c.l.b16 %v2813
        %v3330 = vunpack.c.l.b16 %v2814
        %v3331 = vunpack.c.l.b16 %v2815
        %v3332 = vunpack.c.l.b16 %v2816
        %v3333 = vunpack.c.l.b16 %v2817
        %v3334 = vunpack.c.l.b16 %v2818
        %v3335 = vunpack.c.l.b16 %v2819
        %v3336 = vunpack.c.l.b16 %v2820
        %v3337 = vunpack.c.l.b16 %v2821
        %v3338 = vunpack.c.l.b16 %v2822
        %v3339 = vunpack.c.l.b16 %v2823
        %v3340 = vunpack.c.l.b16 %v2824
        %v3341 = vunpack.c.l.b16 %v2825
        %v3342 = vunpack.c.l.b16 %v2826
        %v3343 = vunpack.c.l.b16 %v2827
        %v3344 = vunpack.c.l.b16 %v2828
        %v3345 = vunpack.c.l.b16 %v2829
        %v3346 = vunpack.c.l.b16 %v2830
        %v3347 = vunpack.c.l.b16 %v2831
        %v3348 = vunpack.c.l.b16 %v2832
        %v3349 = vunpack.c.l.b16 %v2833
        %v3350 = vunpack.c.l.b16 %v2834
        %v3351 = vunpack.c.l.b16 %v2835
        %v3352 = vunpack.c.l.b16 %v2836
        %v3353 = vunpack.c.l.b16 %v2837
        %v3354 = vunpack.c.l.b16 %v2838
        %v3355 = vunpack.c.l.b16 %v2839
        %v3356 = vpack.c.b16 %v3101, %v3100
        %v3357 = vpack.c.b16 %v3103, %v3102
        %v3358 = vpack.c.b16 %v3105, %v3104
        %v3359 = vpack.c.b16 %v3107, %v3106
        %v3360 = vpack.c.b16 %v3109, %v3108
        %v3361 = vpack.c.b16 %v3111, %v3110
        %v3362 = vpack.c.b16 %v3113, %v3112
        %v3363 = vpack.c.b16 %v3115, %v3114
        %v3364 = vpack.c.b16 %v3117, %v3116
        %v3365 = vpack.c.b16 %v3119, %v3118
        %v3366 = vpack.c.b16 %v3121, %v3120
        %v3367 = vpack.c.b16 %v3123, %v3122
        %v3368 = vpack.c.b16 %v3125, %v3124
        %v3369 = vpack.c.b16 %v3127, %v3126
        %v3370 = vpack.c.b16 %v3129, %v3128
        %v3371 = vpack.c.b16 %v3131, %v3130
        %v3372 = vpack.c.b16 %v3133, %v3132
        %v3373 = vpack.c.b16 %v3135, %v3134
        %v3374 = vpack.c.b16 %v3137, %v3136
        %v3375 = vpack.c.b16 %v3139, %v3138
        %v3376 = vpack.c.b16 %v3141, %v3140
        %v3377 = vpack.c.b16 %v3143, %v3142
        %v3378 = vpack.c.b16 %v3145, %v3144
        %v3379 = vpack.c.b16 %v3147, %v3146
        %v3380 = vpack.c.b16 %v3149, %v3148
        %v3381 = vpack.c.b16 %v3151, %v3150
        %v3382 = vpack.c.b16 %v3153, %v3152
        %v3383 = vpack.c.b16 %v3155, %v3154
        %v3384 = vpack.c.b16 %v3157, %v3156
        %v3385 = vpack.c.b16 %v3159, %v3158
        %v3386 = vpack.c.b16 %v3161, %v3160
        %v3387 = vpack.c.b16 %v3163, %v3162
        %v3388 = vpack.c.b16 %v3165, %v3164
        %v3389 = vpack.c.b16 %v3167, %v3166
        %v3390 = vpack.c.b16 %v3169, %v3168
        %v3391 = vpack.c.b16 %v3171, %v3170
        %v3392 = vpack.c.b16 %v3173, %v3172
        %v3393 = vpack.c.b16 %v3175, %v3174
        %v3394 = vpack.c.b16 %v3177, %v3176
        %v3395 = vpack.c.b16 %v3179, %v3178
        %v3396 = vpack.c.b16 %v3181, %v3180
        %v3397 = vpack.c.b16 %v3183, %v3182
        %v3398 = vpack.c.b16 %v3185, %v3184
        %v3399 = vpack.c.b16 %v3187, %v3186
        %v3400 = vpack.c.b16 %v3189, %v3188
        %v3401 = vpack.c.b16 %v3191, %v3190
        %v3402 = vpack.c.b16 %v3193, %v3192
        %v3403 = vpack.c.b16 %v3195, %v3194
        %v3404 = vpack.c.b16 %v3197, %v3196
        %v3405 = vpack.c.b16 %v3199, %v3198
        %v3406 = vpack.c.b16 %v3201, %v3200
        %v3407 = vpack.c.b16 %v3203, %v3202
        %v3408 = vpack.c.b16 %v3205, %v3204
        %v3409 = vpack.c.b16 %v3207, %v3206
        %v3410 = vpack.c.b16 %v3209, %v3208
        %v3411 = vpack.c.b16 %v3211, %v3210
        %v3412 = vpack.c.b16 %v3213, %v3212
        %v3413 = vpack.c.b16 %v3215, %v3214
        %v3414 = vpack.c.b16 %v3217, %v3216
        %v3415 = vpack.c.b16 %v3219, %v3218
        %v3416 = vpack.c.b16 %v3221, %v3220
        %v3417 = vpack.c.b16 %v3223, %v3222
        %v3418 = vpack.c.b16 %v3225, %v3224
        %v3419 = vpack.c.b16 %v3227, %v3226
        %v3420 = vpack.c.b16 %v3229, %v3228
        %v3421 = vpack.c.b16 %v3231, %v3230
        %v3422 = vpack.c.b16 %v3233, %v3232
        %v3423 = vpack.c.b16 %v3235, %v3234
        %v3424 = vpack.c.b16 %v3237, %v3236
        %v3425 = vpack.c.b16 %v3239, %v3238
        %v3426 = vpack.c.b16 %v3241, %v3240
        %v3427 = vpack.c.b16 %v3243, %v3242
        %v3428 = vpack.c.b16 %v3245, %v3244
        %v3429 = vpack.c.b16 %v3247, %v3246
        %v3430 = vpack.c.b16 %v3249, %v3248
        %v3431 = vpack.c.b16 %v3251, %v3250
        %v3432 = vpack.c.b16 %v3253, %v3252
        %v3433 = vpack.c.b16 %v3255, %v3254
        %v3434 = vpack.c.b16 %v3257, %v3256
        %v3435 = vpack.c.b16 %v3259, %v3258
        %v3436 = vpack.c.b16 %v3261, %v3260
        %v3437 = vpack.c.b16 %v3263, %v3262
        %v3438 = vpack.c.b16 %v3265, %v3264
        %v3439 = vpack.c.b16 %v3267, %v3266
        %v3440 = vpack.c.b16 %v3269, %v3268
        %v3441 = vpack.c.b16 %v3271, %v3270
        %v3442 = vpack.c.b16 %v3273, %v3272
        %v3443 = vpack.c.b16 %v3275, %v3274
        %v3444 = vpack.c.b16 %v3277, %v3276
        %v3445 = vpack.c.b16 %v3279, %v3278
        %v3446 = vpack.c.b16 %v3281, %v3280
        %v3447 = vpack.c.b16 %v3283, %v3282
        %v3448 = vpack.c.b16 %v3285, %v3284
        %v3449 = vpack.c.b16 %v3287, %v3286
        %v3450 = vpack.c.b16 %v3289, %v3288
        %v3451 = vpack.c.b16 %v3291, %v3290
        %v3452 = vpack.c.b16 %v3293, %v3292
        %v3453 = vpack.c.b16 %v3295, %v3294
        %v3454 = vpack.c.b16 %v3297, %v3296
        %v3455 = vpack.c.b16 %v3299, %v3298
        %v3456 = vpack.c.b16 %v3301, %v3300
        %v3457 = vpack.c.b16 %v3303, %v3302
        %v3458 = vpack.c.b16 %v3305, %v3304
        %v3459 = vpack.c.b16 %v3307, %v3306
        %v3460 = vpack.c.b16 %v3309, %v3308
        %v3461 = vpack.c.b16 %v3311, %v3310
        %v3462 = vpack.c.b16 %v3313, %v3312
        %v3463 = vpack.c.b16 %v3315, %v3314
        %v3464 = vpack.c.b16 %v3317, %v3316
        %v3465 = vpack.c.b16 %v3319, %v3318
        %v3466 = vpack.c.b16 %v3321, %v3320
        %v3467 = vpack.c.b16 %v3323, %v3322
        %v3468 = vpack.c.b16 %v3325, %v3324
        %v3469 = vpack.c.b16 %v3327, %v3326
        %v3470 = vpack.c.b16 %v3329, %v3328
        %v3471 = vpack.c.b16 %v3331, %v3330
        %v3472 = vpack.c.b16 %v3333, %v3332
        %v3473 = vpack.c.b16 %v3335, %v3334
        %v3474 = vpack.c.b16 %v3337, %v3336
        %v3475 = vpack.c.b16 %v3339, %v3338
        %v3476 = vpack.c.b16 %v3341, %v3340
        %v3477 = vpack.c.b16 %v3343, %v3342
        %v3478 = vpack.c.b16 %v3345, %v3344
        %v3479 = vpack.c.b16 %v3347, %v3346
        %v3480 = vpack.c.b16 %v3349, %v3348
        %v3481 = vpack.c.b16 %v3351, %v3350
        %v3482 = vpack.c.b16 %v3353, %v3352
        %v3483 = vpack.c.b16 %v3355, %v3354
        %3612 = vmatpush.bf16.msra.mxu0 %v3363
        %3613 = vmatpush.bf16.msra.mxu0 %v3362
        %3614 = vmatpush.bf16.msra.mxu0 %v3361
        %3615 = vmatpush.bf16.msra.mxu0 %v3360
        %3616 = vmatpush.bf16.msra.mxu0 %v3359
        %3617 = vmatpush.bf16.msra.mxu0 %v3358
        %3618 = vmatpush.bf16.msra.mxu0 %v3357
        %3619 = vmatpush.bf16.msra.mxu0 %v3356
        %3620 = vmatmul.bf16.gmra.mxu0 %v2568
        %v3621 = vpop.f32.mrf.mxu0
        %v3622 = vadd.f32 %v2842, %v3621
        %v3623 = vpop.f32.mrf.mxu0
        %v3624 = vadd.f32 %v2842, %v3623
        %3625 = vdwg.mxu0
        %3626 = vmatpush.bf16.msra.mxu0 %v3371
        %3627 = vmatpush.bf16.msra.mxu0 %v3370
        %3628 = vmatpush.bf16.msra.mxu0 %v3369
        %3629 = vmatpush.bf16.msra.mxu0 %v3368
        %3630 = vmatpush.bf16.msra.mxu0 %v3367
        %3631 = vmatpush.bf16.msra.mxu0 %v3366
        %3632 = vmatpush.bf16.msra.mxu0 %v3365
        %3633 = vmatpush.bf16.msra.mxu0 %v3364
        %3634 = vmatmul.bf16.gmra.mxu0 %v2569
        %v3635 = vpop.f32.mrf.mxu0
        %v3636 = vadd.f32 %v3622, %v3635
        %v3637 = vpop.f32.mrf.mxu0
        %v3638 = vadd.f32 %v3624, %v3637
        %3639 = vdwg.mxu0
        %3640 = vmatpush.bf16.msra.mxu0 %v3379
        %3641 = vmatpush.bf16.msra.mxu0 %v3378
        %3642 = vmatpush.bf16.msra.mxu0 %v3377
        %3643 = vmatpush.bf16.msra.mxu0 %v3376
        %3644 = vmatpush.bf16.msra.mxu0 %v3375
        %3645 = vmatpush.bf16.msra.mxu0 %v3374
        %3646 = vmatpush.bf16.msra.mxu0 %v3373
        %3647 = vmatpush.bf16.msra.mxu0 %v3372
        %3648 = vmatmul.bf16.gmra.mxu0 %v2570
        %v3649 = vpop.f32.mrf.mxu0
        %v3650 = vadd.f32 %v3636, %v3649
        %v3651 = vpop.f32.mrf.mxu0
        %v3652 = vadd.f32 %v3638, %v3651
        %3653 = vdwg.mxu0
        %3654 = vmatpush.bf16.msra.mxu0 %v3387
        %3655 = vmatpush.bf16.msra.mxu0 %v3386
        %3656 = vmatpush.bf16.msra.mxu0 %v3385
        %3657 = vmatpush.bf16.msra.mxu0 %v3384
        %3658 = vmatpush.bf16.msra.mxu0 %v3383
        %3659 = vmatpush.bf16.msra.mxu0 %v3382
        %3660 = vmatpush.bf16.msra.mxu0 %v3381
        %3661 = vmatpush.bf16.msra.mxu0 %v3380
        %3662 = vmatmul.bf16.gmra.mxu0 %v2571
        %v3663 = vpop.f32.mrf.mxu0
        %v3664 = vadd.f32 %v3650, %v3663
        %v3665 = vpop.f32.mrf.mxu0
        %v3666 = vadd.f32 %v3652, %v3665
        %3667 = vdwg.mxu0
        %3668 = vmatpush.bf16.msra.mxu0 %v3395
        %3669 = vmatpush.bf16.msra.mxu0 %v3394
        %3670 = vmatpush.bf16.msra.mxu0 %v3393
        %3671 = vmatpush.bf16.msra.mxu0 %v3392
        %3672 = vmatpush.bf16.msra.mxu0 %v3391
        %3673 = vmatpush.bf16.msra.mxu0 %v3390
        %3674 = vmatpush.bf16.msra.mxu0 %v3389
        %3675 = vmatpush.bf16.msra.mxu0 %v3388
        %3676 = vmatmul.bf16.gmra.mxu0 %v2572
        %v3677 = vpop.f32.mrf.mxu0
        %v3678 = vadd.f32 %v3664, %v3677
        %v3679 = vpop.f32.mrf.mxu0
        %v3680 = vadd.f32 %v3666, %v3679
        %3681 = vdwg.mxu0
        %3682 = vmatpush.bf16.msra.mxu0 %v3403
        %3683 = vmatpush.bf16.msra.mxu0 %v3402
        %3684 = vmatpush.bf16.msra.mxu0 %v3401
        %3685 = vmatpush.bf16.msra.mxu0 %v3400
        %3686 = vmatpush.bf16.msra.mxu0 %v3399
        %3687 = vmatpush.bf16.msra.mxu0 %v3398
        %3688 = vmatpush.bf16.msra.mxu0 %v3397
        %3689 = vmatpush.bf16.msra.mxu0 %v3396
        %3690 = vmatmul.bf16.gmra.mxu0 %v2573
        %v3691 = vpop.f32.mrf.mxu0
        %v3692 = vadd.f32 %v3678, %v3691
        %v3693 = vpop.f32.mrf.mxu0
        %v3694 = vadd.f32 %v3680, %v3693
        %3695 = vdwg.mxu0
        %3696 = vmatpush.bf16.msra.mxu0 %v3411
        %3697 = vmatpush.bf16.msra.mxu0 %v3410
        %3698 = vmatpush.bf16.msra.mxu0 %v3409
        %3699 = vmatpush.bf16.msra.mxu0 %v3408
        %3700 = vmatpush.bf16.msra.mxu0 %v3407
        %3701 = vmatpush.bf16.msra.mxu0 %v3406
        %3702 = vmatpush.bf16.msra.mxu0 %v3405
        %3703 = vmatpush.bf16.msra.mxu0 %v3404
        %3704 = vmatmul.bf16.gmra.mxu0 %v2574
        %v3705 = vpop.f32.mrf.mxu0
        %v3706 = vadd.f32 %v3692, %v3705
        %v3707 = vpop.f32.mrf.mxu0
        %v3708 = vadd.f32 %v3694, %v3707
        %3709 = vdwg.mxu0
        %3710 = vmatpush.bf16.msra.mxu0 %v3419
        %3711 = vmatpush.bf16.msra.mxu0 %v3418
        %3712 = vmatpush.bf16.msra.mxu0 %v3417
        %3713 = vmatpush.bf16.msra.mxu0 %v3416
        %3714 = vmatpush.bf16.msra.mxu0 %v3415
        %3715 = vmatpush.bf16.msra.mxu0 %v3414
        %3716 = vmatpush.bf16.msra.mxu0 %v3413
        %3717 = vmatpush.bf16.msra.mxu0 %v3412
        %3718 = vmatmul.bf16.gmra.mxu0 %v2575
        %v3719 = vpop.f32.mrf.mxu0
        %v3720 = vadd.f32 %v3706, %v3719
        %v3721 = vpop.f32.mrf.mxu0
        %v3722 = vadd.f32 %v3708, %v3721
        %3723 = vdwg.mxu0
        %3724 = vmatpush.bf16.msra.mxu0 %v3427
        %3725 = vmatpush.bf16.msra.mxu0 %v3426
        %3726 = vmatpush.bf16.msra.mxu0 %v3425
        %3727 = vmatpush.bf16.msra.mxu0 %v3424
        %3728 = vmatpush.bf16.msra.mxu0 %v3423
        %3729 = vmatpush.bf16.msra.mxu0 %v3422
        %3730 = vmatpush.bf16.msra.mxu0 %v3421
        %3731 = vmatpush.bf16.msra.mxu0 %v3420
        %3732 = vmatmul.bf16.gmra.mxu0 %v2576
        %v3733 = vpop.f32.mrf.mxu0
        %v3734 = vadd.f32 %v3720, %v3733
        %v3735 = vpop.f32.mrf.mxu0
        %v3736 = vadd.f32 %v3722, %v3735
        %3737 = vdwg.mxu0
        %3738 = vmatpush.bf16.msra.mxu0 %v3435
        %3739 = vmatpush.bf16.msra.mxu0 %v3434
        %3740 = vmatpush.bf16.msra.mxu0 %v3433
        %3741 = vmatpush.bf16.msra.mxu0 %v3432
        %3742 = vmatpush.bf16.msra.mxu0 %v3431
        %3743 = vmatpush.bf16.msra.mxu0 %v3430
        %3744 = vmatpush.bf16.msra.mxu0 %v3429
        %3745 = vmatpush.bf16.msra.mxu0 %v3428
        %3746 = vmatmul.bf16.gmra.mxu0 %v2577
        %v3747 = vpop.f32.mrf.mxu0
        %v3748 = vadd.f32 %v3734, %v3747
        %v3749 = vpop.f32.mrf.mxu0
        %v3750 = vadd.f32 %v3736, %v3749
        %3751 = vdwg.mxu0
        %3752 = vmatpush.bf16.msra.mxu0 %v3443
        %3753 = vmatpush.bf16.msra.mxu0 %v3442
        %3754 = vmatpush.bf16.msra.mxu0 %v3441
        %3755 = vmatpush.bf16.msra.mxu0 %v3440
        %3756 = vmatpush.bf16.msra.mxu0 %v3439
        %3757 = vmatpush.bf16.msra.mxu0 %v3438
        %3758 = vmatpush.bf16.msra.mxu0 %v3437
        %3759 = vmatpush.bf16.msra.mxu0 %v3436
        %3760 = vmatmul.bf16.gmra.mxu0 %v2578
        %v3761 = vpop.f32.mrf.mxu0
        %v3762 = vadd.f32 %v3748, %v3761
        %v3763 = vpop.f32.mrf.mxu0
        %v3764 = vadd.f32 %v3750, %v3763
        %3765 = vdwg.mxu0
        %3766 = vmatpush.bf16.msra.mxu0 %v3451
        %3767 = vmatpush.bf16.msra.mxu0 %v3450
        %3768 = vmatpush.bf16.msra.mxu0 %v3449
        %3769 = vmatpush.bf16.msra.mxu0 %v3448
        %3770 = vmatpush.bf16.msra.mxu0 %v3447
        %3771 = vmatpush.bf16.msra.mxu0 %v3446
        %3772 = vmatpush.bf16.msra.mxu0 %v3445
        %3773 = vmatpush.bf16.msra.mxu0 %v3444
        %3774 = vmatmul.bf16.gmra.mxu0 %v2579
        %v3775 = vpop.f32.mrf.mxu0
        %v3776 = vadd.f32 %v3762, %v3775
        %v3777 = vpop.f32.mrf.mxu0
        %v3778 = vadd.f32 %v3764, %v3777
        %3779 = vdwg.mxu0
        %3780 = vmatpush.bf16.msra.mxu0 %v3459
        %3781 = vmatpush.bf16.msra.mxu0 %v3458
        %3782 = vmatpush.bf16.msra.mxu0 %v3457
        %3783 = vmatpush.bf16.msra.mxu0 %v3456
        %3784 = vmatpush.bf16.msra.mxu0 %v3455
        %3785 = vmatpush.bf16.msra.mxu0 %v3454
        %3786 = vmatpush.bf16.msra.mxu0 %v3453
        %3787 = vmatpush.bf16.msra.mxu0 %v3452
        %3788 = vmatmul.bf16.gmra.mxu0 %v2580
        %v3789 = vpop.f32.mrf.mxu0
        %v3790 = vadd.f32 %v3776, %v3789
        %v3791 = vpop.f32.mrf.mxu0
        %v3792 = vadd.f32 %v3778, %v3791
        %3793 = vdwg.mxu0
        %3794 = vmatpush.bf16.msra.mxu0 %v3467
        %3795 = vmatpush.bf16.msra.mxu0 %v3466
        %3796 = vmatpush.bf16.msra.mxu0 %v3465
        %3797 = vmatpush.bf16.msra.mxu0 %v3464
        %3798 = vmatpush.bf16.msra.mxu0 %v3463
        %3799 = vmatpush.bf16.msra.mxu0 %v3462
        %3800 = vmatpush.bf16.msra.mxu0 %v3461
        %3801 = vmatpush.bf16.msra.mxu0 %v3460
        %3802 = vmatmul.bf16.gmra.mxu0 %v2581
        %v3803 = vpop.f32.mrf.mxu0
        %v3804 = vadd.f32 %v3790, %v3803
        %v3805 = vpop.f32.mrf.mxu0
        %v3806 = vadd.f32 %v3792, %v3805
        %3807 = vdwg.mxu0
        %3808 = vmatpush.bf16.msra.mxu0 %v3475
        %3809 = vmatpush.bf16.msra.mxu0 %v3474
        %3810 = vmatpush.bf16.msra.mxu0 %v3473
        %3811 = vmatpush.bf16.msra.mxu0 %v3472
        %3812 = vmatpush.bf16.msra.mxu0 %v3471
        %3813 = vmatpush.bf16.msra.mxu0 %v3470
        %3814 = vmatpush.bf16.msra.mxu0 %v3469
        %3815 = vmatpush.bf16.msra.mxu0 %v3468
        %3816 = vmatmul.bf16.gmra.mxu0 %v2582
        %v3817 = vpop.f32.mrf.mxu0
        %v3818 = vadd.f32 %v3804, %v3817
        %v3819 = vpop.f32.mrf.mxu0
        %v3820 = vadd.f32 %v3806, %v3819
        %3821 = vdwg.mxu0
        %3822 = vmatpush.bf16.msra.mxu0 %v3483
        %3823 = vmatpush.bf16.msra.mxu0 %v3482
        %3824 = vmatpush.bf16.msra.mxu0 %v3481
        %3825 = vmatpush.bf16.msra.mxu0 %v3480
        %3826 = vmatpush.bf16.msra.mxu0 %v3479
        %3827 = vmatpush.bf16.msra.mxu0 %v3478
        %3828 = vmatpush.bf16.msra.mxu0 %v3477
        %3829 = vmatpush.bf16.msra.mxu0 %v3476
        %3830 = vmatmul.bf16.gmra.mxu0 %v2583
        %v3831 = vpop.f32.mrf.mxu0
        %v3832 = vadd.f32 %v3818, %v3831
        %v3833 = vpop.f32.mrf.mxu0
        %v3834 = vadd.f32 %v3820, %v3833
        %3835 = vdwg.mxu0
        %v3836 = vadd.f32 %v2078, %v3832
        %v3837 = vadd.f32 %v2079, %v3834
        %v3838 = vld [vmem:[%s948] sm:$0x1]
        %v3839 = vld [vmem:[%s951] sm:$0x1]
        %v3840 = vsel %vm1656, %v3836, 0.0
        %3841 = vadd.xlane.f32.xlu0 %v3840
        %v3842 = vpop.xlane.xlu0 %3841
        %v3843 = vsel %vm1656, %v3837, 0.0
        %3844 = vadd.xlane.f32.xlu0 %v3843
        %v3845 = vpop.xlane.xlu0 %3844
        %v3846 = vmul.f32 %v3842, %v2031
        %v3847 = vmul.f32 %v3845, %v2031
        %v3848 = vsub.f32 %v3836, %v3846
        %v3849 = vsub.f32 %v3837, %v3847
        %v3850 = vmul.f32 %v3848, %v3848
        %v3851 = vmul.f32 %v3849, %v3849
        %v3852 = vsel %vm1656, %v3850, 0.0
        %3853 = vadd.xlane.f32.xlu0 %v3852
        %v3854 = vpop.xlane.xlu0 %3853
        %v3855 = vsel %vm1656, %v3851, 0.0
        %3856 = vadd.xlane.f32.xlu0 %v3855
        %v3857 = vpop.xlane.xlu0 %3856
        %v3858 = vmul.f32 %v3854, %v2031
        %v3859 = vmul.f32 %v3857, %v2031
        %v3860 = vadd.f32 %v3858, 1e-05
        %v3861 = vadd.f32 %v3859, 1e-05
        %v3862 = vrsqrt.pop %v3860
        %v3863 = vmul.f32 %v3862, %v3860
        %v3864 = vmul.f32 %v3863, %v3862
        %v3865 = vmul.f32 0.5, %v3864
        %v3866 = vsub.f32 1.5, %v3865
        %v3867 = vmul.f32 %v3862, %v3866
        %vm3868 = vweird.f32 %v3860
        %vm3869 = vweird.f32 %v3862
        %vm3870 = vmor %vm3868, %vm3869
        %v3871 = vsel %vm3870, %v3862, %v3867
        %v3872 = vrsqrt.pop %v3861
        %v3873 = vmul.f32 %v3872, %v3861
        %v3874 = vmul.f32 %v3873, %v3872
        %v3875 = vmul.f32 0.5, %v3874
        %v3876 = vsub.f32 1.5, %v3875
        %v3877 = vmul.f32 %v3872, %v3876
        %vm3878 = vweird.f32 %v3861
        %vm3879 = vweird.f32 %v3872
        %vm3880 = vmor %vm3878, %vm3879
        %v3881 = vsel %vm3880, %v3872, %v3877
        %v3882 = vmul.f32 %v3848, %v3871
        %v3883 = vmul.f32 %v3849, %v3881
        %v3885 = vperm.slane %v3838, 0
        %v3887 = vmul.f32 %v3882, %v3885
        %v3888 = vmul.f32 %v3883, %v3885
        %v3890 = vperm.slane %v3839, 0
        %v3892 = vadd.f32 %v3887, %v3890
        %v3893 = vadd.f32 %v3888, %v3890
        %3894 = vst.msk [vmem:[#allocation2] sm:$0xff] %vm1656, %v3892
        %3895 = vst.msk [vmem:[#allocation2 + $0x8] sm:$0xff] %vm1656, %v3893
        %p3896 = scmp.eq.s32.totalorder %s40, 1
        // Predicated region
        $region125: #{tpu_custom_call.1} parent=119 // pred_check
          %p3897 = pneg %p3896
        $region126: #{tpu_custom_call.1} parent=119 // pred_check_branch
          %3899 = sbr.rel (%p3897) target = $region128
        $region127: #{tpu_custom_call.1} parent=119 // pred_region
          %v3900 = vsel %vm1656, %v3892, 0.0
          %v3901 = vrot.slane %v3900, 4
          %v3902 = vadd.f32 %v3900, %v3901
          %v3903 = vrot.slane %v3902, 2
          %v3904 = vadd.f32 %v3902, %v3903
          %v3905 = vrot.slane %v3904, 1
          %v3906 = vadd.f32 %v3904, %v3905
          %v3907 = vsel %vm1656, %v3893, 0.0
          %v3908 = vrot.slane %v3907, 4
          %v3909 = vadd.f32 %v3907, %v3908
          %v3910 = vrot.slane %v3909, 2
          %v3911 = vadd.f32 %v3909, %v3910
          %v3912 = vrot.slane %v3911, 1
          %v3913 = vadd.f32 %v3911, %v3912
          %v3914 = vrcp.pop 8.0
          %v3915 = vmul.f32 8.0, %v3914
          %v3916 = vsub.f32 1.0, %v3915
          %v3917 = vmul.f32 %v3914, %v3916
          %v3918 = vadd.f32 %v3914, %v3917
          %vm3919 = vweird.f32 %v3914
          %v3920 = vsel %vm3919, %v3914, %v3918
          %v3921 = vmul.f32 %v3906, %v3920
          %v3922 = vmul.f32 %v3913, %v3920
          %v3923 = vld [vmem:[%s2] sm:$0x3]
          %vm3926 = vcmask 1041409
          %v3927 = vsel %vm3926, %v3922, %v3921
          %3930 = vrot.lane.b32.xlu0 %v3923, 32
          %v3931 = vpop.permute.xlu0 %3930
          %v3933 = vsel %vm1656, %v3927, %v3931
          %v3934 = vld [vmem:[%s3] sm:$0x3]
          %v3935 = vpack.c.bf16 %v3934, %v3934
          %v3936 = vld [vmem:[%s21] sm:$0xf]
          %v3937 = vld [vmem:[%s21 + $0x4] sm:$0xf]
          %v3938 = vld [vmem:[%s21 + $0x8] sm:$0xf]
          %v3939 = vld [vmem:[%s22] sm:$0x1]
          %v3941 = vperm.slane %v3939, 0
          %v3946 = vunpack.c.l.b16 %v3936
          %v3947 = vunpack.c.l.b16 %v3937
          %v3948 = vunpack.c.l.b16 %v3938
          %v3949 = vpack.c.b16 %v3947, %v3946
          %v3950 = vpack.c.b16 %v3948, %v3948
          %v3953 = vsel %vm1974, %v3935, 0
          %vm3955 = vcmask 1043456
          %v3957 = vsel %vm3955, %v3950, 0
          %3959 = vmatpush.bf16.msra.mxu0 0
          %3960 = vmatpush.bf16.msra.mxu0 0
          %3961 = vmatpush.bf16.msra.mxu0 0
          %3962 = vmatpush.bf16.msra.mxu0 0
          %3963 = vmatpush.bf16.msra.mxu0 0
          %3964 = vmatpush.bf16.msra.mxu0 0
          %3965 = vmatpush.bf16.msra.mxu0 %v3957
          %3966 = vmatpush.bf16.msra.mxu0 %v3949
          %3967 = vmatmul.bf16.gmra.mxu0 %v3953
          %v3968 = vpop.f32.mrf.mxu0
          %v3969 = vadd.f32 %v3941, %v3968
          %v3970 = vpop.f32.mrf.mxu0
          %3971 = vdwg.mxu0
          %v3972 = vxor.u32 %v3969, 2147483648
          %v3973 = vmul.f32 %v3972, 1.442695
          %v3974 = vpow.pop %v3973
          %v3975 = vadd.f32 %v3974, 1.0
          %v3976 = vrcp.pop %v3975
          %v3977 = vmul.f32 %v3975, %v3976
          %v3978 = vsub.f32 1.0, %v3977
          %v3979 = vmul.f32 %v3976, %v3978
          %v3980 = vadd.f32 %v3976, %v3979
          %vm3981 = vweird.f32 %v3975
          %vm3982 = vweird.f32 %v3976
          %vm3983 = vmor %vm3981, %vm3982
          %v3984 = vsel %vm3983, %v3976, %v3980
          %v3985 = vand.u32 2147483647, %v3975
          %vm3986 = vcmp.eq.f32.partialorder %v3985, 8.507059e+37
          %v3987 = vand.u32 %v3975, 2147483648
          %v3988 = vor.u32 1.1754944e-38, %v3987
          %v3989 = vsel %vm3986, %v3988, %v3984
          %v3990 = vmul.f32 1.0, %v3989
          %v3991 = vmul.f32 %v3933, %v3990
          %v3992 = vmax.f32 %v3991, 0.0
          %v3993 = vpack.c.bf16 %v3992, %v3992
          %v3994 = vld [vmem:[%s23] sm:$0xf]
          %v3995 = vld [vmem:[%s23 + $0x4] sm:$0xf]
          %v3996 = vld [vmem:[%s23 + $0x8] sm:$0xf]
          %v3997 = vld [vmem:[%s23 + $0xc] sm:$0xf]
          %v3998 = vld [vmem:[%s23 + $0x10] sm:$0xf]
          %v3999 = vld [vmem:[%s23 + $0x14] sm:$0xf]
          %v4000 = vld [vmem:[%s23 + $0x18] sm:$0xf]
          %v4001 = vld [vmem:[%s23 + $0x1c] sm:$0xf]
          %v4002 = vld [vmem:[%s24] sm:$0x1]
          %v4004 = vperm.slane %v4002, 0
          %v4014 = vunpack.c.l.b16 %v3994
          %v4015 = vunpack.c.l.b16 %v3995
          %v4016 = vunpack.c.l.b16 %v3996
          %v4017 = vunpack.c.l.b16 %v3997
          %v4018 = vunpack.c.l.b16 %v3998
          %v4019 = vunpack.c.l.b16 %v3999
          %v4020 = vunpack.c.l.b16 %v4000
          %v4021 = vunpack.c.l.b16 %v4001
          %v4022 = vpack.c.b16 %v4015, %v4014
          %v4023 = vpack.c.b16 %v4017, %v4016
          %v4024 = vpack.c.b16 %v4019, %v4018
          %v4025 = vpack.c.b16 %v4021, %v4020
          %vm4030 = vcmask 523264
          %v4032 = vsel %vm4030, %v3993, 0
          %4034 = vmatpush.bf16.msra.mxu0 0
          %4035 = vmatpush.bf16.msra.mxu0 0
          %4036 = vmatpush.bf16.msra.mxu0 0
          %4037 = vmatpush.bf16.msra.mxu0 0
          %4038 = vmatpush.bf16.msra.mxu0 %v4025
          %4039 = vmatpush.bf16.msra.mxu0 %v4024
          %4040 = vmatpush.bf16.msra.mxu0 %v4023
          %4041 = vmatpush.bf16.msra.mxu0 %v4022
          %4042 = vmatmul.bf16.gmra.mxu0 %v4032
          %v4043 = vpop.f32.mrf.mxu0
          %v4044 = vadd.f32 %v4004, %v4043
          %v4045 = vpop.f32.mrf.mxu0
          %4046 = vdwg.mxu0
          %4047 = vst [vmem:[#allocation3] sm:$0x3] %v4044
          %v4048 = vlaneseq
          %v4049 = vand.u32 %v4048, 127
          %vm4050 = vcmp.lt.s32.totalorder %v4049, 10
          %v4051 = vsel %vm4050, %v4044, -1e+30
          %vm4052 = vcmask 1041408
          %v4053 = vsel %vm4052, %v4051, -inf
          %4054 = vmax.xlane.f32.xlu0 %v4053
          %v4055 = vpop.xlane.xlu0 %4054
          %v4056 = vsub.f32 %v4051, %v4055
          %v4057 = vmul.f32 %v4056, 1.442695
          %v4058 = vpow.pop %v4057
          %v4059 = vsel %vm4052, %v4058, 0.0
          %4060 = vadd.xlane.f32.xlu0 %v4059
          %v4061 = vpop.xlane.xlu0 %4060
          %v4062 = vlog2.pop %v4061
          %v4063 = vmul.f32 %v4062, 0.6931472
          %v4064 = vadd.f32 %v4063, %v4055
          %v4065 = vld [vmem:[%s4] sm:$0x3]
          %4066 = vset.pattern.permute.xlu0 0
          %4067 = vperm.xlu0 %4066, %v4065
          %v4068 = vpop.permute.xlu0 %4067
          %vm4069 = vcmp.eq.s32.totalorder %v4049, %v4068
          %v4070 = vsel %vm4069, %v4044, 0.0
          %v4071 = vsel %vm4052, %v4070, 0.0
          %4072 = vadd.xlane.f32.xlu0 %v4071
          %v4073 = vpop.xlane.xlu0 %4072
          %v4074 = vsub.f32 %v4064, %v4073
          %vm4075 = vcmask 1024
          %v4076 = vsel %vm4075, %v4074, 0.0
          %4077 = vadd.xlane.f32.xlu0 %v4076
          %v4078 = vpop.xlane.xlu0 %4077
          %v4079 = vrot.slane %v4078, 4
          %v4080 = vadd.f32 %v4078, %v4079
          %v4081 = vrot.slane %v4080, 2
          %v4082 = vadd.f32 %v4080, %v4081
          %v4083 = vrot.slane %v4082, 1
          %v4084 = vadd.f32 %v4082, %v4083
          %s4085 = vtos %v4084
          %v4086 = vstv %s4085
          %v4087 = vrcp.pop 2.0
          %v4088 = vmul.f32 2.0, %v4087
          %v4089 = vsub.f32 1.0, %v4088
          %v4090 = vmul.f32 %v4087, %v4089
          %v4091 = vadd.f32 %v4087, %v4090
          %vm4092 = vweird.f32 %v4087
          %v4093 = vsel %vm4092, %v4087, %v4091
          %v4094 = vmul.f32 %v4086, %v4093
          %4095 = vst [vmem:[#allocation5] sm:$0x1] %v4094
        $region128: #{tpu_custom_call.1} parent=119 // pred_fallthru
          _
        // Predicated region
        $region129: #{tpu_custom_call.1} parent=119 // pred_check
          %p4096 = pneg %p638
        $region130: #{tpu_custom_call.1} parent=119 // pred_check_branch
          %4098 = sbr.rel (%p4096) target = $region132
        $region131: #{tpu_custom_call.1} parent=119 // pred_region
          %4100 = vsyncadd [#allocation4], 0
          %s4102 = sshll.u32 [#allocation3], 4
          %s4103 = int_to_ptr.vmem [resolvable:$true] %s4102
          %s4104 = sshll.u32 %s25, 4
          %s4105 = int_to_ptr.hbm [resolvable:$true] %s4104
          %4107 = dma.vmem_to_hbm [thread:$0]  %s4103, 32, %s4105, [#allocation4]
        $region132: #{tpu_custom_call.1} parent=119 // pred_fallthru
          _
        // Predicated region
        $region133: #{tpu_custom_call.1} parent=119 // pred_check
          %p4108 = pneg %p659
        $region134: #{tpu_custom_call.1} parent=119 // pred_check_branch
          %4110 = sbr.rel (%p4108) target = $region136
        $region135: #{tpu_custom_call.1} parent=119 // pred_region
          %4112 = vsyncadd [#allocation6], 0
          %s4114 = sshll.u32 [#allocation5], 4
          %s4115 = int_to_ptr.vmem [resolvable:$true] %s4114
          %s4116 = sshll.u32 %s26, 4
          %s4117 = int_to_ptr.hbm [resolvable:$true] %s4116
          %4119 = dma.vmem_to_hbm [thread:$0]  %s4115, 16, %s4117, [#allocation6]
        $region136: #{tpu_custom_call.1} parent=119 // pred_fallthru
          _
        // Predicated region
        $region137: #{tpu_custom_call.1} parent=119 // pred_check
          %p4120 = pneg %p638
        $region138: #{tpu_custom_call.1} parent=119 // pred_check_branch
          %4122 = sbr.rel (%p4120) target = $region140
        $region139: #{tpu_custom_call.1} parent=119 // pred_region
          %4124 = dma.done [#allocation4], 32
        $region140: #{tpu_custom_call.1} parent=119 // pred_fallthru
          _
        // Predicated region
        $region141: #{tpu_custom_call.1} parent=119 // pred_check
          %p4125 = pneg %p659
        $region142: #{tpu_custom_call.1} parent=119 // pred_check_branch
          %4127 = sbr.rel (%p4125) target = $region144
        $region143: #{tpu_custom_call.1} parent=119 // pred_region
          %4129 = dma.done [#allocation6], 16
        $region144: #{tpu_custom_call.1} parent=119 // pred_fallthru
          _
      $region120: #{tpu_custom_call.1} parent=5 // pred_fallthru
        _
      %p4130 = scmp.le.s32.totalorder 2, %s35
      // Predicated region
      $region145: #{tpu_custom_call.1} parent=5 // pred_check
        %p4131 = pneg %p4130
      $region146: #{tpu_custom_call.1} parent=5 // pred_check_branch
        %4133 = sbr.rel (%p4131) target = $region148
      $region147: #{tpu_custom_call.1} parent=5 // pred_region
        %s4134 = ssub.s32 %s35, 2
      $region148: #{tpu_custom_call.1} parent=5 // pred_fallthru
        _
    $region6: #{tpu_custom_call.1} parent=1 // loop_footer
      %s39 = sadd.s32 1, %s35
    $region7: #{tpu_custom_call.1} parent=1 // loop_footer_branch
      %34 = sbr.rel target = $region3
    $region8: #{tpu_custom_call.1} parent=1 // loop_exit
      _
    %4135 = vsyncpa [#allocation4], 1
    %s4136 = scalar_lea.sflag [#allocation4], 1
    %4137 = vsyncpa %s4136, 1
    %4138 = vsyncpa [#allocation6], 1

</llo_original>
